<compile_context>
chip_gen: v7x
topology: tpu7x:2x2x1
jax: 0.10.0
libtpu: 0.0.40
codegen_flags: <defaults>
</compile_context>

<pallas_src>
import numpy as np

import jax
import jax.numpy as jnp
from jax import lax
from jax.experimental import pallas as pl
from jax.experimental.pallas import tpu as pltpu

N_COMPONENTS = 2
RNN_HID = 32
LIN_EMB = 16


# ---------------------------------------------------------------------------
# Kernel
# ---------------------------------------------------------------------------
def _denoiser_kernel(x_ref,
                     wih_f_ref, whh_f_ref, bf_ref,
                     wih_r_ref, whh_r_ref, br_ref,
                     w1a_ref, w1b_ref, b1_ref, w2_ref, b2_ref,
                     out_ref,
                     gxf_ref, gxr_ref, hf_ref, hr_ref):
    """One N-tile of the bidirectional LSTM denoiser.

    x_ref:   [T, Nt, D]   time-major input tile
    wih_*:   [D, 4H]      (transposed torch weight_ih), whh_*: [H, 4H], b*: [1, 4H]
    w1a/w1b: [H, E]       (lin1 weight split into fwd / rev halves), b1: [1, E]
    w2:      [E, D], b2:  [1, D]
    out_ref: [T, Nt, D]
    gxf/gxr: [T, Nt, 4H]  scratch: precomputed input projections (fwd / rev)
    hf/hr:   [T, Nt, H]   scratch: per-timestep hidden states (fwd / rev)
    """
    T, Nt, D = x_ref.shape
    H = whh_f_ref.shape[0]
    G = 4 * H

    # -------- (1) hoisted input projection: two big matmuls instead of 2T tiny ones
    x_flat = x_ref[...].reshape(T * Nt, D)
    gxf_ref[...] = (jnp.dot(x_flat, wih_f_ref[...],
                            preferred_element_type=jnp.float32)
                    + bf_ref[...]).reshape(T, Nt, G)
    gxr_ref[...] = (jnp.dot(x_flat, wih_r_ref[...],
                            preferred_element_type=jnp.float32)
                    + br_ref[...]).reshape(T, Nt, G)

    # -------- (4) recurrent weights loaded once, reused every step
    whh_f = whh_f_ref[...]
    whh_r = whh_r_ref[...]

    def cell(gates, c):
        i = jax.nn.sigmoid(gates[:, 0 * H:1 * H])
        f = jax.nn.sigmoid(gates[:, 1 * H:2 * H])
        g = jnp.tanh(gates[:, 2 * H:3 * H])
        o = jax.nn.sigmoid(gates[:, 3 * H:4 * H])
        c_new = f * c + i * g
        h_new = o * jnp.tanh(c_new)
        return h_new, c_new

    # -------- (2)+(3) interleaved fwd/rev recurrence, unrolled, carries in vregs
    def step(t, carry):
        h_f, c_f, h_r, c_r = carry
        tr = T - 1 - t
        gates_f = gxf_ref[t] + jnp.dot(h_f, whh_f,
                                       preferred_element_type=jnp.float32)
        gates_r = gxr_ref[tr] + jnp.dot(h_r, whh_r,
                                        preferred_element_type=jnp.float32)
        h_f, c_f = cell(gates_f, c_f)
        h_r, c_r = cell(gates_r, c_r)
        hf_ref[t] = h_f
        hr_ref[tr] = h_r
        return (h_f, c_f, h_r, c_r)

    zeros = jnp.zeros((Nt, H), jnp.float32)
    unroll = True if T <= 128 else 8   # full unroll for small fixed T
    lax.fori_loop(0, T, step, (zeros, zeros, zeros, zeros), unroll=unroll)

    # -------- (5) lin1 (concat-free, split weight) -> ReLU -> lin2
    hf = hf_ref[...].reshape(T * Nt, H)
    hr = hr_ref[...].reshape(T * Nt, H)
    y1 = jnp.maximum(
        jnp.dot(hf, w1a_ref[...], preferred_element_type=jnp.float32)
        + jnp.dot(hr, w1b_ref[...], preferred_element_type=jnp.float32)
        + b1_ref[...],
        0.0)
    y2 = jnp.dot(y1, w2_ref[...], preferred_element_type=jnp.float32) + b2_ref[...]
    out_ref[...] = y2.reshape(T, Nt, D)


# ---------------------------------------------------------------------------
# Wrapper
# ---------------------------------------------------------------------------
def _choose_ntile(N, T, H=RNN_HID, vmem_budget=24 * 1024 * 1024):
    """Largest N-tile (<=256 rows) whose per-tile VMEM footprint fits the budget."""
    # f32 bytes per station row resident in the kernel:
    #   2 gate buffers (4H) + 2 hidden histories (H) + double-buffered x/out (D each)
    per_n = 4 * T * (2 * 4 * H + 2 * H + 4 * N_COMPONENTS)
    cap = max(8, vmem_budget // max(per_n, 1))
    cap = int(min(cap, 256))               # ~MXU row target on v6e/v7x
    if N <= cap:
        return N                           # single block equal to full N is always legal
    best = None
    for d in range(8, cap + 1, 8):         # partial blocks must be multiples of 8
        if N % d == 0:
            best = d
    return best if best is not None else N


def onedim_denoiser_forward(x_in, params):
    """x_in: [n_batch, n_stations, window_length, n_dim] float32."""
    B, S, T, D = x_in.shape
    N = B * S
    H, E = RNN_HID, LIN_EMB

    # [B, S, T, D] -> [N, T, D] -> time-major [T, N, D]
    x = jnp.transpose(x_in.reshape(N, T, D), (1, 0, 2))

    # split lin1 weight so the kernel never needs a [T,N,2H] concat buffer
    w1a = params["w1"][:H]
    w1b = params["w1"][H:]

    nt = _choose_ntile(N, T)
    grid = (N // nt,)

    x_spec = pl.BlockSpec((T, nt, D), lambda i: (0, i, 0))
    out_spec = pl.BlockSpec((T, nt, D), lambda i: (0, i, 0))

    def wspec(shape):
        # full-array block, constant index map -> stays resident across the grid
        return pl.BlockSpec(shape, lambda i, _nd=len(shape): (0,) * _nd)

    out_tm = pl.pallas_call(
        _denoiser_kernel,
        out_shape=jax.ShapeDtypeStruct((T, N, D), jnp.float32),
        grid=grid,
        in_specs=[
            x_spec,
            wspec((D, 4 * H)), wspec((H, 4 * H)), wspec((1, 4 * H)),   # fwd LSTM
            wspec((D, 4 * H)), wspec((H, 4 * H)), wspec((1, 4 * H)),   # rev LSTM
            wspec((H, E)), wspec((H, E)), wspec((1, E)),               # lin1 (split)
            wspec((E, D)), wspec((1, D)),                              # lin2
        ],
        out_specs=out_spec,
        scratch_shapes=[
            pltpu.VMEM((T, nt, 4 * H), jnp.float32),   # fwd input-projection gates
            pltpu.VMEM((T, nt, 4 * H), jnp.float32),   # rev input-projection gates
            pltpu.VMEM((T, nt, H), jnp.float32),       # fwd hidden-state history
            pltpu.VMEM((T, nt, H), jnp.float32),       # rev hidden-state history
        ],
        compiler_params=pltpu.CompilerParams(
            dimension_semantics=("parallel",),          # N axis is embarrassingly parallel
            vmem_limit_bytes=48 * 1024 * 1024,
        ),
    )(x,
      params["wih_f"], params["whh_f"], params["b_f"],
      params["wih_r"], params["whh_r"], params["b_r"],
      w1a, w1b, params["b1"], params["w2"], params["b2"])

    # [T, N, D] -> [N, T, D] -> [B, S, T, D]
    return jnp.transpose(out_tm, (1, 0, 2)).reshape(B, S, T, D)


# ---------------------------------------------------------------------------
# Deterministic parameter init (PyTorch-style U(-1/sqrt(H), 1/sqrt(H))).
# ---------------------------------------------------------------------------
def init_params(key):
    H, E, D = RNN_HID, LIN_EMB, N_COMPONENTS
    ks = jax.random.split(key, 16)
    s = 1.0 / np.sqrt(H)

    def u(k, shape, scale):
        return jax.random.uniform(k, shape, jnp.float32, -scale, scale)

    # LSTM (gate order i, f, g, o), stored transposed: [in, 4H]; b = b_ih + b_hh
    wih_f = u(ks[0], (D, 4 * H), s)
    whh_f = u(ks[1], (H, 4 * H), s)
    b_f = u(ks[2], (1, 4 * H), s) + u(ks[3], (1, 4 * H), s)
    wih_r = u(ks[4], (D, 4 * H), s)
    whh_r = u(ks[5], (H, 4 * H), s)
    b_r = u(ks[6], (1, 4 * H), s) + u(ks[7], (1, 4 * H), s)

    # lin1: 2H -> E, lin2: E -> D (stored transposed for x @ W)
    s1 = 1.0 / np.sqrt(2 * H)
    w1 = u(ks[8], (2 * H, E), s1)
    b1 = u(ks[9], (1, E), s1)
    s2 = 1.0 / np.sqrt(E)
    w2 = u(ks[10], (E, D), s2)
    b2 = u(ks[11], (1, D), s2)

    return dict(wih_f=wih_f, whh_f=whh_f, b_f=b_f,
                wih_r=wih_r, whh_r=whh_r, b_r=b_r,
                w1=w1, b1=b1, w2=w2, b2=b2)


# ---------------------------------------------------------------------------
# Pure-JAX reference (for correctness check).
# ---------------------------------------------------------------------------
def _lstm_dir_ref(x_tm, wih, whh, b):
    H = RNN_HID
    N = x_tm.shape[1]

    def step(carry, x_t):
        h, c = carry
        gates = x_t @ wih + h @ whh + b
        i = jax.nn.sigmoid(gates[:, 0 * H:1 * H])
        f = jax.nn.sigmoid(gates[:, 1 * H:2 * H])
        g = jnp.tanh(gates[:, 2 * H:3 * H])
        o = jax.nn.sigmoid(gates[:, 3 * H:4 * H])
        c = f * c + i * g
        h = o * jnp.tanh(c)
        return (h, c), h

    init = (jnp.zeros((N, H), jnp.float32), jnp.zeros((N, H), jnp.float32))
    _, hs = lax.scan(step, init, x_tm)
    return hs  # [T, N, H]


def reference_forward(x_in, p):
    B, S, T, D = x_in.shape
    N = B * S
    x_tm = jnp.transpose(x_in.reshape(N, T, D), (1, 0, 2))          # [T, N, D]
    h_fwd = _lstm_dir_ref(x_tm, p["wih_f"], p["whh_f"], p["b_f"])
    h_rev = _lstm_dir_ref(x_tm[::-1], p["wih_r"], p["whh_r"], p["b_r"])[::-1]
    hid = jnp.concatenate([h_fwd, h_rev], axis=-1)                  # [T, N, 2H]
    y1 = jnp.maximum(hid @ p["w1"] + p["b1"], 0.0)
    y2 = y1 @ p["w2"] + p["b2"]                                     # [T, N, D]
    return jnp.transpose(y2, (1, 0, 2)).reshape(B, S, T, D)


if __name__ == "__main__":
    key = jax.random.PRNGKey(0)
    k_param, k_x = jax.random.split(key)

    n_batch, n_stations, window_length, n_dim = 2, 4, 16, N_COMPONENTS
    x_in = jax.random.normal(
        k_x, (n_batch, n_stations, window_length, n_dim), jnp.float32)

    params = init_params(k_param)

    out = jax.block_until_ready(onedim_denoiser_forward(x_in, params))
    ref = jax.block_until_ready(reference_forward(x_in, params))

    assert out.shape == x_in.shape, (out.shape, x_in.shape)
    np.testing.assert_allclose(np.asarray(out), np.asarray(ref),
                               rtol=2e-3, atol=2e-3)
    print("KERNEL_OK")
</pallas_src>

<mosaic_0001>
module attributes {stable_mosaic.version = 11 : i64} {
  func.func @_denoiser_kernel(%arg0: i32, %arg1: memref<16x8x2xf32, #tpu.memory_space<vmem>>, %arg2: memref<2x128xf32, #tpu.memory_space<vmem>>, %arg3: memref<32x128xf32, #tpu.memory_space<vmem>>, %arg4: memref<1x128xf32, #tpu.memory_space<vmem>>, %arg5: memref<2x128xf32, #tpu.memory_space<vmem>>, %arg6: memref<32x128xf32, #tpu.memory_space<vmem>>, %arg7: memref<1x128xf32, #tpu.memory_space<vmem>>, %arg8: memref<32x16xf32, #tpu.memory_space<vmem>>, %arg9: memref<32x16xf32, #tpu.memory_space<vmem>>, %arg10: memref<1x16xf32, #tpu.memory_space<vmem>>, %arg11: memref<16x2xf32, #tpu.memory_space<vmem>>, %arg12: memref<1x2xf32, #tpu.memory_space<vmem>>, %arg13: memref<16x8x2xf32, #tpu.memory_space<vmem>>, %arg14: memref<16x8x128xf32, #tpu.memory_space<vmem>>, %arg15: memref<16x8x128xf32, #tpu.memory_space<vmem>>, %arg16: memref<16x8x32xf32, #tpu.memory_space<vmem>>, %arg17: memref<16x8x32xf32, #tpu.memory_space<vmem>>) attributes {dimension_semantics = [#tpu.dimension_semantics<parallel>], iteration_bounds = array<i64: 1>, scalar_prefetch = 0 : i64, scratch_operands = 4 : i64, tpu.core_type = #tpu.core_type<tc>, window_params = [{transform_indices = @transform_0, window_bounds = array<i64: 16, 8, 2>}, {pipeline_mode = #tpu.pipeline_mode<synchronous>, transform_indices = @transform_1, window_bounds = array<i64: 2, 128>}, {pipeline_mode = #tpu.pipeline_mode<synchronous>, transform_indices = @transform_2, window_bounds = array<i64: 32, 128>}, {pipeline_mode = #tpu.pipeline_mode<synchronous>, transform_indices = @transform_3, window_bounds = array<i64: 1, 128>}, {pipeline_mode = #tpu.pipeline_mode<synchronous>, transform_indices = @transform_4, window_bounds = array<i64: 2, 128>}, {pipeline_mode = #tpu.pipeline_mode<synchronous>, transform_indices = @transform_5, window_bounds = array<i64: 32, 128>}, {pipeline_mode = #tpu.pipeline_mode<synchronous>, transform_indices = @transform_6, window_bounds = array<i64: 1, 128>}, {pipeline_mode = #tpu.pipeline_mode<synchronous>, transform_indices = @transform_7, window_bounds = array<i64: 32, 16>}, {pipeline_mode = #tpu.pipeline_mode<synchronous>, transform_indices = @transform_8, window_bounds = array<i64: 32, 16>}, {pipeline_mode = #tpu.pipeline_mode<synchronous>, transform_indices = @transform_9, window_bounds = array<i64: 1, 16>}, {pipeline_mode = #tpu.pipeline_mode<synchronous>, transform_indices = @transform_10, window_bounds = array<i64: 16, 2>}, {pipeline_mode = #tpu.pipeline_mode<synchronous>, transform_indices = @transform_11, window_bounds = array<i64: 1, 2>}, {transform_indices = @transform_12, window_bounds = array<i64: 16, 8, 2>}]} {
    %c0 = arith.constant 0 : index
    %c0_0 = arith.constant 0 : index
    %c0_1 = arith.constant 0 : index
    %0 = vector.load %arg1[%c0, %c0_0, %c0_1] : memref<16x8x2xf32, #tpu.memory_space<vmem>>, vector<16x8x2xf32>
    %1 = vector.shape_cast %0 : vector<16x8x2xf32> to vector<128x2xf32>
    %c0_2 = arith.constant 0 : index
    %c0_3 = arith.constant 0 : index
    %2 = vector.load %arg2[%c0_2, %c0_3] : memref<2x128xf32, #tpu.memory_space<vmem>>, vector<2x128xf32>
    %cst = arith.constant dense<0.000000e+00> : vector<128x128xf32>
    %3 = tpu.matmul %1, %2, %cst {dimension_numbers = #tpu.dot_dimension_numbers<[1], [0], [0], [1], [0, 0, 1, 1], [], []>} : vector<128x2xf32>, vector<2x128xf32>, vector<128x128xf32> -> vector<128x128xf32>
    %c0_4 = arith.constant 0 : index
    %c0_5 = arith.constant 0 : index
    %4 = vector.load %arg4[%c0_4, %c0_5] : memref<1x128xf32, #tpu.memory_space<vmem>>, vector<1x128xf32>
    %5 = vector.broadcast %4 : vector<1x128xf32> to vector<128x128xf32>
    %6 = arith.addf %3, %5 : vector<128x128xf32>
    %7 = vector.shape_cast %6 : vector<128x128xf32> to vector<16x8x128xf32>
    %c0_6 = arith.constant 0 : index
    %c0_7 = arith.constant 0 : index
    %c0_8 = arith.constant 0 : index
    %8 = vector.load %arg14[%c0_6, %c0_7, %c0_8] : memref<16x8x128xf32, #tpu.memory_space<vmem>>, vector<16x8x128xf32>
    tpu.vector_store %arg14[%c0_6, %c0_7, %c0_8], %7 {strides = array<i32>} : memref<16x8x128xf32, #tpu.memory_space<vmem>>, vector<16x8x128xf32>,
    %c0_9 = arith.constant 0 : index
    %c0_10 = arith.constant 0 : index
    %9 = vector.load %arg5[%c0_9, %c0_10] : memref<2x128xf32, #tpu.memory_space<vmem>>, vector<2x128xf32>
    %cst_11 = arith.constant dense<0.000000e+00> : vector<128x128xf32>
    %10 = tpu.matmul %1, %9, %cst_11 {dimension_numbers = #tpu.dot_dimension_numbers<[1], [0], [0], [1], [0, 0, 1, 1], [], []>} : vector<128x2xf32>, vector<2x128xf32>, vector<128x128xf32> -> vector<128x128xf32>
    %c0_12 = arith.constant 0 : index
    %c0_13 = arith.constant 0 : index
    %11 = vector.load %arg7[%c0_12, %c0_13] : memref<1x128xf32, #tpu.memory_space<vmem>>, vector<1x128xf32>
    %12 = vector.broadcast %11 : vector<1x128xf32> to vector<128x128xf32>
    %13 = arith.addf %10, %12 : vector<128x128xf32>
    %14 = vector.shape_cast %13 : vector<128x128xf32> to vector<16x8x128xf32>
    %c0_14 = arith.constant 0 : index
    %c0_15 = arith.constant 0 : index
    %c0_16 = arith.constant 0 : index
    %15 = vector.load %arg15[%c0_14, %c0_15, %c0_16] : memref<16x8x128xf32, #tpu.memory_space<vmem>>, vector<16x8x128xf32>
    tpu.vector_store %arg15[%c0_14, %c0_15, %c0_16], %14 {strides = array<i32>} : memref<16x8x128xf32, #tpu.memory_space<vmem>>, vector<16x8x128xf32>,
    %c0_17 = arith.constant 0 : index
    %c0_18 = arith.constant 0 : index
    %16 = vector.load %arg3[%c0_17, %c0_18] : memref<32x128xf32, #tpu.memory_space<vmem>>, vector<32x128xf32>
    %c0_19 = arith.constant 0 : index
    %c0_20 = arith.constant 0 : index
    %17 = vector.load %arg6[%c0_19, %c0_20] : memref<32x128xf32, #tpu.memory_space<vmem>>, vector<32x128xf32>
    %cst_21 = arith.constant 0.000000e+00 : f32
    %18 = vector.broadcast %cst_21 : f32 to vector<8x32xf32>
    %c0_i32 = arith.constant 0 : i32
    %c15_i32 = arith.constant 15 : i32
    %19 = arith.subi %c15_i32, %c0_i32 : i32
    %20 = arith.index_cast %c0_i32 : i32 to index
    %c0_22 = arith.constant 0 : index
    %c0_23 = arith.constant 0 : index
    %21 = vector.load %arg14[%20, %c0_22, %c0_23] : memref<16x8x128xf32, #tpu.memory_space<vmem>>, vector<1x8x128xf32>
    %22 = vector.shape_cast %21 : vector<1x8x128xf32> to vector<8x128xf32>
    %cst_24 = arith.constant dense<0.000000e+00> : vector<8x128xf32>
    %23 = tpu.matmul %18, %16, %cst_24 {dimension_numbers = #tpu.dot_dimension_numbers<[1], [0], [0], [1], [0, 0, 1, 1], [], []>} : vector<8x32xf32>, vector<32x128xf32>, vector<8x128xf32> -> vector<8x128xf32>
    %24 = arith.addf %22, %23 : vector<8x128xf32>
    %25 = arith.index_cast %19 : i32 to index
    %c0_25 = arith.constant 0 : index
    %c0_26 = arith.constant 0 : index
    %26 = vector.load %arg15[%25, %c0_25, %c0_26] : memref<16x8x128xf32, #tpu.memory_space<vmem>>, vector<1x8x128xf32>
    %27 = vector.shape_cast %26 : vector<1x8x128xf32> to vector<8x128xf32>
    %cst_27 = arith.constant dense<0.000000e+00> : vector<8x128xf32>
    %28 = tpu.matmul %18, %17, %cst_27 {dimension_numbers = #tpu.dot_dimension_numbers<[1], [0], [0], [1], [0, 0, 1, 1], [], []>} : vector<8x32xf32>, vector<32x128xf32>, vector<8x128xf32> -> vector<8x128xf32>
    %29 = arith.addf %27, %28 : vector<8x128xf32>
    %30 = vector.extract_strided_slice %24 {offsets = [0, 0], sizes = [8, 32], strides = [1, 1]} : vector<8x128xf32> to vector<8x32xf32>
    %31 = arith.negf %30 : vector<8x32xf32>
    %32 = math.exp %31 : vector<8x32xf32>
    %cst_28 = arith.constant 1.000000e+00 : f32
    %33 = vector.broadcast %cst_28 : f32 to vector<8x32xf32>
    %34 = arith.addf %33, %32 : vector<8x32xf32>
    %35 = arith.divf %33, %34 : vector<8x32xf32>
    %36 = vector.extract_strided_slice %24 {offsets = [0, 32], sizes = [8, 32], strides = [1, 1]} : vector<8x128xf32> to vector<8x32xf32>
    %37 = arith.negf %36 : vector<8x32xf32>
    %38 = math.exp %37 : vector<8x32xf32>
    %cst_29 = arith.constant 1.000000e+00 : f32
    %39 = vector.broadcast %cst_29 : f32 to vector<8x32xf32>
    %40 = arith.addf %39, %38 : vector<8x32xf32>
    %41 = arith.divf %39, %40 : vector<8x32xf32>
    %42 = vector.extract_strided_slice %24 {offsets = [0, 64], sizes = [8, 32], strides = [1, 1]} : vector<8x128xf32> to vector<8x32xf32>
    %43 = math.tanh %42 : vector<8x32xf32>
    %44 = vector.extract_strided_slice %24 {offsets = [0, 96], sizes = [8, 32], strides = [1, 1]} : vector<8x128xf32> to vector<8x32xf32>
    %45 = arith.negf %44 : vector<8x32xf32>
    %46 = math.exp %45 : vector<8x32xf32>
    %cst_30 = arith.constant 1.000000e+00 : f32
    %47 = vector.broadcast %cst_30 : f32 to vector<8x32xf32>
    %48 = arith.addf %47, %46 : vector<8x32xf32>
    %49 = arith.divf %47, %48 : vector<8x32xf32>
    %50 = arith.mulf %41, %18 : vector<8x32xf32>
    %51 = arith.mulf %35, %43 : vector<8x32xf32>
    %52 = arith.addf %50, %51 : vector<8x32xf32>
    %53 = math.tanh %52 : vector<8x32xf32>
    %54 = arith.mulf %49, %53 : vector<8x32xf32>
    %55 = vector.extract_strided_slice %29 {offsets = [0, 0], sizes = [8, 32], strides = [1, 1]} : vector<8x128xf32> to vector<8x32xf32>
    %56 = arith.negf %55 : vector<8x32xf32>
    %57 = math.exp %56 : vector<8x32xf32>
    %cst_31 = arith.constant 1.000000e+00 : f32
    %58 = vector.broadcast %cst_31 : f32 to vector<8x32xf32>
    %59 = arith.addf %58, %57 : vector<8x32xf32>
    %60 = arith.divf %58, %59 : vector<8x32xf32>
    %61 = vector.extract_strided_slice %29 {offsets = [0, 32], sizes = [8, 32], strides = [1, 1]} : vector<8x128xf32> to vector<8x32xf32>
    %62 = arith.negf %61 : vector<8x32xf32>
    %63 = math.exp %62 : vector<8x32xf32>
    %cst_32 = arith.constant 1.000000e+00 : f32
    %64 = vector.broadcast %cst_32 : f32 to vector<8x32xf32>
    %65 = arith.addf %64, %63 : vector<8x32xf32>
    %66 = arith.divf %64, %65 : vector<8x32xf32>
    %67 = vector.extract_strided_slice %29 {offsets = [0, 64], sizes = [8, 32], strides = [1, 1]} : vector<8x128xf32> to vector<8x32xf32>
    %68 = math.tanh %67 : vector<8x32xf32>
    %69 = vector.extract_strided_slice %29 {offsets = [0, 96], sizes = [8, 32], strides = [1, 1]} : vector<8x128xf32> to vector<8x32xf32>
    %70 = arith.negf %69 : vector<8x32xf32>
    %71 = math.exp %70 : vector<8x32xf32>
    %cst_33 = arith.constant 1.000000e+00 : f32
    %72 = vector.broadcast %cst_33 : f32 to vector<8x32xf32>
    %73 = arith.addf %72, %71 : vector<8x32xf32>
    %74 = arith.divf %72, %73 : vector<8x32xf32>
    %75 = arith.mulf %66, %18 : vector<8x32xf32>
    %76 = arith.mulf %60, %68 : vector<8x32xf32>
    %77 = arith.addf %75, %76 : vector<8x32xf32>
    %78 = math.tanh %77 : vector<8x32xf32>
    %79 = arith.mulf %74, %78 : vector<8x32xf32>
    %80 = arith.index_cast %c0_i32 : i32 to index
    %c0_34 = arith.constant 0 : index
    %c0_35 = arith.constant 0 : index
    %81 = vector.load %arg16[%80, %c0_34, %c0_35] : memref<16x8x32xf32, #tpu.memory_space<vmem>>, vector<1x8x32xf32>
    %82 = vector.shape_cast %81 : vector<1x8x32xf32> to vector<8x32xf32>
    %83 = vector.shape_cast %54 : vector<8x32xf32> to vector<1x8x32xf32>
    tpu.vector_store %arg16[%80, %c0_34, %c0_35], %83 {strides = array<i32>} : memref<16x8x32xf32, #tpu.memory_space<vmem>>, vector<1x8x32xf32>,
    %84 = arith.index_cast %19 : i32 to index
    %c0_36 = arith.constant 0 : index
    %c0_37 = arith.constant 0 : index
    %85 = vector.load %arg17[%84, %c0_36, %c0_37] : memref<16x8x32xf32, #tpu.memory_space<vmem>>, vector<1x8x32xf32>
    %86 = vector.shape_cast %85 : vector<1x8x32xf32> to vector<8x32xf32>
    %87 = vector.shape_cast %79 : vector<8x32xf32> to vector<1x8x32xf32>
    tpu.vector_store %arg17[%84, %c0_36, %c0_37], %87 {strides = array<i32>} : memref<16x8x32xf32, #tpu.memory_space<vmem>>, vector<1x8x32xf32>,
    %c1_i32 = arith.constant 1 : i32
    %c15_i32_38 = arith.constant 15 : i32
    %88 = arith.subi %c15_i32_38, %c1_i32 : i32
    %89 = arith.index_cast %c1_i32 : i32 to index
    %c0_39 = arith.constant 0 : index
    %c0_40 = arith.constant 0 : index
    %90 = vector.load %arg14[%89, %c0_39, %c0_40] : memref<16x8x128xf32, #tpu.memory_space<vmem>>, vector<1x8x128xf32>
    %91 = vector.shape_cast %90 : vector<1x8x128xf32> to vector<8x128xf32>
    %cst_41 = arith.constant dense<0.000000e+00> : vector<8x128xf32>
    %92 = tpu.matmul %54, %16, %cst_41 {dimension_numbers = #tpu.dot_dimension_numbers<[1], [0], [0], [1], [0, 0, 1, 1], [], []>} : vector<8x32xf32>, vector<32x128xf32>, vector<8x128xf32> -> vector<8x128xf32>
    %93 = arith.addf %91, %92 : vector<8x128xf32>
    %94 = arith.index_cast %88 : i32 to index
    %c0_42 = arith.constant 0 : index
    %c0_43 = arith.constant 0 : index
    %95 = vector.load %arg15[%94, %c0_42, %c0_43] : memref<16x8x128xf32, #tpu.memory_space<vmem>>, vector<1x8x128xf32>
    %96 = vector.shape_cast %95 : vector<1x8x128xf32> to vector<8x128xf32>
    %cst_44 = arith.constant dense<0.000000e+00> : vector<8x128xf32>
    %97 = tpu.matmul %79, %17, %cst_44 {dimension_numbers = #tpu.dot_dimension_numbers<[1], [0], [0], [1], [0, 0, 1, 1], [], []>} : vector<8x32xf32>, vector<32x128xf32>, vector<8x128xf32> -> vector<8x128xf32>
    %98 = arith.addf %96, %97 : vector<8x128xf32>
    %99 = vector.extract_strided_slice %93 {offsets = [0, 0], sizes = [8, 32], strides = [1, 1]} : vector<8x128xf32> to vector<8x32xf32>
    %100 = arith.negf %99 : vector<8x32xf32>
    %101 = math.exp %100 : vector<8x32xf32>
    %cst_45 = arith.constant 1.000000e+00 : f32
    %102 = vector.broadcast %cst_45 : f32 to vector<8x32xf32>
    %103 = arith.addf %102, %101 : vector<8x32xf32>
    %104 = arith.divf %102, %103 : vector<8x32xf32>
    %105 = vector.extract_strided_slice %93 {offsets = [0, 32], sizes = [8, 32], strides = [1, 1]} : vector<8x128xf32> to vector<8x32xf32>
    %106 = arith.negf %105 : vector<8x32xf32>
    %107 = math.exp %106 : vector<8x32xf32>
    %cst_46 = arith.constant 1.000000e+00 : f32
    %108 = vector.broadcast %cst_46 : f32 to vector<8x32xf32>
    %109 = arith.addf %108, %107 : vector<8x32xf32>
    %110 = arith.divf %108, %109 : vector<8x32xf32>
    %111 = vector.extract_strided_slice %93 {offsets = [0, 64], sizes = [8, 32], strides = [1, 1]} : vector<8x128xf32> to vector<8x32xf32>
    %112 = math.tanh %111 : vector<8x32xf32>
    %113 = vector.extract_strided_slice %93 {offsets = [0, 96], sizes = [8, 32], strides = [1, 1]} : vector<8x128xf32> to vector<8x32xf32>
    %114 = arith.negf %113 : vector<8x32xf32>
    %115 = math.exp %114 : vector<8x32xf32>
    %cst_47 = arith.constant 1.000000e+00 : f32
    %116 = vector.broadcast %cst_47 : f32 to vector<8x32xf32>
    %117 = arith.addf %116, %115 : vector<8x32xf32>
    %118 = arith.divf %116, %117 : vector<8x32xf32>
    %119 = arith.mulf %110, %52 : vector<8x32xf32>
    %120 = arith.mulf %104, %112 : vector<8x32xf32>
    %121 = arith.addf %119, %120 : vector<8x32xf32>
    %122 = math.tanh %121 : vector<8x32xf32>
    %123 = arith.mulf %118, %122 : vector<8x32xf32>
    %124 = vector.extract_strided_slice %98 {offsets = [0, 0], sizes = [8, 32], strides = [1, 1]} : vector<8x128xf32> to vector<8x32xf32>
    %125 = arith.negf %124 : vector<8x32xf32>
    %126 = math.exp %125 : vector<8x32xf32>
    %cst_48 = arith.constant 1.000000e+00 : f32
    %127 = vector.broadcast %cst_48 : f32 to vector<8x32xf32>
    %128 = arith.addf %127, %126 : vector<8x32xf32>
    %129 = arith.divf %127, %128 : vector<8x32xf32>
    %130 = vector.extract_strided_slice %98 {offsets = [0, 32], sizes = [8, 32], strides = [1, 1]} : vector<8x128xf32> to vector<8x32xf32>
    %131 = arith.negf %130 : vector<8x32xf32>
    %132 = math.exp %131 : vector<8x32xf32>
    %cst_49 = arith.constant 1.000000e+00 : f32
    %133 = vector.broadcast %cst_49 : f32 to vector<8x32xf32>
    %134 = arith.addf %133, %132 : vector<8x32xf32>
    %135 = arith.divf %133, %134 : vector<8x32xf32>
    %136 = vector.extract_strided_slice %98 {offsets = [0, 64], sizes = [8, 32], strides = [1, 1]} : vector<8x128xf32> to vector<8x32xf32>
    %137 = math.tanh %136 : vector<8x32xf32>
    %138 = vector.extract_strided_slice %98 {offsets = [0, 96], sizes = [8, 32], strides = [1, 1]} : vector<8x128xf32> to vector<8x32xf32>
    %139 = arith.negf %138 : vector<8x32xf32>
    %140 = math.exp %139 : vector<8x32xf32>
    %cst_50 = arith.constant 1.000000e+00 : f32
    %141 = vector.broadcast %cst_50 : f32 to vector<8x32xf32>
    %142 = arith.addf %141, %140 : vector<8x32xf32>
    %143 = arith.divf %141, %142 : vector<8x32xf32>
    %144 = arith.mulf %135, %77 : vector<8x32xf32>
    %145 = arith.mulf %129, %137 : vector<8x32xf32>
    %146 = arith.addf %144, %145 : vector<8x32xf32>
    %147 = math.tanh %146 : vector<8x32xf32>
    %148 = arith.mulf %143, %147 : vector<8x32xf32>
    %149 = arith.index_cast %c1_i32 : i32 to index
    %c0_51 = arith.constant 0 : index
    %c0_52 = arith.constant 0 : index
    %150 = vector.load %arg16[%149, %c0_51, %c0_52] : memref<16x8x32xf32, #tpu.memory_space<vmem>>, vector<1x8x32xf32>
    %151 = vector.shape_cast %150 : vector<1x8x32xf32> to vector<8x32xf32>
    %152 = vector.shape_cast %123 : vector<8x32xf32> to vector<1x8x32xf32>
    tpu.vector_store %arg16[%149, %c0_51, %c0_52], %152 {strides = array<i32>} : memref<16x8x32xf32, #tpu.memory_space<vmem>>, vector<1x8x32xf32>,
    %153 = arith.index_cast %88 : i32 to index
    %c0_53 = arith.constant 0 : index
    %c0_54 = arith.constant 0 : index
    %154 = vector.load %arg17[%153, %c0_53, %c0_54] : memref<16x8x32xf32, #tpu.memory_space<vmem>>, vector<1x8x32xf32>
    %155 = vector.shape_cast %154 : vector<1x8x32xf32> to vector<8x32xf32>
    %156 = vector.shape_cast %148 : vector<8x32xf32> to vector<1x8x32xf32>
    tpu.vector_store %arg17[%153, %c0_53, %c0_54], %156 {strides = array<i32>} : memref<16x8x32xf32, #tpu.memory_space<vmem>>, vector<1x8x32xf32>,
    %c2_i32 = arith.constant 2 : i32
    %c15_i32_55 = arith.constant 15 : i32
    %157 = arith.subi %c15_i32_55, %c2_i32 : i32
    %158 = arith.index_cast %c2_i32 : i32 to index
    %c0_56 = arith.constant 0 : index
    %c0_57 = arith.constant 0 : index
    %159 = vector.load %arg14[%158, %c0_56, %c0_57] : memref<16x8x128xf32, #tpu.memory_space<vmem>>, vector<1x8x128xf32>
    %160 = vector.shape_cast %159 : vector<1x8x128xf32> to vector<8x128xf32>
    %cst_58 = arith.constant dense<0.000000e+00> : vector<8x128xf32>
    %161 = tpu.matmul %123, %16, %cst_58 {dimension_numbers = #tpu.dot_dimension_numbers<[1], [0], [0], [1], [0, 0, 1, 1], [], []>} : vector<8x32xf32>, vector<32x128xf32>, vector<8x128xf32> -> vector<8x128xf32>
    %162 = arith.addf %160, %161 : vector<8x128xf32>
    %163 = arith.index_cast %157 : i32 to index
    %c0_59 = arith.constant 0 : index
    %c0_60 = arith.constant 0 : index
    %164 = vector.load %arg15[%163, %c0_59, %c0_60] : memref<16x8x128xf32, #tpu.memory_space<vmem>>, vector<1x8x128xf32>
    %165 = vector.shape_cast %164 : vector<1x8x128xf32> to vector<8x128xf32>
    %cst_61 = arith.constant dense<0.000000e+00> : vector<8x128xf32>
    %166 = tpu.matmul %148, %17, %cst_61 {dimension_numbers = #tpu.dot_dimension_numbers<[1], [0], [0], [1], [0, 0, 1, 1], [], []>} : vector<8x32xf32>, vector<32x128xf32>, vector<8x128xf32> -> vector<8x128xf32>
    %167 = arith.addf %165, %166 : vector<8x128xf32>
    %168 = vector.extract_strided_slice %162 {offsets = [0, 0], sizes = [8, 32], strides = [1, 1]} : vector<8x128xf32> to vector<8x32xf32>
    %169 = arith.negf %168 : vector<8x32xf32>
    %170 = math.exp %169 : vector<8x32xf32>
    %cst_62 = arith.constant 1.000000e+00 : f32
    %171 = vector.broadcast %cst_62 : f32 to vector<8x32xf32>
    %172 = arith.addf %171, %170 : vector<8x32xf32>
    %173 = arith.divf %171, %172 : vector<8x32xf32>
    %174 = vector.extract_strided_slice %162 {offsets = [0, 32], sizes = [8, 32], strides = [1, 1]} : vector<8x128xf32> to vector<8x32xf32>
    %175 = arith.negf %174 : vector<8x32xf32>
    %176 = math.exp %175 : vector<8x32xf32>
    %cst_63 = arith.constant 1.000000e+00 : f32
    %177 = vector.broadcast %cst_63 : f32 to vector<8x32xf32>
    %178 = arith.addf %177, %176 : vector<8x32xf32>
    %179 = arith.divf %177, %178 : vector<8x32xf32>
    %180 = vector.extract_strided_slice %162 {offsets = [0, 64], sizes = [8, 32], strides = [1, 1]} : vector<8x128xf32> to vector<8x32xf32>
    %181 = math.tanh %180 : vector<8x32xf32>
    %182 = vector.extract_strided_slice %162 {offsets = [0, 96], sizes = [8, 32], strides = [1, 1]} : vector<8x128xf32> to vector<8x32xf32>
    %183 = arith.negf %182 : vector<8x32xf32>
    %184 = math.exp %183 : vector<8x32xf32>
    %cst_64 = arith.constant 1.000000e+00 : f32
    %185 = vector.broadcast %cst_64 : f32 to vector<8x32xf32>
    %186 = arith.addf %185, %184 : vector<8x32xf32>
    %187 = arith.divf %185, %186 : vector<8x32xf32>
    %188 = arith.mulf %179, %121 : vector<8x32xf32>
    %189 = arith.mulf %173, %181 : vector<8x32xf32>
    %190 = arith.addf %188, %189 : vector<8x32xf32>
    %191 = math.tanh %190 : vector<8x32xf32>
    %192 = arith.mulf %187, %191 : vector<8x32xf32>
    %193 = vector.extract_strided_slice %167 {offsets = [0, 0], sizes = [8, 32], strides = [1, 1]} : vector<8x128xf32> to vector<8x32xf32>
    %194 = arith.negf %193 : vector<8x32xf32>
    %195 = math.exp %194 : vector<8x32xf32>
    %cst_65 = arith.constant 1.000000e+00 : f32
    %196 = vector.broadcast %cst_65 : f32 to vector<8x32xf32>
    %197 = arith.addf %196, %195 : vector<8x32xf32>
    %198 = arith.divf %196, %197 : vector<8x32xf32>
    %199 = vector.extract_strided_slice %167 {offsets = [0, 32], sizes = [8, 32], strides = [1, 1]} : vector<8x128xf32> to vector<8x32xf32>
    %200 = arith.negf %199 : vector<8x32xf32>
    %201 = math.exp %200 : vector<8x32xf32>
    %cst_66 = arith.constant 1.000000e+00 : f32
    %202 = vector.broadcast %cst_66 : f32 to vector<8x32xf32>
    %203 = arith.addf %202, %201 : vector<8x32xf32>
    %204 = arith.divf %202, %203 : vector<8x32xf32>
    %205 = vector.extract_strided_slice %167 {offsets = [0, 64], sizes = [8, 32], strides = [1, 1]} : vector<8x128xf32> to vector<8x32xf32>
    %206 = math.tanh %205 : vector<8x32xf32>
    %207 = vector.extract_strided_slice %167 {offsets = [0, 96], sizes = [8, 32], strides = [1, 1]} : vector<8x128xf32> to vector<8x32xf32>
    %208 = arith.negf %207 : vector<8x32xf32>
    %209 = math.exp %208 : vector<8x32xf32>
    %cst_67 = arith.constant 1.000000e+00 : f32
    %210 = vector.broadcast %cst_67 : f32 to vector<8x32xf32>
    %211 = arith.addf %210, %209 : vector<8x32xf32>
    %212 = arith.divf %210, %211 : vector<8x32xf32>
    %213 = arith.mulf %204, %146 : vector<8x32xf32>
    %214 = arith.mulf %198, %206 : vector<8x32xf32>
    %215 = arith.addf %213, %214 : vector<8x32xf32>
    %216 = math.tanh %215 : vector<8x32xf32>
    %217 = arith.mulf %212, %216 : vector<8x32xf32>
    %218 = arith.index_cast %c2_i32 : i32 to index
    %c0_68 = arith.constant 0 : index
    %c0_69 = arith.constant 0 : index
    %219 = vector.load %arg16[%218, %c0_68, %c0_69] : memref<16x8x32xf32, #tpu.memory_space<vmem>>, vector<1x8x32xf32>
    %220 = vector.shape_cast %219 : vector<1x8x32xf32> to vector<8x32xf32>
    %221 = vector.shape_cast %192 : vector<8x32xf32> to vector<1x8x32xf32>
    tpu.vector_store %arg16[%218, %c0_68, %c0_69], %221 {strides = array<i32>} : memref<16x8x32xf32, #tpu.memory_space<vmem>>, vector<1x8x32xf32>,
    %222 = arith.index_cast %157 : i32 to index
    %c0_70 = arith.constant 0 : index
    %c0_71 = arith.constant 0 : index
    %223 = vector.load %arg17[%222, %c0_70, %c0_71] : memref<16x8x32xf32, #tpu.memory_space<vmem>>, vector<1x8x32xf32>
    %224 = vector.shape_cast %223 : vector<1x8x32xf32> to vector<8x32xf32>
    %225 = vector.shape_cast %217 : vector<8x32xf32> to vector<1x8x32xf32>
    tpu.vector_store %arg17[%222, %c0_70, %c0_71], %225 {strides = array<i32>} : memref<16x8x32xf32, #tpu.memory_space<vmem>>, vector<1x8x32xf32>,
    %c3_i32 = arith.constant 3 : i32
    %c15_i32_72 = arith.constant 15 : i32
    %226 = arith.subi %c15_i32_72, %c3_i32 : i32
    %227 = arith.index_cast %c3_i32 : i32 to index
    %c0_73 = arith.constant 0 : index
    %c0_74 = arith.constant 0 : index
    %228 = vector.load %arg14[%227, %c0_73, %c0_74] : memref<16x8x128xf32, #tpu.memory_space<vmem>>, vector<1x8x128xf32>
    %229 = vector.shape_cast %228 : vector<1x8x128xf32> to vector<8x128xf32>
    %cst_75 = arith.constant dense<0.000000e+00> : vector<8x128xf32>
    %230 = tpu.matmul %192, %16, %cst_75 {dimension_numbers = #tpu.dot_dimension_numbers<[1], [0], [0], [1], [0, 0, 1, 1], [], []>} : vector<8x32xf32>, vector<32x128xf32>, vector<8x128xf32> -> vector<8x128xf32>
    %231 = arith.addf %229, %230 : vector<8x128xf32>
    %232 = arith.index_cast %226 : i32 to index
    %c0_76 = arith.constant 0 : index
    %c0_77 = arith.constant 0 : index
    %233 = vector.load %arg15[%232, %c0_76, %c0_77] : memref<16x8x128xf32, #tpu.memory_space<vmem>>, vector<1x8x128xf32>
    %234 = vector.shape_cast %233 : vector<1x8x128xf32> to vector<8x128xf32>
    %cst_78 = arith.constant dense<0.000000e+00> : vector<8x128xf32>
    %235 = tpu.matmul %217, %17, %cst_78 {dimension_numbers = #tpu.dot_dimension_numbers<[1], [0], [0], [1], [0, 0, 1, 1], [], []>} : vector<8x32xf32>, vector<32x128xf32>, vector<8x128xf32> -> vector<8x128xf32>
    %236 = arith.addf %234, %235 : vector<8x128xf32>
    %237 = vector.extract_strided_slice %231 {offsets = [0, 0], sizes = [8, 32], strides = [1, 1]} : vector<8x128xf32> to vector<8x32xf32>
    %238 = arith.negf %237 : vector<8x32xf32>
    %239 = math.exp %238 : vector<8x32xf32>
    %cst_79 = arith.constant 1.000000e+00 : f32
    %240 = vector.broadcast %cst_79 : f32 to vector<8x32xf32>
    %241 = arith.addf %240, %239 : vector<8x32xf32>
    %242 = arith.divf %240, %241 : vector<8x32xf32>
    %243 = vector.extract_strided_slice %231 {offsets = [0, 32], sizes = [8, 32], strides = [1, 1]} : vector<8x128xf32> to vector<8x32xf32>
    %244 = arith.negf %243 : vector<8x32xf32>
    %245 = math.exp %244 : vector<8x32xf32>
    %cst_80 = arith.constant 1.000000e+00 : f32
    %246 = vector.broadcast %cst_80 : f32 to vector<8x32xf32>
    %247 = arith.addf %246, %245 : vector<8x32xf32>
    %248 = arith.divf %246, %247 : vector<8x32xf32>
    %249 = vector.extract_strided_slice %231 {offsets = [0, 64], sizes = [8, 32], strides = [1, 1]} : vector<8x128xf32> to vector<8x32xf32>
    %250 = math.tanh %249 : vector<8x32xf32>
    %251 = vector.extract_strided_slice %231 {offsets = [0, 96], sizes = [8, 32], strides = [1, 1]} : vector<8x128xf32> to vector<8x32xf32>
    %252 = arith.negf %251 : vector<8x32xf32>
    %253 = math.exp %252 : vector<8x32xf32>
    %cst_81 = arith.constant 1.000000e+00 : f32
    %254 = vector.broadcast %cst_81 : f32 to vector<8x32xf32>
    %255 = arith.addf %254, %253 : vector<8x32xf32>
    %256 = arith.divf %254, %255 : vector<8x32xf32>
    %257 = arith.mulf %248, %190 : vector<8x32xf32>
    %258 = arith.mulf %242, %250 : vector<8x32xf32>
    %259 = arith.addf %257, %258 : vector<8x32xf32>
    %260 = math.tanh %259 : vector<8x32xf32>
    %261 = arith.mulf %256, %260 : vector<8x32xf32>
    %262 = vector.extract_strided_slice %236 {offsets = [0, 0], sizes = [8, 32], strides = [1, 1]} : vector<8x128xf32> to vector<8x32xf32>
    %263 = arith.negf %262 : vector<8x32xf32>
    %264 = math.exp %263 : vector<8x32xf32>
    %cst_82 = arith.constant 1.000000e+00 : f32
    %265 = vector.broadcast %cst_82 : f32 to vector<8x32xf32>
    %266 = arith.addf %265, %264 : vector<8x32xf32>
    %267 = arith.divf %265, %266 : vector<8x32xf32>
    %268 = vector.extract_strided_slice %236 {offsets = [0, 32], sizes = [8, 32], strides = [1, 1]} : vector<8x128xf32> to vector<8x32xf32>
    %269 = arith.negf %268 : vector<8x32xf32>
    %270 = math.exp %269 : vector<8x32xf32>
    %cst_83 = arith.constant 1.000000e+00 : f32
    %271 = vector.broadcast %cst_83 : f32 to vector<8x32xf32>
    %272 = arith.addf %271, %270 : vector<8x32xf32>
    %273 = arith.divf %271, %272 : vector<8x32xf32>
    %274 = vector.extract_strided_slice %236 {offsets = [0, 64], sizes = [8, 32], strides = [1, 1]} : vector<8x128xf32> to vector<8x32xf32>
    %275 = math.tanh %274 : vector<8x32xf32>
    %276 = vector.extract_strided_slice %236 {offsets = [0, 96], sizes = [8, 32], strides = [1, 1]} : vector<8x128xf32> to vector<8x32xf32>
    %277 = arith.negf %276 : vector<8x32xf32>
    %278 = math.exp %277 : vector<8x32xf32>
    %cst_84 = arith.constant 1.000000e+00 : f32
    %279 = vector.broadcast %cst_84 : f32 to vector<8x32xf32>
    %280 = arith.addf %279, %278 : vector<8x32xf32>
    %281 = arith.divf %279, %280 : vector<8x32xf32>
    %282 = arith.mulf %273, %215 : vector<8x32xf32>
    %283 = arith.mulf %267, %275 : vector<8x32xf32>
    %284 = arith.addf %282, %283 : vector<8x32xf32>
    %285 = math.tanh %284 : vector<8x32xf32>
    %286 = arith.mulf %281, %285 : vector<8x32xf32>
    %287 = arith.index_cast %c3_i32 : i32 to index
    %c0_85 = arith.constant 0 : index
    %c0_86 = arith.constant 0 : index
    %288 = vector.load %arg16[%287, %c0_85, %c0_86] : memref<16x8x32xf32, #tpu.memory_space<vmem>>, vector<1x8x32xf32>
    %289 = vector.shape_cast %288 : vector<1x8x32xf32> to vector<8x32xf32>
    %290 = vector.shape_cast %261 : vector<8x32xf32> to vector<1x8x32xf32>
    tpu.vector_store %arg16[%287, %c0_85, %c0_86], %290 {strides = array<i32>} : memref<16x8x32xf32, #tpu.memory_space<vmem>>, vector<1x8x32xf32>,
    %291 = arith.index_cast %226 : i32 to index
    %c0_87 = arith.constant 0 : index
    %c0_88 = arith.constant 0 : index
    %292 = vector.load %arg17[%291, %c0_87, %c0_88] : memref<16x8x32xf32, #tpu.memory_space<vmem>>, vector<1x8x32xf32>
    %293 = vector.shape_cast %292 : vector<1x8x32xf32> to vector<8x32xf32>
    %294 = vector.shape_cast %286 : vector<8x32xf32> to vector<1x8x32xf32>
    tpu.vector_store %arg17[%291, %c0_87, %c0_88], %294 {strides = array<i32>} : memref<16x8x32xf32, #tpu.memory_space<vmem>>, vector<1x8x32xf32>,
    %c4_i32 = arith.constant 4 : i32
    %c15_i32_89 = arith.constant 15 : i32
    %295 = arith.subi %c15_i32_89, %c4_i32 : i32
    %296 = arith.index_cast %c4_i32 : i32 to index
    %c0_90 = arith.constant 0 : index
    %c0_91 = arith.constant 0 : index
    %297 = vector.load %arg14[%296, %c0_90, %c0_91] : memref<16x8x128xf32, #tpu.memory_space<vmem>>, vector<1x8x128xf32>
    %298 = vector.shape_cast %297 : vector<1x8x128xf32> to vector<8x128xf32>
    %cst_92 = arith.constant dense<0.000000e+00> : vector<8x128xf32>
    %299 = tpu.matmul %261, %16, %cst_92 {dimension_numbers = #tpu.dot_dimension_numbers<[1], [0], [0], [1], [0, 0, 1, 1], [], []>} : vector<8x32xf32>, vector<32x128xf32>, vector<8x128xf32> -> vector<8x128xf32>
    %300 = arith.addf %298, %299 : vector<8x128xf32>
    %301 = arith.index_cast %295 : i32 to index
    %c0_93 = arith.constant 0 : index
    %c0_94 = arith.constant 0 : index
    %302 = vector.load %arg15[%301, %c0_93, %c0_94] : memref<16x8x128xf32, #tpu.memory_space<vmem>>, vector<1x8x128xf32>
    %303 = vector.shape_cast %302 : vector<1x8x128xf32> to vector<8x128xf32>
    %cst_95 = arith.constant dense<0.000000e+00> : vector<8x128xf32>
    %304 = tpu.matmul %286, %17, %cst_95 {dimension_numbers = #tpu.dot_dimension_numbers<[1], [0], [0], [1], [0, 0, 1, 1], [], []>} : vector<8x32xf32>, vector<32x128xf32>, vector<8x128xf32> -> vector<8x128xf32>
    %305 = arith.addf %303, %304 : vector<8x128xf32>
    %306 = vector.extract_strided_slice %300 {offsets = [0, 0], sizes = [8, 32], strides = [1, 1]} : vector<8x128xf32> to vector<8x32xf32>
    %307 = arith.negf %306 : vector<8x32xf32>
    %308 = math.exp %307 : vector<8x32xf32>
    %cst_96 = arith.constant 1.000000e+00 : f32
    %309 = vector.broadcast %cst_96 : f32 to vector<8x32xf32>
    %310 = arith.addf %309, %308 : vector<8x32xf32>
    %311 = arith.divf %309, %310 : vector<8x32xf32>
    %312 = vector.extract_strided_slice %300 {offsets = [0, 32], sizes = [8, 32], strides = [1, 1]} : vector<8x128xf32> to vector<8x32xf32>
    %313 = arith.negf %312 : vector<8x32xf32>
    %314 = math.exp %313 : vector<8x32xf32>
    %cst_97 = arith.constant 1.000000e+00 : f32
    %315 = vector.broadcast %cst_97 : f32 to vector<8x32xf32>
    %316 = arith.addf %315, %314 : vector<8x32xf32>
    %317 = arith.divf %315, %316 : vector<8x32xf32>
    %318 = vector.extract_strided_slice %300 {offsets = [0, 64], sizes = [8, 32], strides = [1, 1]} : vector<8x128xf32> to vector<8x32xf32>
    %319 = math.tanh %318 : vector<8x32xf32>
    %320 = vector.extract_strided_slice %300 {offsets = [0, 96], sizes = [8, 32], strides = [1, 1]} : vector<8x128xf32> to vector<8x32xf32>
    %321 = arith.negf %320 : vector<8x32xf32>
    %322 = math.exp %321 : vector<8x32xf32>
    %cst_98 = arith.constant 1.000000e+00 : f32
    %323 = vector.broadcast %cst_98 : f32 to vector<8x32xf32>
    %324 = arith.addf %323, %322 : vector<8x32xf32>
    %325 = arith.divf %323, %324 : vector<8x32xf32>
    %326 = arith.mulf %317, %259 : vector<8x32xf32>
    %327 = arith.mulf %311, %319 : vector<8x32xf32>
    %328 = arith.addf %326, %327 : vector<8x32xf32>
    %329 = math.tanh %328 : vector<8x32xf32>
    %330 = arith.mulf %325, %329 : vector<8x32xf32>
    %331 = vector.extract_strided_slice %305 {offsets = [0, 0], sizes = [8, 32], strides = [1, 1]} : vector<8x128xf32> to vector<8x32xf32>
    %332 = arith.negf %331 : vector<8x32xf32>
    %333 = math.exp %332 : vector<8x32xf32>
    %cst_99 = arith.constant 1.000000e+00 : f32
    %334 = vector.broadcast %cst_99 : f32 to vector<8x32xf32>
    %335 = arith.addf %334, %333 : vector<8x32xf32>
    %336 = arith.divf %334, %335 : vector<8x32xf32>
    %337 = vector.extract_strided_slice %305 {offsets = [0, 32], sizes = [8, 32], strides = [1, 1]} : vector<8x128xf32> to vector<8x32xf32>
    %338 = arith.negf %337 : vector<8x32xf32>
    %339 = math.exp %338 : vector<8x32xf32>
    %cst_100 = arith.constant 1.000000e+00 : f32
    %340 = vector.broadcast %cst_100 : f32 to vector<8x32xf32>
    %341 = arith.addf %340, %339 : vector<8x32xf32>
    %342 = arith.divf %340, %341 : vector<8x32xf32>
    %343 = vector.extract_strided_slice %305 {offsets = [0, 64], sizes = [8, 32], strides = [1, 1]} : vector<8x128xf32> to vector<8x32xf32>
    %344 = math.tanh %343 : vector<8x32xf32>
    %345 = vector.extract_strided_slice %305 {offsets = [0, 96], sizes = [8, 32], strides = [1, 1]} : vector<8x128xf32> to vector<8x32xf32>
    %346 = arith.negf %345 : vector<8x32xf32>
    %347 = math.exp %346 : vector<8x32xf32>
    %cst_101 = arith.constant 1.000000e+00 : f32
    %348 = vector.broadcast %cst_101 : f32 to vector<8x32xf32>
    %349 = arith.addf %348, %347 : vector<8x32xf32>
    %350 = arith.divf %348, %349 : vector<8x32xf32>
    %351 = arith.mulf %342, %284 : vector<8x32xf32>
    %352 = arith.mulf %336, %344 : vector<8x32xf32>
    %353 = arith.addf %351, %352 : vector<8x32xf32>
    %354 = math.tanh %353 : vector<8x32xf32>
    %355 = arith.mulf %350, %354 : vector<8x32xf32>
    %356 = arith.index_cast %c4_i32 : i32 to index
    %c0_102 = arith.constant 0 : index
    %c0_103 = arith.constant 0 : index
    %357 = vector.load %arg16[%356, %c0_102, %c0_103] : memref<16x8x32xf32, #tpu.memory_space<vmem>>, vector<1x8x32xf32>
    %358 = vector.shape_cast %357 : vector<1x8x32xf32> to vector<8x32xf32>
    %359 = vector.shape_cast %330 : vector<8x32xf32> to vector<1x8x32xf32>
    tpu.vector_store %arg16[%356, %c0_102, %c0_103], %359 {strides = array<i32>} : memref<16x8x32xf32, #tpu.memory_space<vmem>>, vector<1x8x32xf32>,
    %360 = arith.index_cast %295 : i32 to index
    %c0_104 = arith.constant 0 : index
    %c0_105 = arith.constant 0 : index
    %361 = vector.load %arg17[%360, %c0_104, %c0_105] : memref<16x8x32xf32, #tpu.memory_space<vmem>>, vector<1x8x32xf32>
    %362 = vector.shape_cast %361 : vector<1x8x32xf32> to vector<8x32xf32>
    %363 = vector.shape_cast %355 : vector<8x32xf32> to vector<1x8x32xf32>
    tpu.vector_store %arg17[%360, %c0_104, %c0_105], %363 {strides = array<i32>} : memref<16x8x32xf32, #tpu.memory_space<vmem>>, vector<1x8x32xf32>,
    %c5_i32 = arith.constant 5 : i32
    %c15_i32_106 = arith.constant 15 : i32
    %364 = arith.subi %c15_i32_106, %c5_i32 : i32
    %365 = arith.index_cast %c5_i32 : i32 to index
    %c0_107 = arith.constant 0 : index
    %c0_108 = arith.constant 0 : index
    %366 = vector.load %arg14[%365, %c0_107, %c0_108] : memref<16x8x128xf32, #tpu.memory_space<vmem>>, vector<1x8x128xf32>
    %367 = vector.shape_cast %366 : vector<1x8x128xf32> to vector<8x128xf32>
    %cst_109 = arith.constant dense<0.000000e+00> : vector<8x128xf32>
    %368 = tpu.matmul %330, %16, %cst_109 {dimension_numbers = #tpu.dot_dimension_numbers<[1], [0], [0], [1], [0, 0, 1, 1], [], []>} : vector<8x32xf32>, vector<32x128xf32>, vector<8x128xf32> -> vector<8x128xf32>
    %369 = arith.addf %367, %368 : vector<8x128xf32>
    %370 = arith.index_cast %364 : i32 to index
    %c0_110 = arith.constant 0 : index
    %c0_111 = arith.constant 0 : index
    %371 = vector.load %arg15[%370, %c0_110, %c0_111] : memref<16x8x128xf32, #tpu.memory_space<vmem>>, vector<1x8x128xf32>
    %372 = vector.shape_cast %371 : vector<1x8x128xf32> to vector<8x128xf32>
    %cst_112 = arith.constant dense<0.000000e+00> : vector<8x128xf32>
    %373 = tpu.matmul %355, %17, %cst_112 {dimension_numbers = #tpu.dot_dimension_numbers<[1], [0], [0], [1], [0, 0, 1, 1], [], []>} : vector<8x32xf32>, vector<32x128xf32>, vector<8x128xf32> -> vector<8x128xf32>
    %374 = arith.addf %372, %373 : vector<8x128xf32>
    %375 = vector.extract_strided_slice %369 {offsets = [0, 0], sizes = [8, 32], strides = [1, 1]} : vector<8x128xf32> to vector<8x32xf32>
    %376 = arith.negf %375 : vector<8x32xf32>
    %377 = math.exp %376 : vector<8x32xf32>
    %cst_113 = arith.constant 1.000000e+00 : f32
    %378 = vector.broadcast %cst_113 : f32 to vector<8x32xf32>
    %379 = arith.addf %378, %377 : vector<8x32xf32>
    %380 = arith.divf %378, %379 : vector<8x32xf32>
    %381 = vector.extract_strided_slice %369 {offsets = [0, 32], sizes = [8, 32], strides = [1, 1]} : vector<8x128xf32> to vector<8x32xf32>
    %382 = arith.negf %381 : vector<8x32xf32>
    %383 = math.exp %382 : vector<8x32xf32>
    %cst_114 = arith.constant 1.000000e+00 : f32
    %384 = vector.broadcast %cst_114 : f32 to vector<8x32xf32>
    %385 = arith.addf %384, %383 : vector<8x32xf32>
    %386 = arith.divf %384, %385 : vector<8x32xf32>
    %387 = vector.extract_strided_slice %369 {offsets = [0, 64], sizes = [8, 32], strides = [1, 1]} : vector<8x128xf32> to vector<8x32xf32>
    %388 = math.tanh %387 : vector<8x32xf32>
    %389 = vector.extract_strided_slice %369 {offsets = [0, 96], sizes = [8, 32], strides = [1, 1]} : vector<8x128xf32> to vector<8x32xf32>
    %390 = arith.negf %389 : vector<8x32xf32>
    %391 = math.exp %390 : vector<8x32xf32>
    %cst_115 = arith.constant 1.000000e+00 : f32
    %392 = vector.broadcast %cst_115 : f32 to vector<8x32xf32>
    %393 = arith.addf %392, %391 : vector<8x32xf32>
    %394 = arith.divf %392, %393 : vector<8x32xf32>
    %395 = arith.mulf %386, %328 : vector<8x32xf32>
    %396 = arith.mulf %380, %388 : vector<8x32xf32>
    %397 = arith.addf %395, %396 : vector<8x32xf32>
    %398 = math.tanh %397 : vector<8x32xf32>
    %399 = arith.mulf %394, %398 : vector<8x32xf32>
    %400 = vector.extract_strided_slice %374 {offsets = [0, 0], sizes = [8, 32], strides = [1, 1]} : vector<8x128xf32> to vector<8x32xf32>
    %401 = arith.negf %400 : vector<8x32xf32>
    %402 = math.exp %401 : vector<8x32xf32>
    %cst_116 = arith.constant 1.000000e+00 : f32
    %403 = vector.broadcast %cst_116 : f32 to vector<8x32xf32>
    %404 = arith.addf %403, %402 : vector<8x32xf32>
    %405 = arith.divf %403, %404 : vector<8x32xf32>
    %406 = vector.extract_strided_slice %374 {offsets = [0, 32], sizes = [8, 32], strides = [1, 1]} : vector<8x128xf32> to vector<8x32xf32>
    %407 = arith.negf %406 : vector<8x32xf32>
    %408 = math.exp %407 : vector<8x32xf32>
    %cst_117 = arith.constant 1.000000e+00 : f32
    %409 = vector.broadcast %cst_117 : f32 to vector<8x32xf32>
    %410 = arith.addf %409, %408 : vector<8x32xf32>
    %411 = arith.divf %409, %410 : vector<8x32xf32>
    %412 = vector.extract_strided_slice %374 {offsets = [0, 64], sizes = [8, 32], strides = [1, 1]} : vector<8x128xf32> to vector<8x32xf32>
    %413 = math.tanh %412 : vector<8x32xf32>
    %414 = vector.extract_strided_slice %374 {offsets = [0, 96], sizes = [8, 32], strides = [1, 1]} : vector<8x128xf32> to vector<8x32xf32>
    %415 = arith.negf %414 : vector<8x32xf32>
    %416 = math.exp %415 : vector<8x32xf32>
    %cst_118 = arith.constant 1.000000e+00 : f32
    %417 = vector.broadcast %cst_118 : f32 to vector<8x32xf32>
    %418 = arith.addf %417, %416 : vector<8x32xf32>
    %419 = arith.divf %417, %418 : vector<8x32xf32>
    %420 = arith.mulf %411, %353 : vector<8x32xf32>
    %421 = arith.mulf %405, %413 : vector<8x32xf32>
    %422 = arith.addf %420, %421 : vector<8x32xf32>
    %423 = math.tanh %422 : vector<8x32xf32>
    %424 = arith.mulf %419, %423 : vector<8x32xf32>
    %425 = arith.index_cast %c5_i32 : i32 to index
    %c0_119 = arith.constant 0 : index
    %c0_120 = arith.constant 0 : index
    %426 = vector.load %arg16[%425, %c0_119, %c0_120] : memref<16x8x32xf32, #tpu.memory_space<vmem>>, vector<1x8x32xf32>
    %427 = vector.shape_cast %426 : vector<1x8x32xf32> to vector<8x32xf32>
    %428 = vector.shape_cast %399 : vector<8x32xf32> to vector<1x8x32xf32>
    tpu.vector_store %arg16[%425, %c0_119, %c0_120], %428 {strides = array<i32>} : memref<16x8x32xf32, #tpu.memory_space<vmem>>, vector<1x8x32xf32>,
    %429 = arith.index_cast %364 : i32 to index
    %c0_121 = arith.constant 0 : index
    %c0_122 = arith.constant 0 : index
    %430 = vector.load %arg17[%429, %c0_121, %c0_122] : memref<16x8x32xf32, #tpu.memory_space<vmem>>, vector<1x8x32xf32>
    %431 = vector.shape_cast %430 : vector<1x8x32xf32> to vector<8x32xf32>
    %432 = vector.shape_cast %424 : vector<8x32xf32> to vector<1x8x32xf32>
    tpu.vector_store %arg17[%429, %c0_121, %c0_122], %432 {strides = array<i32>} : memref<16x8x32xf32, #tpu.memory_space<vmem>>, vector<1x8x32xf32>,
    %c6_i32 = arith.constant 6 : i32
    %c15_i32_123 = arith.constant 15 : i32
    %433 = arith.subi %c15_i32_123, %c6_i32 : i32
    %434 = arith.index_cast %c6_i32 : i32 to index
    %c0_124 = arith.constant 0 : index
    %c0_125 = arith.constant 0 : index
    %435 = vector.load %arg14[%434, %c0_124, %c0_125] : memref<16x8x128xf32, #tpu.memory_space<vmem>>, vector<1x8x128xf32>
    %436 = vector.shape_cast %435 : vector<1x8x128xf32> to vector<8x128xf32>
    %cst_126 = arith.constant dense<0.000000e+00> : vector<8x128xf32>
    %437 = tpu.matmul %399, %16, %cst_126 {dimension_numbers = #tpu.dot_dimension_numbers<[1], [0], [0], [1], [0, 0, 1, 1], [], []>} : vector<8x32xf32>, vector<32x128xf32>, vector<8x128xf32> -> vector<8x128xf32>
    %438 = arith.addf %436, %437 : vector<8x128xf32>
    %439 = arith.index_cast %433 : i32 to index
    %c0_127 = arith.constant 0 : index
    %c0_128 = arith.constant 0 : index
    %440 = vector.load %arg15[%439, %c0_127, %c0_128] : memref<16x8x128xf32, #tpu.memory_space<vmem>>, vector<1x8x128xf32>
    %441 = vector.shape_cast %440 : vector<1x8x128xf32> to vector<8x128xf32>
    %cst_129 = arith.constant dense<0.000000e+00> : vector<8x128xf32>
    %442 = tpu.matmul %424, %17, %cst_129 {dimension_numbers = #tpu.dot_dimension_numbers<[1], [0], [0], [1], [0, 0, 1, 1], [], []>} : vector<8x32xf32>, vector<32x128xf32>, vector<8x128xf32> -> vector<8x128xf32>
    %443 = arith.addf %441, %442 : vector<8x128xf32>
    %444 = vector.extract_strided_slice %438 {offsets = [0, 0], sizes = [8, 32], strides = [1, 1]} : vector<8x128xf32> to vector<8x32xf32>
    %445 = arith.negf %444 : vector<8x32xf32>
    %446 = math.exp %445 : vector<8x32xf32>
    %cst_130 = arith.constant 1.000000e+00 : f32
    %447 = vector.broadcast %cst_130 : f32 to vector<8x32xf32>
    %448 = arith.addf %447, %446 : vector<8x32xf32>
    %449 = arith.divf %447, %448 : vector<8x32xf32>
    %450 = vector.extract_strided_slice %438 {offsets = [0, 32], sizes = [8, 32], strides = [1, 1]} : vector<8x128xf32> to vector<8x32xf32>
    %451 = arith.negf %450 : vector<8x32xf32>
    %452 = math.exp %451 : vector<8x32xf32>
    %cst_131 = arith.constant 1.000000e+00 : f32
    %453 = vector.broadcast %cst_131 : f32 to vector<8x32xf32>
    %454 = arith.addf %453, %452 : vector<8x32xf32>
    %455 = arith.divf %453, %454 : vector<8x32xf32>
    %456 = vector.extract_strided_slice %438 {offsets = [0, 64], sizes = [8, 32], strides = [1, 1]} : vector<8x128xf32> to vector<8x32xf32>
    %457 = math.tanh %456 : vector<8x32xf32>
    %458 = vector.extract_strided_slice %438 {offsets = [0, 96], sizes = [8, 32], strides = [1, 1]} : vector<8x128xf32> to vector<8x32xf32>
    %459 = arith.negf %458 : vector<8x32xf32>
    %460 = math.exp %459 : vector<8x32xf32>
    %cst_132 = arith.constant 1.000000e+00 : f32
    %461 = vector.broadcast %cst_132 : f32 to vector<8x32xf32>
    %462 = arith.addf %461, %460 : vector<8x32xf32>
    %463 = arith.divf %461, %462 : vector<8x32xf32>
    %464 = arith.mulf %455, %397 : vector<8x32xf32>
    %465 = arith.mulf %449, %457 : vector<8x32xf32>
    %466 = arith.addf %464, %465 : vector<8x32xf32>
    %467 = math.tanh %466 : vector<8x32xf32>
    %468 = arith.mulf %463, %467 : vector<8x32xf32>
    %469 = vector.extract_strided_slice %443 {offsets = [0, 0], sizes = [8, 32], strides = [1, 1]} : vector<8x128xf32> to vector<8x32xf32>
    %470 = arith.negf %469 : vector<8x32xf32>
    %471 = math.exp %470 : vector<8x32xf32>
    %cst_133 = arith.constant 1.000000e+00 : f32
    %472 = vector.broadcast %cst_133 : f32 to vector<8x32xf32>
    %473 = arith.addf %472, %471 : vector<8x32xf32>
    %474 = arith.divf %472, %473 : vector<8x32xf32>
    %475 = vector.extract_strided_slice %443 {offsets = [0, 32], sizes = [8, 32], strides = [1, 1]} : vector<8x128xf32> to vector<8x32xf32>
    %476 = arith.negf %475 : vector<8x32xf32>
    %477 = math.exp %476 : vector<8x32xf32>
    %cst_134 = arith.constant 1.000000e+00 : f32
    %478 = vector.broadcast %cst_134 : f32 to vector<8x32xf32>
    %479 = arith.addf %478, %477 : vector<8x32xf32>
    %480 = arith.divf %478, %479 : vector<8x32xf32>
    %481 = vector.extract_strided_slice %443 {offsets = [0, 64], sizes = [8, 32], strides = [1, 1]} : vector<8x128xf32> to vector<8x32xf32>
    %482 = math.tanh %481 : vector<8x32xf32>
    %483 = vector.extract_strided_slice %443 {offsets = [0, 96], sizes = [8, 32], strides = [1, 1]} : vector<8x128xf32> to vector<8x32xf32>
    %484 = arith.negf %483 : vector<8x32xf32>
    %485 = math.exp %484 : vector<8x32xf32>
    %cst_135 = arith.constant 1.000000e+00 : f32
    %486 = vector.broadcast %cst_135 : f32 to vector<8x32xf32>
    %487 = arith.addf %486, %485 : vector<8x32xf32>
    %488 = arith.divf %486, %487 : vector<8x32xf32>
    %489 = arith.mulf %480, %422 : vector<8x32xf32>
    %490 = arith.mulf %474, %482 : vector<8x32xf32>
    %491 = arith.addf %489, %490 : vector<8x32xf32>
    %492 = math.tanh %491 : vector<8x32xf32>
    %493 = arith.mulf %488, %492 : vector<8x32xf32>
    %494 = arith.index_cast %c6_i32 : i32 to index
    %c0_136 = arith.constant 0 : index
    %c0_137 = arith.constant 0 : index
    %495 = vector.load %arg16[%494, %c0_136, %c0_137] : memref<16x8x32xf32, #tpu.memory_space<vmem>>, vector<1x8x32xf32>
    %496 = vector.shape_cast %495 : vector<1x8x32xf32> to vector<8x32xf32>
    %497 = vector.shape_cast %468 : vector<8x32xf32> to vector<1x8x32xf32>
    tpu.vector_store %arg16[%494, %c0_136, %c0_137], %497 {strides = array<i32>} : memref<16x8x32xf32, #tpu.memory_space<vmem>>, vector<1x8x32xf32>,
    %498 = arith.index_cast %433 : i32 to index
    %c0_138 = arith.constant 0 : index
    %c0_139 = arith.constant 0 : index
    %499 = vector.load %arg17[%498, %c0_138, %c0_139] : memref<16x8x32xf32, #tpu.memory_space<vmem>>, vector<1x8x32xf32>
    %500 = vector.shape_cast %499 : vector<1x8x32xf32> to vector<8x32xf32>
    %501 = vector.shape_cast %493 : vector<8x32xf32> to vector<1x8x32xf32>
    tpu.vector_store %arg17[%498, %c0_138, %c0_139], %501 {strides = array<i32>} : memref<16x8x32xf32, #tpu.memory_space<vmem>>, vector<1x8x32xf32>,
    %c7_i32 = arith.constant 7 : i32
    %c15_i32_140 = arith.constant 15 : i32
    %502 = arith.subi %c15_i32_140, %c7_i32 : i32
    %503 = arith.index_cast %c7_i32 : i32 to index
    %c0_141 = arith.constant 0 : index
    %c0_142 = arith.constant 0 : index
    %504 = vector.load %arg14[%503, %c0_141, %c0_142] : memref<16x8x128xf32, #tpu.memory_space<vmem>>, vector<1x8x128xf32>
    %505 = vector.shape_cast %504 : vector<1x8x128xf32> to vector<8x128xf32>
    %cst_143 = arith.constant dense<0.000000e+00> : vector<8x128xf32>
    %506 = tpu.matmul %468, %16, %cst_143 {dimension_numbers = #tpu.dot_dimension_numbers<[1], [0], [0], [1], [0, 0, 1, 1], [], []>} : vector<8x32xf32>, vector<32x128xf32>, vector<8x128xf32> -> vector<8x128xf32>
    %507 = arith.addf %505, %506 : vector<8x128xf32>
    %508 = arith.index_cast %502 : i32 to index
    %c0_144 = arith.constant 0 : index
    %c0_145 = arith.constant 0 : index
    %509 = vector.load %arg15[%508, %c0_144, %c0_145] : memref<16x8x128xf32, #tpu.memory_space<vmem>>, vector<1x8x128xf32>
    %510 = vector.shape_cast %509 : vector<1x8x128xf32> to vector<8x128xf32>
    %cst_146 = arith.constant dense<0.000000e+00> : vector<8x128xf32>
    %511 = tpu.matmul %493, %17, %cst_146 {dimension_numbers = #tpu.dot_dimension_numbers<[1], [0], [0], [1], [0, 0, 1, 1], [], []>} : vector<8x32xf32>, vector<32x128xf32>, vector<8x128xf32> -> vector<8x128xf32>
    %512 = arith.addf %510, %511 : vector<8x128xf32>
    %513 = vector.extract_strided_slice %507 {offsets = [0, 0], sizes = [8, 32], strides = [1, 1]} : vector<8x128xf32> to vector<8x32xf32>
    %514 = arith.negf %513 : vector<8x32xf32>
    %515 = math.exp %514 : vector<8x32xf32>
    %cst_147 = arith.constant 1.000000e+00 : f32
    %516 = vector.broadcast %cst_147 : f32 to vector<8x32xf32>
    %517 = arith.addf %516, %515 : vector<8x32xf32>
    %518 = arith.divf %516, %517 : vector<8x32xf32>
    %519 = vector.extract_strided_slice %507 {offsets = [0, 32], sizes = [8, 32], strides = [1, 1]} : vector<8x128xf32> to vector<8x32xf32>
    %520 = arith.negf %519 : vector<8x32xf32>
    %521 = math.exp %520 : vector<8x32xf32>
    %cst_148 = arith.constant 1.000000e+00 : f32
    %522 = vector.broadcast %cst_148 : f32 to vector<8x32xf32>
    %523 = arith.addf %522, %521 : vector<8x32xf32>
    %524 = arith.divf %522, %523 : vector<8x32xf32>
    %525 = vector.extract_strided_slice %507 {offsets = [0, 64], sizes = [8, 32], strides = [1, 1]} : vector<8x128xf32> to vector<8x32xf32>
    %526 = math.tanh %525 : vector<8x32xf32>
    %527 = vector.extract_strided_slice %507 {offsets = [0, 96], sizes = [8, 32], strides = [1, 1]} : vector<8x128xf32> to vector<8x32xf32>
    %528 = arith.negf %527 : vector<8x32xf32>
    %529 = math.exp %528 : vector<8x32xf32>
    %cst_149 = arith.constant 1.000000e+00 : f32
    %530 = vector.broadcast %cst_149 : f32 to vector<8x32xf32>
    %531 = arith.addf %530, %529 : vector<8x32xf32>
    %532 = arith.divf %530, %531 : vector<8x32xf32>
    %533 = arith.mulf %524, %466 : vector<8x32xf32>
    %534 = arith.mulf %518, %526 : vector<8x32xf32>
    %535 = arith.addf %533, %534 : vector<8x32xf32>
    %536 = math.tanh %535 : vector<8x32xf32>
    %537 = arith.mulf %532, %536 : vector<8x32xf32>
    %538 = vector.extract_strided_slice %512 {offsets = [0, 0], sizes = [8, 32], strides = [1, 1]} : vector<8x128xf32> to vector<8x32xf32>
    %539 = arith.negf %538 : vector<8x32xf32>
    %540 = math.exp %539 : vector<8x32xf32>
    %cst_150 = arith.constant 1.000000e+00 : f32
    %541 = vector.broadcast %cst_150 : f32 to vector<8x32xf32>
    %542 = arith.addf %541, %540 : vector<8x32xf32>
    %543 = arith.divf %541, %542 : vector<8x32xf32>
    %544 = vector.extract_strided_slice %512 {offsets = [0, 32], sizes = [8, 32], strides = [1, 1]} : vector<8x128xf32> to vector<8x32xf32>
    %545 = arith.negf %544 : vector<8x32xf32>
    %546 = math.exp %545 : vector<8x32xf32>
    %cst_151 = arith.constant 1.000000e+00 : f32
    %547 = vector.broadcast %cst_151 : f32 to vector<8x32xf32>
    %548 = arith.addf %547, %546 : vector<8x32xf32>
    %549 = arith.divf %547, %548 : vector<8x32xf32>
    %550 = vector.extract_strided_slice %512 {offsets = [0, 64], sizes = [8, 32], strides = [1, 1]} : vector<8x128xf32> to vector<8x32xf32>
    %551 = math.tanh %550 : vector<8x32xf32>
    %552 = vector.extract_strided_slice %512 {offsets = [0, 96], sizes = [8, 32], strides = [1, 1]} : vector<8x128xf32> to vector<8x32xf32>
    %553 = arith.negf %552 : vector<8x32xf32>
    %554 = math.exp %553 : vector<8x32xf32>
    %cst_152 = arith.constant 1.000000e+00 : f32
    %555 = vector.broadcast %cst_152 : f32 to vector<8x32xf32>
    %556 = arith.addf %555, %554 : vector<8x32xf32>
    %557 = arith.divf %555, %556 : vector<8x32xf32>
    %558 = arith.mulf %549, %491 : vector<8x32xf32>
    %559 = arith.mulf %543, %551 : vector<8x32xf32>
    %560 = arith.addf %558, %559 : vector<8x32xf32>
    %561 = math.tanh %560 : vector<8x32xf32>
    %562 = arith.mulf %557, %561 : vector<8x32xf32>
    %563 = arith.index_cast %c7_i32 : i32 to index
    %c0_153 = arith.constant 0 : index
    %c0_154 = arith.constant 0 : index
    %564 = vector.load %arg16[%563, %c0_153, %c0_154] : memref<16x8x32xf32, #tpu.memory_space<vmem>>, vector<1x8x32xf32>
    %565 = vector.shape_cast %564 : vector<1x8x32xf32> to vector<8x32xf32>
    %566 = vector.shape_cast %537 : vector<8x32xf32> to vector<1x8x32xf32>
    tpu.vector_store %arg16[%563, %c0_153, %c0_154], %566 {strides = array<i32>} : memref<16x8x32xf32, #tpu.memory_space<vmem>>, vector<1x8x32xf32>,
    %567 = arith.index_cast %502 : i32 to index
    %c0_155 = arith.constant 0 : index
    %c0_156 = arith.constant 0 : index
    %568 = vector.load %arg17[%567, %c0_155, %c0_156] : memref<16x8x32xf32, #tpu.memory_space<vmem>>, vector<1x8x32xf32>
    %569 = vector.shape_cast %568 : vector<1x8x32xf32> to vector<8x32xf32>
    %570 = vector.shape_cast %562 : vector<8x32xf32> to vector<1x8x32xf32>
    tpu.vector_store %arg17[%567, %c0_155, %c0_156], %570 {strides = array<i32>} : memref<16x8x32xf32, #tpu.memory_space<vmem>>, vector<1x8x32xf32>,
    %c8_i32 = arith.constant 8 : i32
    %c15_i32_157 = arith.constant 15 : i32
    %571 = arith.subi %c15_i32_157, %c8_i32 : i32
    %572 = arith.index_cast %c8_i32 : i32 to index
    %c0_158 = arith.constant 0 : index
    %c0_159 = arith.constant 0 : index
    %573 = vector.load %arg14[%572, %c0_158, %c0_159] : memref<16x8x128xf32, #tpu.memory_space<vmem>>, vector<1x8x128xf32>
    %574 = vector.shape_cast %573 : vector<1x8x128xf32> to vector<8x128xf32>
    %cst_160 = arith.constant dense<0.000000e+00> : vector<8x128xf32>
    %575 = tpu.matmul %537, %16, %cst_160 {dimension_numbers = #tpu.dot_dimension_numbers<[1], [0], [0], [1], [0, 0, 1, 1], [], []>} : vector<8x32xf32>, vector<32x128xf32>, vector<8x128xf32> -> vector<8x128xf32>
    %576 = arith.addf %574, %575 : vector<8x128xf32>
    %577 = arith.index_cast %571 : i32 to index
    %c0_161 = arith.constant 0 : index
    %c0_162 = arith.constant 0 : index
    %578 = vector.load %arg15[%577, %c0_161, %c0_162] : memref<16x8x128xf32, #tpu.memory_space<vmem>>, vector<1x8x128xf32>
    %579 = vector.shape_cast %578 : vector<1x8x128xf32> to vector<8x128xf32>
    %cst_163 = arith.constant dense<0.000000e+00> : vector<8x128xf32>
    %580 = tpu.matmul %562, %17, %cst_163 {dimension_numbers = #tpu.dot_dimension_numbers<[1], [0], [0], [1], [0, 0, 1, 1], [], []>} : vector<8x32xf32>, vector<32x128xf32>, vector<8x128xf32> -> vector<8x128xf32>
    %581 = arith.addf %579, %580 : vector<8x128xf32>
    %582 = vector.extract_strided_slice %576 {offsets = [0, 0], sizes = [8, 32], strides = [1, 1]} : vector<8x128xf32> to vector<8x32xf32>
    %583 = arith.negf %582 : vector<8x32xf32>
    %584 = math.exp %583 : vector<8x32xf32>
    %cst_164 = arith.constant 1.000000e+00 : f32
    %585 = vector.broadcast %cst_164 : f32 to vector<8x32xf32>
    %586 = arith.addf %585, %584 : vector<8x32xf32>
    %587 = arith.divf %585, %586 : vector<8x32xf32>
    %588 = vector.extract_strided_slice %576 {offsets = [0, 32], sizes = [8, 32], strides = [1, 1]} : vector<8x128xf32> to vector<8x32xf32>
    %589 = arith.negf %588 : vector<8x32xf32>
    %590 = math.exp %589 : vector<8x32xf32>
    %cst_165 = arith.constant 1.000000e+00 : f32
    %591 = vector.broadcast %cst_165 : f32 to vector<8x32xf32>
    %592 = arith.addf %591, %590 : vector<8x32xf32>
    %593 = arith.divf %591, %592 : vector<8x32xf32>
    %594 = vector.extract_strided_slice %576 {offsets = [0, 64], sizes = [8, 32], strides = [1, 1]} : vector<8x128xf32> to vector<8x32xf32>
    %595 = math.tanh %594 : vector<8x32xf32>
    %596 = vector.extract_strided_slice %576 {offsets = [0, 96], sizes = [8, 32], strides = [1, 1]} : vector<8x128xf32> to vector<8x32xf32>
    %597 = arith.negf %596 : vector<8x32xf32>
    %598 = math.exp %597 : vector<8x32xf32>
    %cst_166 = arith.constant 1.000000e+00 : f32
    %599 = vector.broadcast %cst_166 : f32 to vector<8x32xf32>
    %600 = arith.addf %599, %598 : vector<8x32xf32>
    %601 = arith.divf %599, %600 : vector<8x32xf32>
    %602 = arith.mulf %593, %535 : vector<8x32xf32>
    %603 = arith.mulf %587, %595 : vector<8x32xf32>
    %604 = arith.addf %602, %603 : vector<8x32xf32>
    %605 = math.tanh %604 : vector<8x32xf32>
    %606 = arith.mulf %601, %605 : vector<8x32xf32>
    %607 = vector.extract_strided_slice %581 {offsets = [0, 0], sizes = [8, 32], strides = [1, 1]} : vector<8x128xf32> to vector<8x32xf32>
    %608 = arith.negf %607 : vector<8x32xf32>
    %609 = math.exp %608 : vector<8x32xf32>
    %cst_167 = arith.constant 1.000000e+00 : f32
    %610 = vector.broadcast %cst_167 : f32 to vector<8x32xf32>
    %611 = arith.addf %610, %609 : vector<8x32xf32>
    %612 = arith.divf %610, %611 : vector<8x32xf32>
    %613 = vector.extract_strided_slice %581 {offsets = [0, 32], sizes = [8, 32], strides = [1, 1]} : vector<8x128xf32> to vector<8x32xf32>
    %614 = arith.negf %613 : vector<8x32xf32>
    %615 = math.exp %614 : vector<8x32xf32>
    %cst_168 = arith.constant 1.000000e+00 : f32
    %616 = vector.broadcast %cst_168 : f32 to vector<8x32xf32>
    %617 = arith.addf %616, %615 : vector<8x32xf32>
    %618 = arith.divf %616, %617 : vector<8x32xf32>
    %619 = vector.extract_strided_slice %581 {offsets = [0, 64], sizes = [8, 32], strides = [1, 1]} : vector<8x128xf32> to vector<8x32xf32>
    %620 = math.tanh %619 : vector<8x32xf32>
    %621 = vector.extract_strided_slice %581 {offsets = [0, 96], sizes = [8, 32], strides = [1, 1]} : vector<8x128xf32> to vector<8x32xf32>
    %622 = arith.negf %621 : vector<8x32xf32>
    %623 = math.exp %622 : vector<8x32xf32>
    %cst_169 = arith.constant 1.000000e+00 : f32
    %624 = vector.broadcast %cst_169 : f32 to vector<8x32xf32>
    %625 = arith.addf %624, %623 : vector<8x32xf32>
    %626 = arith.divf %624, %625 : vector<8x32xf32>
    %627 = arith.mulf %618, %560 : vector<8x32xf32>
    %628 = arith.mulf %612, %620 : vector<8x32xf32>
    %629 = arith.addf %627, %628 : vector<8x32xf32>
    %630 = math.tanh %629 : vector<8x32xf32>
    %631 = arith.mulf %626, %630 : vector<8x32xf32>
    %632 = arith.index_cast %c8_i32 : i32 to index
    %c0_170 = arith.constant 0 : index
    %c0_171 = arith.constant 0 : index
    %633 = vector.load %arg16[%632, %c0_170, %c0_171] : memref<16x8x32xf32, #tpu.memory_space<vmem>>, vector<1x8x32xf32>
    %634 = vector.shape_cast %633 : vector<1x8x32xf32> to vector<8x32xf32>
    %635 = vector.shape_cast %606 : vector<8x32xf32> to vector<1x8x32xf32>
    tpu.vector_store %arg16[%632, %c0_170, %c0_171], %635 {strides = array<i32>} : memref<16x8x32xf32, #tpu.memory_space<vmem>>, vector<1x8x32xf32>,
    %636 = arith.index_cast %571 : i32 to index
    %c0_172 = arith.constant 0 : index
    %c0_173 = arith.constant 0 : index
    %637 = vector.load %arg17[%636, %c0_172, %c0_173] : memref<16x8x32xf32, #tpu.memory_space<vmem>>, vector<1x8x32xf32>
    %638 = vector.shape_cast %637 : vector<1x8x32xf32> to vector<8x32xf32>
    %639 = vector.shape_cast %631 : vector<8x32xf32> to vector<1x8x32xf32>
    tpu.vector_store %arg17[%636, %c0_172, %c0_173], %639 {strides = array<i32>} : memref<16x8x32xf32, #tpu.memory_space<vmem>>, vector<1x8x32xf32>,
    %c9_i32 = arith.constant 9 : i32
    %c15_i32_174 = arith.constant 15 : i32
    %640 = arith.subi %c15_i32_174, %c9_i32 : i32
    %641 = arith.index_cast %c9_i32 : i32 to index
    %c0_175 = arith.constant 0 : index
    %c0_176 = arith.constant 0 : index
    %642 = vector.load %arg14[%641, %c0_175, %c0_176] : memref<16x8x128xf32, #tpu.memory_space<vmem>>, vector<1x8x128xf32>
    %643 = vector.shape_cast %642 : vector<1x8x128xf32> to vector<8x128xf32>
    %cst_177 = arith.constant dense<0.000000e+00> : vector<8x128xf32>
    %644 = tpu.matmul %606, %16, %cst_177 {dimension_numbers = #tpu.dot_dimension_numbers<[1], [0], [0], [1], [0, 0, 1, 1], [], []>} : vector<8x32xf32>, vector<32x128xf32>, vector<8x128xf32> -> vector<8x128xf32>
    %645 = arith.addf %643, %644 : vector<8x128xf32>
    %646 = arith.index_cast %640 : i32 to index
    %c0_178 = arith.constant 0 : index
    %c0_179 = arith.constant 0 : index
    %647 = vector.load %arg15[%646, %c0_178, %c0_179] : memref<16x8x128xf32, #tpu.memory_space<vmem>>, vector<1x8x128xf32>
    %648 = vector.shape_cast %647 : vector<1x8x128xf32> to vector<8x128xf32>
    %cst_180 = arith.constant dense<0.000000e+00> : vector<8x128xf32>
    %649 = tpu.matmul %631, %17, %cst_180 {dimension_numbers = #tpu.dot_dimension_numbers<[1], [0], [0], [1], [0, 0, 1, 1], [], []>} : vector<8x32xf32>, vector<32x128xf32>, vector<8x128xf32> -> vector<8x128xf32>
    %650 = arith.addf %648, %649 : vector<8x128xf32>
    %651 = vector.extract_strided_slice %645 {offsets = [0, 0], sizes = [8, 32], strides = [1, 1]} : vector<8x128xf32> to vector<8x32xf32>
    %652 = arith.negf %651 : vector<8x32xf32>
    %653 = math.exp %652 : vector<8x32xf32>
    %cst_181 = arith.constant 1.000000e+00 : f32
    %654 = vector.broadcast %cst_181 : f32 to vector<8x32xf32>
    %655 = arith.addf %654, %653 : vector<8x32xf32>
    %656 = arith.divf %654, %655 : vector<8x32xf32>
    %657 = vector.extract_strided_slice %645 {offsets = [0, 32], sizes = [8, 32], strides = [1, 1]} : vector<8x128xf32> to vector<8x32xf32>
    %658 = arith.negf %657 : vector<8x32xf32>
    %659 = math.exp %658 : vector<8x32xf32>
    %cst_182 = arith.constant 1.000000e+00 : f32
    %660 = vector.broadcast %cst_182 : f32 to vector<8x32xf32>
    %661 = arith.addf %660, %659 : vector<8x32xf32>
    %662 = arith.divf %660, %661 : vector<8x32xf32>
    %663 = vector.extract_strided_slice %645 {offsets = [0, 64], sizes = [8, 32], strides = [1, 1]} : vector<8x128xf32> to vector<8x32xf32>
    %664 = math.tanh %663 : vector<8x32xf32>
    %665 = vector.extract_strided_slice %645 {offsets = [0, 96], sizes = [8, 32], strides = [1, 1]} : vector<8x128xf32> to vector<8x32xf32>
    %666 = arith.negf %665 : vector<8x32xf32>
    %667 = math.exp %666 : vector<8x32xf32>
    %cst_183 = arith.constant 1.000000e+00 : f32
    %668 = vector.broadcast %cst_183 : f32 to vector<8x32xf32>
    %669 = arith.addf %668, %667 : vector<8x32xf32>
    %670 = arith.divf %668, %669 : vector<8x32xf32>
    %671 = arith.mulf %662, %604 : vector<8x32xf32>
    %672 = arith.mulf %656, %664 : vector<8x32xf32>
    %673 = arith.addf %671, %672 : vector<8x32xf32>
    %674 = math.tanh %673 : vector<8x32xf32>
    %675 = arith.mulf %670, %674 : vector<8x32xf32>
    %676 = vector.extract_strided_slice %650 {offsets = [0, 0], sizes = [8, 32], strides = [1, 1]} : vector<8x128xf32> to vector<8x32xf32>
    %677 = arith.negf %676 : vector<8x32xf32>
    %678 = math.exp %677 : vector<8x32xf32>
    %cst_184 = arith.constant 1.000000e+00 : f32
    %679 = vector.broadcast %cst_184 : f32 to vector<8x32xf32>
    %680 = arith.addf %679, %678 : vector<8x32xf32>
    %681 = arith.divf %679, %680 : vector<8x32xf32>
    %682 = vector.extract_strided_slice %650 {offsets = [0, 32], sizes = [8, 32], strides = [1, 1]} : vector<8x128xf32> to vector<8x32xf32>
    %683 = arith.negf %682 : vector<8x32xf32>
    %684 = math.exp %683 : vector<8x32xf32>
    %cst_185 = arith.constant 1.000000e+00 : f32
    %685 = vector.broadcast %cst_185 : f32 to vector<8x32xf32>
    %686 = arith.addf %685, %684 : vector<8x32xf32>
    %687 = arith.divf %685, %686 : vector<8x32xf32>
    %688 = vector.extract_strided_slice %650 {offsets = [0, 64], sizes = [8, 32], strides = [1, 1]} : vector<8x128xf32> to vector<8x32xf32>
    %689 = math.tanh %688 : vector<8x32xf32>
    %690 = vector.extract_strided_slice %650 {offsets = [0, 96], sizes = [8, 32], strides = [1, 1]} : vector<8x128xf32> to vector<8x32xf32>
    %691 = arith.negf %690 : vector<8x32xf32>
    %692 = math.exp %691 : vector<8x32xf32>
    %cst_186 = arith.constant 1.000000e+00 : f32
    %693 = vector.broadcast %cst_186 : f32 to vector<8x32xf32>
    %694 = arith.addf %693, %692 : vector<8x32xf32>
    %695 = arith.divf %693, %694 : vector<8x32xf32>
    %696 = arith.mulf %687, %629 : vector<8x32xf32>
    %697 = arith.mulf %681, %689 : vector<8x32xf32>
    %698 = arith.addf %696, %697 : vector<8x32xf32>
    %699 = math.tanh %698 : vector<8x32xf32>
    %700 = arith.mulf %695, %699 : vector<8x32xf32>
    %701 = arith.index_cast %c9_i32 : i32 to index
    %c0_187 = arith.constant 0 : index
    %c0_188 = arith.constant 0 : index
    %702 = vector.load %arg16[%701, %c0_187, %c0_188] : memref<16x8x32xf32, #tpu.memory_space<vmem>>, vector<1x8x32xf32>
    %703 = vector.shape_cast %702 : vector<1x8x32xf32> to vector<8x32xf32>
    %704 = vector.shape_cast %675 : vector<8x32xf32> to vector<1x8x32xf32>
    tpu.vector_store %arg16[%701, %c0_187, %c0_188], %704 {strides = array<i32>} : memref<16x8x32xf32, #tpu.memory_space<vmem>>, vector<1x8x32xf32>,
    %705 = arith.index_cast %640 : i32 to index
    %c0_189 = arith.constant 0 : index
    %c0_190 = arith.constant 0 : index
    %706 = vector.load %arg17[%705, %c0_189, %c0_190] : memref<16x8x32xf32, #tpu.memory_space<vmem>>, vector<1x8x32xf32>
    %707 = vector.shape_cast %706 : vector<1x8x32xf32> to vector<8x32xf32>
    %708 = vector.shape_cast %700 : vector<8x32xf32> to vector<1x8x32xf32>
    tpu.vector_store %arg17[%705, %c0_189, %c0_190], %708 {strides = array<i32>} : memref<16x8x32xf32, #tpu.memory_space<vmem>>, vector<1x8x32xf32>,
    %c10_i32 = arith.constant 10 : i32
    %c15_i32_191 = arith.constant 15 : i32
    %709 = arith.subi %c15_i32_191, %c10_i32 : i32
    %710 = arith.index_cast %c10_i32 : i32 to index
    %c0_192 = arith.constant 0 : index
    %c0_193 = arith.constant 0 : index
    %711 = vector.load %arg14[%710, %c0_192, %c0_193] : memref<16x8x128xf32, #tpu.memory_space<vmem>>, vector<1x8x128xf32>
    %712 = vector.shape_cast %711 : vector<1x8x128xf32> to vector<8x128xf32>
    %cst_194 = arith.constant dense<0.000000e+00> : vector<8x128xf32>
    %713 = tpu.matmul %675, %16, %cst_194 {dimension_numbers = #tpu.dot_dimension_numbers<[1], [0], [0], [1], [0, 0, 1, 1], [], []>} : vector<8x32xf32>, vector<32x128xf32>, vector<8x128xf32> -> vector<8x128xf32>
    %714 = arith.addf %712, %713 : vector<8x128xf32>
    %715 = arith.index_cast %709 : i32 to index
    %c0_195 = arith.constant 0 : index
    %c0_196 = arith.constant 0 : index
    %716 = vector.load %arg15[%715, %c0_195, %c0_196] : memref<16x8x128xf32, #tpu.memory_space<vmem>>, vector<1x8x128xf32>
    %717 = vector.shape_cast %716 : vector<1x8x128xf32> to vector<8x128xf32>
    %cst_197 = arith.constant dense<0.000000e+00> : vector<8x128xf32>
    %718 = tpu.matmul %700, %17, %cst_197 {dimension_numbers = #tpu.dot_dimension_numbers<[1], [0], [0], [1], [0, 0, 1, 1], [], []>} : vector<8x32xf32>, vector<32x128xf32>, vector<8x128xf32> -> vector<8x128xf32>
    %719 = arith.addf %717, %718 : vector<8x128xf32>
    %720 = vector.extract_strided_slice %714 {offsets = [0, 0], sizes = [8, 32], strides = [1, 1]} : vector<8x128xf32> to vector<8x32xf32>
    %721 = arith.negf %720 : vector<8x32xf32>
    %722 = math.exp %721 : vector<8x32xf32>
    %cst_198 = arith.constant 1.000000e+00 : f32
    %723 = vector.broadcast %cst_198 : f32 to vector<8x32xf32>
    %724 = arith.addf %723, %722 : vector<8x32xf32>
    %725 = arith.divf %723, %724 : vector<8x32xf32>
    %726 = vector.extract_strided_slice %714 {offsets = [0, 32], sizes = [8, 32], strides = [1, 1]} : vector<8x128xf32> to vector<8x32xf32>
    %727 = arith.negf %726 : vector<8x32xf32>
    %728 = math.exp %727 : vector<8x32xf32>
    %cst_199 = arith.constant 1.000000e+00 : f32
    %729 = vector.broadcast %cst_199 : f32 to vector<8x32xf32>
    %730 = arith.addf %729, %728 : vector<8x32xf32>
    %731 = arith.divf %729, %730 : vector<8x32xf32>
    %732 = vector.extract_strided_slice %714 {offsets = [0, 64], sizes = [8, 32], strides = [1, 1]} : vector<8x128xf32> to vector<8x32xf32>
    %733 = math.tanh %732 : vector<8x32xf32>
    %734 = vector.extract_strided_slice %714 {offsets = [0, 96], sizes = [8, 32], strides = [1, 1]} : vector<8x128xf32> to vector<8x32xf32>
    %735 = arith.negf %734 : vector<8x32xf32>
    %736 = math.exp %735 : vector<8x32xf32>
    %cst_200 = arith.constant 1.000000e+00 : f32
    %737 = vector.broadcast %cst_200 : f32 to vector<8x32xf32>
    %738 = arith.addf %737, %736 : vector<8x32xf32>
    %739 = arith.divf %737, %738 : vector<8x32xf32>
    %740 = arith.mulf %731, %673 : vector<8x32xf32>
    %741 = arith.mulf %725, %733 : vector<8x32xf32>
    %742 = arith.addf %740, %741 : vector<8x32xf32>
    %743 = math.tanh %742 : vector<8x32xf32>
    %744 = arith.mulf %739, %743 : vector<8x32xf32>
    %745 = vector.extract_strided_slice %719 {offsets = [0, 0], sizes = [8, 32], strides = [1, 1]} : vector<8x128xf32> to vector<8x32xf32>
    %746 = arith.negf %745 : vector<8x32xf32>
    %747 = math.exp %746 : vector<8x32xf32>
    %cst_201 = arith.constant 1.000000e+00 : f32
    %748 = vector.broadcast %cst_201 : f32 to vector<8x32xf32>
    %749 = arith.addf %748, %747 : vector<8x32xf32>
    %750 = arith.divf %748, %749 : vector<8x32xf32>
    %751 = vector.extract_strided_slice %719 {offsets = [0, 32], sizes = [8, 32], strides = [1, 1]} : vector<8x128xf32> to vector<8x32xf32>
    %752 = arith.negf %751 : vector<8x32xf32>
    %753 = math.exp %752 : vector<8x32xf32>
    %cst_202 = arith.constant 1.000000e+00 : f32
    %754 = vector.broadcast %cst_202 : f32 to vector<8x32xf32>
    %755 = arith.addf %754, %753 : vector<8x32xf32>
    %756 = arith.divf %754, %755 : vector<8x32xf32>
    %757 = vector.extract_strided_slice %719 {offsets = [0, 64], sizes = [8, 32], strides = [1, 1]} : vector<8x128xf32> to vector<8x32xf32>
    %758 = math.tanh %757 : vector<8x32xf32>
    %759 = vector.extract_strided_slice %719 {offsets = [0, 96], sizes = [8, 32], strides = [1, 1]} : vector<8x128xf32> to vector<8x32xf32>
    %760 = arith.negf %759 : vector<8x32xf32>
    %761 = math.exp %760 : vector<8x32xf32>
    %cst_203 = arith.constant 1.000000e+00 : f32
    %762 = vector.broadcast %cst_203 : f32 to vector<8x32xf32>
    %763 = arith.addf %762, %761 : vector<8x32xf32>
    %764 = arith.divf %762, %763 : vector<8x32xf32>
    %765 = arith.mulf %756, %698 : vector<8x32xf32>
    %766 = arith.mulf %750, %758 : vector<8x32xf32>
    %767 = arith.addf %765, %766 : vector<8x32xf32>
    %768 = math.tanh %767 : vector<8x32xf32>
    %769 = arith.mulf %764, %768 : vector<8x32xf32>
    %770 = arith.index_cast %c10_i32 : i32 to index
    %c0_204 = arith.constant 0 : index
    %c0_205 = arith.constant 0 : index
    %771 = vector.load %arg16[%770, %c0_204, %c0_205] : memref<16x8x32xf32, #tpu.memory_space<vmem>>, vector<1x8x32xf32>
    %772 = vector.shape_cast %771 : vector<1x8x32xf32> to vector<8x32xf32>
    %773 = vector.shape_cast %744 : vector<8x32xf32> to vector<1x8x32xf32>
    tpu.vector_store %arg16[%770, %c0_204, %c0_205], %773 {strides = array<i32>} : memref<16x8x32xf32, #tpu.memory_space<vmem>>, vector<1x8x32xf32>,
    %774 = arith.index_cast %709 : i32 to index
    %c0_206 = arith.constant 0 : index
    %c0_207 = arith.constant 0 : index
    %775 = vector.load %arg17[%774, %c0_206, %c0_207] : memref<16x8x32xf32, #tpu.memory_space<vmem>>, vector<1x8x32xf32>
    %776 = vector.shape_cast %775 : vector<1x8x32xf32> to vector<8x32xf32>
    %777 = vector.shape_cast %769 : vector<8x32xf32> to vector<1x8x32xf32>
    tpu.vector_store %arg17[%774, %c0_206, %c0_207], %777 {strides = array<i32>} : memref<16x8x32xf32, #tpu.memory_space<vmem>>, vector<1x8x32xf32>,
    %c11_i32 = arith.constant 11 : i32
    %c15_i32_208 = arith.constant 15 : i32
    %778 = arith.subi %c15_i32_208, %c11_i32 : i32
    %779 = arith.index_cast %c11_i32 : i32 to index
    %c0_209 = arith.constant 0 : index
    %c0_210 = arith.constant 0 : index
    %780 = vector.load %arg14[%779, %c0_209, %c0_210] : memref<16x8x128xf32, #tpu.memory_space<vmem>>, vector<1x8x128xf32>
    %781 = vector.shape_cast %780 : vector<1x8x128xf32> to vector<8x128xf32>
    %cst_211 = arith.constant dense<0.000000e+00> : vector<8x128xf32>
    %782 = tpu.matmul %744, %16, %cst_211 {dimension_numbers = #tpu.dot_dimension_numbers<[1], [0], [0], [1], [0, 0, 1, 1], [], []>} : vector<8x32xf32>, vector<32x128xf32>, vector<8x128xf32> -> vector<8x128xf32>
    %783 = arith.addf %781, %782 : vector<8x128xf32>
    %784 = arith.index_cast %778 : i32 to index
    %c0_212 = arith.constant 0 : index
    %c0_213 = arith.constant 0 : index
    %785 = vector.load %arg15[%784, %c0_212, %c0_213] : memref<16x8x128xf32, #tpu.memory_space<vmem>>, vector<1x8x128xf32>
    %786 = vector.shape_cast %785 : vector<1x8x128xf32> to vector<8x128xf32>
    %cst_214 = arith.constant dense<0.000000e+00> : vector<8x128xf32>
    %787 = tpu.matmul %769, %17, %cst_214 {dimension_numbers = #tpu.dot_dimension_numbers<[1], [0], [0], [1], [0, 0, 1, 1], [], []>} : vector<8x32xf32>, vector<32x128xf32>, vector<8x128xf32> -> vector<8x128xf32>
    %788 = arith.addf %786, %787 : vector<8x128xf32>
    %789 = vector.extract_strided_slice %783 {offsets = [0, 0], sizes = [8, 32], strides = [1, 1]} : vector<8x128xf32> to vector<8x32xf32>
    %790 = arith.negf %789 : vector<8x32xf32>
    %791 = math.exp %790 : vector<8x32xf32>
    %cst_215 = arith.constant 1.000000e+00 : f32
    %792 = vector.broadcast %cst_215 : f32 to vector<8x32xf32>
    %793 = arith.addf %792, %791 : vector<8x32xf32>
    %794 = arith.divf %792, %793 : vector<8x32xf32>
    %795 = vector.extract_strided_slice %783 {offsets = [0, 32], sizes = [8, 32], strides = [1, 1]} : vector<8x128xf32> to vector<8x32xf32>
    %796 = arith.negf %795 : vector<8x32xf32>
    %797 = math.exp %796 : vector<8x32xf32>
    %cst_216 = arith.constant 1.000000e+00 : f32
    %798 = vector.broadcast %cst_216 : f32 to vector<8x32xf32>
    %799 = arith.addf %798, %797 : vector<8x32xf32>
    %800 = arith.divf %798, %799 : vector<8x32xf32>
    %801 = vector.extract_strided_slice %783 {offsets = [0, 64], sizes = [8, 32], strides = [1, 1]} : vector<8x128xf32> to vector<8x32xf32>
    %802 = math.tanh %801 : vector<8x32xf32>
    %803 = vector.extract_strided_slice %783 {offsets = [0, 96], sizes = [8, 32], strides = [1, 1]} : vector<8x128xf32> to vector<8x32xf32>
    %804 = arith.negf %803 : vector<8x32xf32>
    %805 = math.exp %804 : vector<8x32xf32>
    %cst_217 = arith.constant 1.000000e+00 : f32
    %806 = vector.broadcast %cst_217 : f32 to vector<8x32xf32>
    %807 = arith.addf %806, %805 : vector<8x32xf32>
    %808 = arith.divf %806, %807 : vector<8x32xf32>
    %809 = arith.mulf %800, %742 : vector<8x32xf32>
    %810 = arith.mulf %794, %802 : vector<8x32xf32>
    %811 = arith.addf %809, %810 : vector<8x32xf32>
    %812 = math.tanh %811 : vector<8x32xf32>
    %813 = arith.mulf %808, %812 : vector<8x32xf32>
    %814 = vector.extract_strided_slice %788 {offsets = [0, 0], sizes = [8, 32], strides = [1, 1]} : vector<8x128xf32> to vector<8x32xf32>
    %815 = arith.negf %814 : vector<8x32xf32>
    %816 = math.exp %815 : vector<8x32xf32>
    %cst_218 = arith.constant 1.000000e+00 : f32
    %817 = vector.broadcast %cst_218 : f32 to vector<8x32xf32>
    %818 = arith.addf %817, %816 : vector<8x32xf32>
    %819 = arith.divf %817, %818 : vector<8x32xf32>
    %820 = vector.extract_strided_slice %788 {offsets = [0, 32], sizes = [8, 32], strides = [1, 1]} : vector<8x128xf32> to vector<8x32xf32>
    %821 = arith.negf %820 : vector<8x32xf32>
    %822 = math.exp %821 : vector<8x32xf32>
    %cst_219 = arith.constant 1.000000e+00 : f32
    %823 = vector.broadcast %cst_219 : f32 to vector<8x32xf32>
    %824 = arith.addf %823, %822 : vector<8x32xf32>
    %825 = arith.divf %823, %824 : vector<8x32xf32>
    %826 = vector.extract_strided_slice %788 {offsets = [0, 64], sizes = [8, 32], strides = [1, 1]} : vector<8x128xf32> to vector<8x32xf32>
    %827 = math.tanh %826 : vector<8x32xf32>
    %828 = vector.extract_strided_slice %788 {offsets = [0, 96], sizes = [8, 32], strides = [1, 1]} : vector<8x128xf32> to vector<8x32xf32>
    %829 = arith.negf %828 : vector<8x32xf32>
    %830 = math.exp %829 : vector<8x32xf32>
    %cst_220 = arith.constant 1.000000e+00 : f32
    %831 = vector.broadcast %cst_220 : f32 to vector<8x32xf32>
    %832 = arith.addf %831, %830 : vector<8x32xf32>
    %833 = arith.divf %831, %832 : vector<8x32xf32>
    %834 = arith.mulf %825, %767 : vector<8x32xf32>
    %835 = arith.mulf %819, %827 : vector<8x32xf32>
    %836 = arith.addf %834, %835 : vector<8x32xf32>
    %837 = math.tanh %836 : vector<8x32xf32>
    %838 = arith.mulf %833, %837 : vector<8x32xf32>
    %839 = arith.index_cast %c11_i32 : i32 to index
    %c0_221 = arith.constant 0 : index
    %c0_222 = arith.constant 0 : index
    %840 = vector.load %arg16[%839, %c0_221, %c0_222] : memref<16x8x32xf32, #tpu.memory_space<vmem>>, vector<1x8x32xf32>
    %841 = vector.shape_cast %840 : vector<1x8x32xf32> to vector<8x32xf32>
    %842 = vector.shape_cast %813 : vector<8x32xf32> to vector<1x8x32xf32>
    tpu.vector_store %arg16[%839, %c0_221, %c0_222], %842 {strides = array<i32>} : memref<16x8x32xf32, #tpu.memory_space<vmem>>, vector<1x8x32xf32>,
    %843 = arith.index_cast %778 : i32 to index
    %c0_223 = arith.constant 0 : index
    %c0_224 = arith.constant 0 : index
    %844 = vector.load %arg17[%843, %c0_223, %c0_224] : memref<16x8x32xf32, #tpu.memory_space<vmem>>, vector<1x8x32xf32>
    %845 = vector.shape_cast %844 : vector<1x8x32xf32> to vector<8x32xf32>
    %846 = vector.shape_cast %838 : vector<8x32xf32> to vector<1x8x32xf32>
    tpu.vector_store %arg17[%843, %c0_223, %c0_224], %846 {strides = array<i32>} : memref<16x8x32xf32, #tpu.memory_space<vmem>>, vector<1x8x32xf32>,
    %c12_i32 = arith.constant 12 : i32
    %c15_i32_225 = arith.constant 15 : i32
    %847 = arith.subi %c15_i32_225, %c12_i32 : i32
    %848 = arith.index_cast %c12_i32 : i32 to index
    %c0_226 = arith.constant 0 : index
    %c0_227 = arith.constant 0 : index
    %849 = vector.load %arg14[%848, %c0_226, %c0_227] : memref<16x8x128xf32, #tpu.memory_space<vmem>>, vector<1x8x128xf32>
    %850 = vector.shape_cast %849 : vector<1x8x128xf32> to vector<8x128xf32>
    %cst_228 = arith.constant dense<0.000000e+00> : vector<8x128xf32>
    %851 = tpu.matmul %813, %16, %cst_228 {dimension_numbers = #tpu.dot_dimension_numbers<[1], [0], [0], [1], [0, 0, 1, 1], [], []>} : vector<8x32xf32>, vector<32x128xf32>, vector<8x128xf32> -> vector<8x128xf32>
    %852 = arith.addf %850, %851 : vector<8x128xf32>
    %853 = arith.index_cast %847 : i32 to index
    %c0_229 = arith.constant 0 : index
    %c0_230 = arith.constant 0 : index
    %854 = vector.load %arg15[%853, %c0_229, %c0_230] : memref<16x8x128xf32, #tpu.memory_space<vmem>>, vector<1x8x128xf32>
    %855 = vector.shape_cast %854 : vector<1x8x128xf32> to vector<8x128xf32>
    %cst_231 = arith.constant dense<0.000000e+00> : vector<8x128xf32>
    %856 = tpu.matmul %838, %17, %cst_231 {dimension_numbers = #tpu.dot_dimension_numbers<[1], [0], [0], [1], [0, 0, 1, 1], [], []>} : vector<8x32xf32>, vector<32x128xf32>, vector<8x128xf32> -> vector<8x128xf32>
    %857 = arith.addf %855, %856 : vector<8x128xf32>
    %858 = vector.extract_strided_slice %852 {offsets = [0, 0], sizes = [8, 32], strides = [1, 1]} : vector<8x128xf32> to vector<8x32xf32>
    %859 = arith.negf %858 : vector<8x32xf32>
    %860 = math.exp %859 : vector<8x32xf32>
    %cst_232 = arith.constant 1.000000e+00 : f32
    %861 = vector.broadcast %cst_232 : f32 to vector<8x32xf32>
    %862 = arith.addf %861, %860 : vector<8x32xf32>
    %863 = arith.divf %861, %862 : vector<8x32xf32>
    %864 = vector.extract_strided_slice %852 {offsets = [0, 32], sizes = [8, 32], strides = [1, 1]} : vector<8x128xf32> to vector<8x32xf32>
    %865 = arith.negf %864 : vector<8x32xf32>
    %866 = math.exp %865 : vector<8x32xf32>
    %cst_233 = arith.constant 1.000000e+00 : f32
    %867 = vector.broadcast %cst_233 : f32 to vector<8x32xf32>
    %868 = arith.addf %867, %866 : vector<8x32xf32>
    %869 = arith.divf %867, %868 : vector<8x32xf32>
    %870 = vector.extract_strided_slice %852 {offsets = [0, 64], sizes = [8, 32], strides = [1, 1]} : vector<8x128xf32> to vector<8x32xf32>
    %871 = math.tanh %870 : vector<8x32xf32>
    %872 = vector.extract_strided_slice %852 {offsets = [0, 96], sizes = [8, 32], strides = [1, 1]} : vector<8x128xf32> to vector<8x32xf32>
    %873 = arith.negf %872 : vector<8x32xf32>
    %874 = math.exp %873 : vector<8x32xf32>
    %cst_234 = arith.constant 1.000000e+00 : f32
    %875 = vector.broadcast %cst_234 : f32 to vector<8x32xf32>
    %876 = arith.addf %875, %874 : vector<8x32xf32>
    %877 = arith.divf %875, %876 : vector<8x32xf32>
    %878 = arith.mulf %869, %811 : vector<8x32xf32>
    %879 = arith.mulf %863, %871 : vector<8x32xf32>
    %880 = arith.addf %878, %879 : vector<8x32xf32>
    %881 = math.tanh %880 : vector<8x32xf32>
    %882 = arith.mulf %877, %881 : vector<8x32xf32>
    %883 = vector.extract_strided_slice %857 {offsets = [0, 0], sizes = [8, 32], strides = [1, 1]} : vector<8x128xf32> to vector<8x32xf32>
    %884 = arith.negf %883 : vector<8x32xf32>
    %885 = math.exp %884 : vector<8x32xf32>
    %cst_235 = arith.constant 1.000000e+00 : f32
    %886 = vector.broadcast %cst_235 : f32 to vector<8x32xf32>
    %887 = arith.addf %886, %885 : vector<8x32xf32>
    %888 = arith.divf %886, %887 : vector<8x32xf32>
    %889 = vector.extract_strided_slice %857 {offsets = [0, 32], sizes = [8, 32], strides = [1, 1]} : vector<8x128xf32> to vector<8x32xf32>
    %890 = arith.negf %889 : vector<8x32xf32>
    %891 = math.exp %890 : vector<8x32xf32>
    %cst_236 = arith.constant 1.000000e+00 : f32
    %892 = vector.broadcast %cst_236 : f32 to vector<8x32xf32>
    %893 = arith.addf %892, %891 : vector<8x32xf32>
    %894 = arith.divf %892, %893 : vector<8x32xf32>
    %895 = vector.extract_strided_slice %857 {offsets = [0, 64], sizes = [8, 32], strides = [1, 1]} : vector<8x128xf32> to vector<8x32xf32>
    %896 = math.tanh %895 : vector<8x32xf32>
    %897 = vector.extract_strided_slice %857 {offsets = [0, 96], sizes = [8, 32], strides = [1, 1]} : vector<8x128xf32> to vector<8x32xf32>
    %898 = arith.negf %897 : vector<8x32xf32>
    %899 = math.exp %898 : vector<8x32xf32>
    %cst_237 = arith.constant 1.000000e+00 : f32
    %900 = vector.broadcast %cst_237 : f32 to vector<8x32xf32>
    %901 = arith.addf %900, %899 : vector<8x32xf32>
    %902 = arith.divf %900, %901 : vector<8x32xf32>
    %903 = arith.mulf %894, %836 : vector<8x32xf32>
    %904 = arith.mulf %888, %896 : vector<8x32xf32>
    %905 = arith.addf %903, %904 : vector<8x32xf32>
    %906 = math.tanh %905 : vector<8x32xf32>
    %907 = arith.mulf %902, %906 : vector<8x32xf32>
    %908 = arith.index_cast %c12_i32 : i32 to index
    %c0_238 = arith.constant 0 : index
    %c0_239 = arith.constant 0 : index
    %909 = vector.load %arg16[%908, %c0_238, %c0_239] : memref<16x8x32xf32, #tpu.memory_space<vmem>>, vector<1x8x32xf32>
    %910 = vector.shape_cast %909 : vector<1x8x32xf32> to vector<8x32xf32>
    %911 = vector.shape_cast %882 : vector<8x32xf32> to vector<1x8x32xf32>
    tpu.vector_store %arg16[%908, %c0_238, %c0_239], %911 {strides = array<i32>} : memref<16x8x32xf32, #tpu.memory_space<vmem>>, vector<1x8x32xf32>,
    %912 = arith.index_cast %847 : i32 to index
    %c0_240 = arith.constant 0 : index
    %c0_241 = arith.constant 0 : index
    %913 = vector.load %arg17[%912, %c0_240, %c0_241] : memref<16x8x32xf32, #tpu.memory_space<vmem>>, vector<1x8x32xf32>
    %914 = vector.shape_cast %913 : vector<1x8x32xf32> to vector<8x32xf32>
    %915 = vector.shape_cast %907 : vector<8x32xf32> to vector<1x8x32xf32>
    tpu.vector_store %arg17[%912, %c0_240, %c0_241], %915 {strides = array<i32>} : memref<16x8x32xf32, #tpu.memory_space<vmem>>, vector<1x8x32xf32>,
    %c13_i32 = arith.constant 13 : i32
    %c15_i32_242 = arith.constant 15 : i32
    %916 = arith.subi %c15_i32_242, %c13_i32 : i32
    %917 = arith.index_cast %c13_i32 : i32 to index
    %c0_243 = arith.constant 0 : index
    %c0_244 = arith.constant 0 : index
    %918 = vector.load %arg14[%917, %c0_243, %c0_244] : memref<16x8x128xf32, #tpu.memory_space<vmem>>, vector<1x8x128xf32>
    %919 = vector.shape_cast %918 : vector<1x8x128xf32> to vector<8x128xf32>
    %cst_245 = arith.constant dense<0.000000e+00> : vector<8x128xf32>
    %920 = tpu.matmul %882, %16, %cst_245 {dimension_numbers = #tpu.dot_dimension_numbers<[1], [0], [0], [1], [0, 0, 1, 1], [], []>} : vector<8x32xf32>, vector<32x128xf32>, vector<8x128xf32> -> vector<8x128xf32>
    %921 = arith.addf %919, %920 : vector<8x128xf32>
    %922 = arith.index_cast %916 : i32 to index
    %c0_246 = arith.constant 0 : index
    %c0_247 = arith.constant 0 : index
    %923 = vector.load %arg15[%922, %c0_246, %c0_247] : memref<16x8x128xf32, #tpu.memory_space<vmem>>, vector<1x8x128xf32>
    %924 = vector.shape_cast %923 : vector<1x8x128xf32> to vector<8x128xf32>
    %cst_248 = arith.constant dense<0.000000e+00> : vector<8x128xf32>
    %925 = tpu.matmul %907, %17, %cst_248 {dimension_numbers = #tpu.dot_dimension_numbers<[1], [0], [0], [1], [0, 0, 1, 1], [], []>} : vector<8x32xf32>, vector<32x128xf32>, vector<8x128xf32> -> vector<8x128xf32>
    %926 = arith.addf %924, %925 : vector<8x128xf32>
    %927 = vector.extract_strided_slice %921 {offsets = [0, 0], sizes = [8, 32], strides = [1, 1]} : vector<8x128xf32> to vector<8x32xf32>
    %928 = arith.negf %927 : vector<8x32xf32>
    %929 = math.exp %928 : vector<8x32xf32>
    %cst_249 = arith.constant 1.000000e+00 : f32
    %930 = vector.broadcast %cst_249 : f32 to vector<8x32xf32>
    %931 = arith.addf %930, %929 : vector<8x32xf32>
    %932 = arith.divf %930, %931 : vector<8x32xf32>
    %933 = vector.extract_strided_slice %921 {offsets = [0, 32], sizes = [8, 32], strides = [1, 1]} : vector<8x128xf32> to vector<8x32xf32>
    %934 = arith.negf %933 : vector<8x32xf32>
    %935 = math.exp %934 : vector<8x32xf32>
    %cst_250 = arith.constant 1.000000e+00 : f32
    %936 = vector.broadcast %cst_250 : f32 to vector<8x32xf32>
    %937 = arith.addf %936, %935 : vector<8x32xf32>
    %938 = arith.divf %936, %937 : vector<8x32xf32>
    %939 = vector.extract_strided_slice %921 {offsets = [0, 64], sizes = [8, 32], strides = [1, 1]} : vector<8x128xf32> to vector<8x32xf32>
    %940 = math.tanh %939 : vector<8x32xf32>
    %941 = vector.extract_strided_slice %921 {offsets = [0, 96], sizes = [8, 32], strides = [1, 1]} : vector<8x128xf32> to vector<8x32xf32>
    %942 = arith.negf %941 : vector<8x32xf32>
    %943 = math.exp %942 : vector<8x32xf32>
    %cst_251 = arith.constant 1.000000e+00 : f32
    %944 = vector.broadcast %cst_251 : f32 to vector<8x32xf32>
    %945 = arith.addf %944, %943 : vector<8x32xf32>
    %946 = arith.divf %944, %945 : vector<8x32xf32>
    %947 = arith.mulf %938, %880 : vector<8x32xf32>
    %948 = arith.mulf %932, %940 : vector<8x32xf32>
    %949 = arith.addf %947, %948 : vector<8x32xf32>
    %950 = math.tanh %949 : vector<8x32xf32>
    %951 = arith.mulf %946, %950 : vector<8x32xf32>
    %952 = vector.extract_strided_slice %926 {offsets = [0, 0], sizes = [8, 32], strides = [1, 1]} : vector<8x128xf32> to vector<8x32xf32>
    %953 = arith.negf %952 : vector<8x32xf32>
    %954 = math.exp %953 : vector<8x32xf32>
    %cst_252 = arith.constant 1.000000e+00 : f32
    %955 = vector.broadcast %cst_252 : f32 to vector<8x32xf32>
    %956 = arith.addf %955, %954 : vector<8x32xf32>
    %957 = arith.divf %955, %956 : vector<8x32xf32>
    %958 = vector.extract_strided_slice %926 {offsets = [0, 32], sizes = [8, 32], strides = [1, 1]} : vector<8x128xf32> to vector<8x32xf32>
    %959 = arith.negf %958 : vector<8x32xf32>
    %960 = math.exp %959 : vector<8x32xf32>
    %cst_253 = arith.constant 1.000000e+00 : f32
    %961 = vector.broadcast %cst_253 : f32 to vector<8x32xf32>
    %962 = arith.addf %961, %960 : vector<8x32xf32>
    %963 = arith.divf %961, %962 : vector<8x32xf32>
    %964 = vector.extract_strided_slice %926 {offsets = [0, 64], sizes = [8, 32], strides = [1, 1]} : vector<8x128xf32> to vector<8x32xf32>
    %965 = math.tanh %964 : vector<8x32xf32>
    %966 = vector.extract_strided_slice %926 {offsets = [0, 96], sizes = [8, 32], strides = [1, 1]} : vector<8x128xf32> to vector<8x32xf32>
    %967 = arith.negf %966 : vector<8x32xf32>
    %968 = math.exp %967 : vector<8x32xf32>
    %cst_254 = arith.constant 1.000000e+00 : f32
    %969 = vector.broadcast %cst_254 : f32 to vector<8x32xf32>
    %970 = arith.addf %969, %968 : vector<8x32xf32>
    %971 = arith.divf %969, %970 : vector<8x32xf32>
    %972 = arith.mulf %963, %905 : vector<8x32xf32>
    %973 = arith.mulf %957, %965 : vector<8x32xf32>
    %974 = arith.addf %972, %973 : vector<8x32xf32>
    %975 = math.tanh %974 : vector<8x32xf32>
    %976 = arith.mulf %971, %975 : vector<8x32xf32>
    %977 = arith.index_cast %c13_i32 : i32 to index
    %c0_255 = arith.constant 0 : index
    %c0_256 = arith.constant 0 : index
    %978 = vector.load %arg16[%977, %c0_255, %c0_256] : memref<16x8x32xf32, #tpu.memory_space<vmem>>, vector<1x8x32xf32>
    %979 = vector.shape_cast %978 : vector<1x8x32xf32> to vector<8x32xf32>
    %980 = vector.shape_cast %951 : vector<8x32xf32> to vector<1x8x32xf32>
    tpu.vector_store %arg16[%977, %c0_255, %c0_256], %980 {strides = array<i32>} : memref<16x8x32xf32, #tpu.memory_space<vmem>>, vector<1x8x32xf32>,
    %981 = arith.index_cast %916 : i32 to index
    %c0_257 = arith.constant 0 : index
    %c0_258 = arith.constant 0 : index
    %982 = vector.load %arg17[%981, %c0_257, %c0_258] : memref<16x8x32xf32, #tpu.memory_space<vmem>>, vector<1x8x32xf32>
    %983 = vector.shape_cast %982 : vector<1x8x32xf32> to vector<8x32xf32>
    %984 = vector.shape_cast %976 : vector<8x32xf32> to vector<1x8x32xf32>
    tpu.vector_store %arg17[%981, %c0_257, %c0_258], %984 {strides = array<i32>} : memref<16x8x32xf32, #tpu.memory_space<vmem>>, vector<1x8x32xf32>,
    %c14_i32 = arith.constant 14 : i32
    %c15_i32_259 = arith.constant 15 : i32
    %985 = arith.subi %c15_i32_259, %c14_i32 : i32
    %986 = arith.index_cast %c14_i32 : i32 to index
    %c0_260 = arith.constant 0 : index
    %c0_261 = arith.constant 0 : index
    %987 = vector.load %arg14[%986, %c0_260, %c0_261] : memref<16x8x128xf32, #tpu.memory_space<vmem>>, vector<1x8x128xf32>
    %988 = vector.shape_cast %987 : vector<1x8x128xf32> to vector<8x128xf32>
    %cst_262 = arith.constant dense<0.000000e+00> : vector<8x128xf32>
    %989 = tpu.matmul %951, %16, %cst_262 {dimension_numbers = #tpu.dot_dimension_numbers<[1], [0], [0], [1], [0, 0, 1, 1], [], []>} : vector<8x32xf32>, vector<32x128xf32>, vector<8x128xf32> -> vector<8x128xf32>
    %990 = arith.addf %988, %989 : vector<8x128xf32>
    %991 = arith.index_cast %985 : i32 to index
    %c0_263 = arith.constant 0 : index
    %c0_264 = arith.constant 0 : index
    %992 = vector.load %arg15[%991, %c0_263, %c0_264] : memref<16x8x128xf32, #tpu.memory_space<vmem>>, vector<1x8x128xf32>
    %993 = vector.shape_cast %992 : vector<1x8x128xf32> to vector<8x128xf32>
    %cst_265 = arith.constant dense<0.000000e+00> : vector<8x128xf32>
    %994 = tpu.matmul %976, %17, %cst_265 {dimension_numbers = #tpu.dot_dimension_numbers<[1], [0], [0], [1], [0, 0, 1, 1], [], []>} : vector<8x32xf32>, vector<32x128xf32>, vector<8x128xf32> -> vector<8x128xf32>
    %995 = arith.addf %993, %994 : vector<8x128xf32>
    %996 = vector.extract_strided_slice %990 {offsets = [0, 0], sizes = [8, 32], strides = [1, 1]} : vector<8x128xf32> to vector<8x32xf32>
    %997 = arith.negf %996 : vector<8x32xf32>
    %998 = math.exp %997 : vector<8x32xf32>
    %cst_266 = arith.constant 1.000000e+00 : f32
    %999 = vector.broadcast %cst_266 : f32 to vector<8x32xf32>
    %1000 = arith.addf %999, %998 : vector<8x32xf32>
    %1001 = arith.divf %999, %1000 : vector<8x32xf32>
    %1002 = vector.extract_strided_slice %990 {offsets = [0, 32], sizes = [8, 32], strides = [1, 1]} : vector<8x128xf32> to vector<8x32xf32>
    %1003 = arith.negf %1002 : vector<8x32xf32>
    %1004 = math.exp %1003 : vector<8x32xf32>
    %cst_267 = arith.constant 1.000000e+00 : f32
    %1005 = vector.broadcast %cst_267 : f32 to vector<8x32xf32>
    %1006 = arith.addf %1005, %1004 : vector<8x32xf32>
    %1007 = arith.divf %1005, %1006 : vector<8x32xf32>
    %1008 = vector.extract_strided_slice %990 {offsets = [0, 64], sizes = [8, 32], strides = [1, 1]} : vector<8x128xf32> to vector<8x32xf32>
    %1009 = math.tanh %1008 : vector<8x32xf32>
    %1010 = vector.extract_strided_slice %990 {offsets = [0, 96], sizes = [8, 32], strides = [1, 1]} : vector<8x128xf32> to vector<8x32xf32>
    %1011 = arith.negf %1010 : vector<8x32xf32>
    %1012 = math.exp %1011 : vector<8x32xf32>
    %cst_268 = arith.constant 1.000000e+00 : f32
    %1013 = vector.broadcast %cst_268 : f32 to vector<8x32xf32>
    %1014 = arith.addf %1013, %1012 : vector<8x32xf32>
    %1015 = arith.divf %1013, %1014 : vector<8x32xf32>
    %1016 = arith.mulf %1007, %949 : vector<8x32xf32>
    %1017 = arith.mulf %1001, %1009 : vector<8x32xf32>
    %1018 = arith.addf %1016, %1017 : vector<8x32xf32>
    %1019 = math.tanh %1018 : vector<8x32xf32>
    %1020 = arith.mulf %1015, %1019 : vector<8x32xf32>
    %1021 = vector.extract_strided_slice %995 {offsets = [0, 0], sizes = [8, 32], strides = [1, 1]} : vector<8x128xf32> to vector<8x32xf32>
    %1022 = arith.negf %1021 : vector<8x32xf32>
    %1023 = math.exp %1022 : vector<8x32xf32>
    %cst_269 = arith.constant 1.000000e+00 : f32
    %1024 = vector.broadcast %cst_269 : f32 to vector<8x32xf32>
    %1025 = arith.addf %1024, %1023 : vector<8x32xf32>
    %1026 = arith.divf %1024, %1025 : vector<8x32xf32>
    %1027 = vector.extract_strided_slice %995 {offsets = [0, 32], sizes = [8, 32], strides = [1, 1]} : vector<8x128xf32> to vector<8x32xf32>
    %1028 = arith.negf %1027 : vector<8x32xf32>
    %1029 = math.exp %1028 : vector<8x32xf32>
    %cst_270 = arith.constant 1.000000e+00 : f32
    %1030 = vector.broadcast %cst_270 : f32 to vector<8x32xf32>
    %1031 = arith.addf %1030, %1029 : vector<8x32xf32>
    %1032 = arith.divf %1030, %1031 : vector<8x32xf32>
    %1033 = vector.extract_strided_slice %995 {offsets = [0, 64], sizes = [8, 32], strides = [1, 1]} : vector<8x128xf32> to vector<8x32xf32>
    %1034 = math.tanh %1033 : vector<8x32xf32>
    %1035 = vector.extract_strided_slice %995 {offsets = [0, 96], sizes = [8, 32], strides = [1, 1]} : vector<8x128xf32> to vector<8x32xf32>
    %1036 = arith.negf %1035 : vector<8x32xf32>
    %1037 = math.exp %1036 : vector<8x32xf32>
    %cst_271 = arith.constant 1.000000e+00 : f32
    %1038 = vector.broadcast %cst_271 : f32 to vector<8x32xf32>
    %1039 = arith.addf %1038, %1037 : vector<8x32xf32>
    %1040 = arith.divf %1038, %1039 : vector<8x32xf32>
    %1041 = arith.mulf %1032, %974 : vector<8x32xf32>
    %1042 = arith.mulf %1026, %1034 : vector<8x32xf32>
    %1043 = arith.addf %1041, %1042 : vector<8x32xf32>
    %1044 = math.tanh %1043 : vector<8x32xf32>
    %1045 = arith.mulf %1040, %1044 : vector<8x32xf32>
    %1046 = arith.index_cast %c14_i32 : i32 to index
    %c0_272 = arith.constant 0 : index
    %c0_273 = arith.constant 0 : index
    %1047 = vector.load %arg16[%1046, %c0_272, %c0_273] : memref<16x8x32xf32, #tpu.memory_space<vmem>>, vector<1x8x32xf32>
    %1048 = vector.shape_cast %1047 : vector<1x8x32xf32> to vector<8x32xf32>
    %1049 = vector.shape_cast %1020 : vector<8x32xf32> to vector<1x8x32xf32>
    tpu.vector_store %arg16[%1046, %c0_272, %c0_273], %1049 {strides = array<i32>} : memref<16x8x32xf32, #tpu.memory_space<vmem>>, vector<1x8x32xf32>,
    %1050 = arith.index_cast %985 : i32 to index
    %c0_274 = arith.constant 0 : index
    %c0_275 = arith.constant 0 : index
    %1051 = vector.load %arg17[%1050, %c0_274, %c0_275] : memref<16x8x32xf32, #tpu.memory_space<vmem>>, vector<1x8x32xf32>
    %1052 = vector.shape_cast %1051 : vector<1x8x32xf32> to vector<8x32xf32>
    %1053 = vector.shape_cast %1045 : vector<8x32xf32> to vector<1x8x32xf32>
    tpu.vector_store %arg17[%1050, %c0_274, %c0_275], %1053 {strides = array<i32>} : memref<16x8x32xf32, #tpu.memory_space<vmem>>, vector<1x8x32xf32>,
    %c15_i32_276 = arith.constant 15 : i32
    %c15_i32_277 = arith.constant 15 : i32
    %1054 = arith.subi %c15_i32_277, %c15_i32_276 : i32
    %1055 = arith.index_cast %c15_i32_276 : i32 to index
    %c0_278 = arith.constant 0 : index
    %c0_279 = arith.constant 0 : index
    %1056 = vector.load %arg14[%1055, %c0_278, %c0_279] : memref<16x8x128xf32, #tpu.memory_space<vmem>>, vector<1x8x128xf32>
    %1057 = vector.shape_cast %1056 : vector<1x8x128xf32> to vector<8x128xf32>
    %cst_280 = arith.constant dense<0.000000e+00> : vector<8x128xf32>
    %1058 = tpu.matmul %1020, %16, %cst_280 {dimension_numbers = #tpu.dot_dimension_numbers<[1], [0], [0], [1], [0, 0, 1, 1], [], []>} : vector<8x32xf32>, vector<32x128xf32>, vector<8x128xf32> -> vector<8x128xf32>
    %1059 = arith.addf %1057, %1058 : vector<8x128xf32>
    %1060 = arith.index_cast %1054 : i32 to index
    %c0_281 = arith.constant 0 : index
    %c0_282 = arith.constant 0 : index
    %1061 = vector.load %arg15[%1060, %c0_281, %c0_282] : memref<16x8x128xf32, #tpu.memory_space<vmem>>, vector<1x8x128xf32>
    %1062 = vector.shape_cast %1061 : vector<1x8x128xf32> to vector<8x128xf32>
    %cst_283 = arith.constant dense<0.000000e+00> : vector<8x128xf32>
    %1063 = tpu.matmul %1045, %17, %cst_283 {dimension_numbers = #tpu.dot_dimension_numbers<[1], [0], [0], [1], [0, 0, 1, 1], [], []>} : vector<8x32xf32>, vector<32x128xf32>, vector<8x128xf32> -> vector<8x128xf32>
    %1064 = arith.addf %1062, %1063 : vector<8x128xf32>
    %1065 = vector.extract_strided_slice %1059 {offsets = [0, 0], sizes = [8, 32], strides = [1, 1]} : vector<8x128xf32> to vector<8x32xf32>
    %1066 = arith.negf %1065 : vector<8x32xf32>
    %1067 = math.exp %1066 : vector<8x32xf32>
    %cst_284 = arith.constant 1.000000e+00 : f32
    %1068 = vector.broadcast %cst_284 : f32 to vector<8x32xf32>
    %1069 = arith.addf %1068, %1067 : vector<8x32xf32>
    %1070 = arith.divf %1068, %1069 : vector<8x32xf32>
    %1071 = vector.extract_strided_slice %1059 {offsets = [0, 32], sizes = [8, 32], strides = [1, 1]} : vector<8x128xf32> to vector<8x32xf32>
    %1072 = arith.negf %1071 : vector<8x32xf32>
    %1073 = math.exp %1072 : vector<8x32xf32>
    %cst_285 = arith.constant 1.000000e+00 : f32
    %1074 = vector.broadcast %cst_285 : f32 to vector<8x32xf32>
    %1075 = arith.addf %1074, %1073 : vector<8x32xf32>
    %1076 = arith.divf %1074, %1075 : vector<8x32xf32>
    %1077 = vector.extract_strided_slice %1059 {offsets = [0, 64], sizes = [8, 32], strides = [1, 1]} : vector<8x128xf32> to vector<8x32xf32>
    %1078 = math.tanh %1077 : vector<8x32xf32>
    %1079 = vector.extract_strided_slice %1059 {offsets = [0, 96], sizes = [8, 32], strides = [1, 1]} : vector<8x128xf32> to vector<8x32xf32>
    %1080 = arith.negf %1079 : vector<8x32xf32>
    %1081 = math.exp %1080 : vector<8x32xf32>
    %cst_286 = arith.constant 1.000000e+00 : f32
    %1082 = vector.broadcast %cst_286 : f32 to vector<8x32xf32>
    %1083 = arith.addf %1082, %1081 : vector<8x32xf32>
    %1084 = arith.divf %1082, %1083 : vector<8x32xf32>
    %1085 = arith.mulf %1076, %1018 : vector<8x32xf32>
    %1086 = arith.mulf %1070, %1078 : vector<8x32xf32>
    %1087 = arith.addf %1085, %1086 : vector<8x32xf32>
    %1088 = math.tanh %1087 : vector<8x32xf32>
    %1089 = arith.mulf %1084, %1088 : vector<8x32xf32>
    %1090 = vector.extract_strided_slice %1064 {offsets = [0, 0], sizes = [8, 32], strides = [1, 1]} : vector<8x128xf32> to vector<8x32xf32>
    %1091 = arith.negf %1090 : vector<8x32xf32>
    %1092 = math.exp %1091 : vector<8x32xf32>
    %cst_287 = arith.constant 1.000000e+00 : f32
    %1093 = vector.broadcast %cst_287 : f32 to vector<8x32xf32>
    %1094 = arith.addf %1093, %1092 : vector<8x32xf32>
    %1095 = arith.divf %1093, %1094 : vector<8x32xf32>
    %1096 = vector.extract_strided_slice %1064 {offsets = [0, 32], sizes = [8, 32], strides = [1, 1]} : vector<8x128xf32> to vector<8x32xf32>
    %1097 = arith.negf %1096 : vector<8x32xf32>
    %1098 = math.exp %1097 : vector<8x32xf32>
    %cst_288 = arith.constant 1.000000e+00 : f32
    %1099 = vector.broadcast %cst_288 : f32 to vector<8x32xf32>
    %1100 = arith.addf %1099, %1098 : vector<8x32xf32>
    %1101 = arith.divf %1099, %1100 : vector<8x32xf32>
    %1102 = vector.extract_strided_slice %1064 {offsets = [0, 64], sizes = [8, 32], strides = [1, 1]} : vector<8x128xf32> to vector<8x32xf32>
    %1103 = math.tanh %1102 : vector<8x32xf32>
    %1104 = vector.extract_strided_slice %1064 {offsets = [0, 96], sizes = [8, 32], strides = [1, 1]} : vector<8x128xf32> to vector<8x32xf32>
    %1105 = arith.negf %1104 : vector<8x32xf32>
    %1106 = math.exp %1105 : vector<8x32xf32>
    %cst_289 = arith.constant 1.000000e+00 : f32
    %1107 = vector.broadcast %cst_289 : f32 to vector<8x32xf32>
    %1108 = arith.addf %1107, %1106 : vector<8x32xf32>
    %1109 = arith.divf %1107, %1108 : vector<8x32xf32>
    %1110 = arith.mulf %1101, %1043 : vector<8x32xf32>
    %1111 = arith.mulf %1095, %1103 : vector<8x32xf32>
    %1112 = arith.addf %1110, %1111 : vector<8x32xf32>
    %1113 = math.tanh %1112 : vector<8x32xf32>
    %1114 = arith.mulf %1109, %1113 : vector<8x32xf32>
    %1115 = arith.index_cast %c15_i32_276 : i32 to index
    %c0_290 = arith.constant 0 : index
    %c0_291 = arith.constant 0 : index
    %1116 = vector.load %arg16[%1115, %c0_290, %c0_291] : memref<16x8x32xf32, #tpu.memory_space<vmem>>, vector<1x8x32xf32>
    %1117 = vector.shape_cast %1116 : vector<1x8x32xf32> to vector<8x32xf32>
    %1118 = vector.shape_cast %1089 : vector<8x32xf32> to vector<1x8x32xf32>
    tpu.vector_store %arg16[%1115, %c0_290, %c0_291], %1118 {strides = array<i32>} : memref<16x8x32xf32, #tpu.memory_space<vmem>>, vector<1x8x32xf32>,
    %1119 = arith.index_cast %1054 : i32 to index
    %c0_292 = arith.constant 0 : index
    %c0_293 = arith.constant 0 : index
    %1120 = vector.load %arg17[%1119, %c0_292, %c0_293] : memref<16x8x32xf32, #tpu.memory_space<vmem>>, vector<1x8x32xf32>
    %1121 = vector.shape_cast %1120 : vector<1x8x32xf32> to vector<8x32xf32>
    %1122 = vector.shape_cast %1114 : vector<8x32xf32> to vector<1x8x32xf32>
    tpu.vector_store %arg17[%1119, %c0_292, %c0_293], %1122 {strides = array<i32>} : memref<16x8x32xf32, #tpu.memory_space<vmem>>, vector<1x8x32xf32>,
    %c16_i32 = arith.constant 16 : i32
    %c0_294 = arith.constant 0 : index
    %c0_295 = arith.constant 0 : index
    %c0_296 = arith.constant 0 : index
    %1123 = vector.load %arg16[%c0_294, %c0_295, %c0_296] : memref<16x8x32xf32, #tpu.memory_space<vmem>>, vector<16x8x32xf32>
    %1124 = vector.shape_cast %1123 : vector<16x8x32xf32> to vector<128x32xf32>
    %c0_297 = arith.constant 0 : index
    %c0_298 = arith.constant 0 : index
    %c0_299 = arith.constant 0 : index
    %1125 = vector.load %arg17[%c0_297, %c0_298, %c0_299] : memref<16x8x32xf32, #tpu.memory_space<vmem>>, vector<16x8x32xf32>
    %1126 = vector.shape_cast %1125 : vector<16x8x32xf32> to vector<128x32xf32>
    %c0_300 = arith.constant 0 : index
    %c0_301 = arith.constant 0 : index
    %1127 = vector.load %arg8[%c0_300, %c0_301] : memref<32x16xf32, #tpu.memory_space<vmem>>, vector<32x16xf32>
    %cst_302 = arith.constant dense<0.000000e+00> : vector<128x16xf32>
    %1128 = tpu.matmul %1124, %1127, %cst_302 {dimension_numbers = #tpu.dot_dimension_numbers<[1], [0], [0], [1], [0, 0, 1, 1], [], []>} : vector<128x32xf32>, vector<32x16xf32>, vector<128x16xf32> -> vector<128x16xf32>
    %c0_303 = arith.constant 0 : index
    %c0_304 = arith.constant 0 : index
    %1129 = vector.load %arg9[%c0_303, %c0_304] : memref<32x16xf32, #tpu.memory_space<vmem>>, vector<32x16xf32>
    %cst_305 = arith.constant dense<0.000000e+00> : vector<128x16xf32>
    %1130 = tpu.matmul %1126, %1129, %cst_305 {dimension_numbers = #tpu.dot_dimension_numbers<[1], [0], [0], [1], [0, 0, 1, 1], [], []>} : vector<128x32xf32>, vector<32x16xf32>, vector<128x16xf32> -> vector<128x16xf32>
    %1131 = arith.addf %1128, %1130 : vector<128x16xf32>
    %c0_306 = arith.constant 0 : index
    %c0_307 = arith.constant 0 : index
    %1132 = vector.load %arg10[%c0_306, %c0_307] : memref<1x16xf32, #tpu.memory_space<vmem>>, vector<1x16xf32>
    %1133 = vector.broadcast %1132 : vector<1x16xf32> to vector<128x16xf32>
    %1134 = arith.addf %1131, %1133 : vector<128x16xf32>
    %cst_308 = arith.constant 0.000000e+00 : f32
    %1135 = vector.broadcast %cst_308 : f32 to vector<128x16xf32>
    %1136 = arith.maximumf %1134, %1135 : vector<128x16xf32>
    %c0_309 = arith.constant 0 : index
    %c0_310 = arith.constant 0 : index
    %1137 = vector.load %arg11[%c0_309, %c0_310] : memref<16x2xf32, #tpu.memory_space<vmem>>, vector<16x2xf32>
    %cst_311 = arith.constant dense<0.000000e+00> : vector<128x2xf32>
    %1138 = tpu.matmul %1136, %1137, %cst_311 {dimension_numbers = #tpu.dot_dimension_numbers<[1], [0], [0], [1], [0, 0, 1, 1], [], []>} : vector<128x16xf32>, vector<16x2xf32>, vector<128x2xf32> -> vector<128x2xf32>
    %c0_312 = arith.constant 0 : index
    %c0_313 = arith.constant 0 : index
    %1139 = vector.load %arg12[%c0_312, %c0_313] : memref<1x2xf32, #tpu.memory_space<vmem>>, vector<1x2xf32>
    %1140 = vector.broadcast %1139 : vector<1x2xf32> to vector<128x2xf32>
    %1141 = arith.addf %1138, %1140 : vector<128x2xf32>
    %1142 = vector.shape_cast %1141 : vector<128x2xf32> to vector<16x8x2xf32>
    %c0_314 = arith.constant 0 : index
    %c0_315 = arith.constant 0 : index
    %c0_316 = arith.constant 0 : index
    %1143 = vector.load %arg13[%c0_314, %c0_315, %c0_316] : memref<16x8x2xf32, #tpu.memory_space<vmem>>, vector<16x8x2xf32>
    tpu.vector_store %arg13[%c0_314, %c0_315, %c0_316], %1142 {strides = array<i32>} : memref<16x8x2xf32, #tpu.memory_space<vmem>>, vector<16x8x2xf32>,
    return
  }
  func.func @transform_0(%arg0: i32) -> (i32, i32, i32) {
    %c0_i32 = arith.constant 0 : i32
    %c0_i32_0 = arith.constant 0 : i32
    %c0_i32_1 = arith.constant 0 : i32
    return %c0_i32, %arg0, %c0_i32_0 : i32, i32, i32
  }
  func.func @transform_1(%arg0: i32) -> (i32, i32) {
    %c0_i32 = arith.constant 0 : i32
    %c0_i32_0 = arith.constant 0 : i32
    %c0_i32_1 = arith.constant 0 : i32
    return %c0_i32, %c0_i32_0 : i32, i32
  }
  func.func @transform_2(%arg0: i32) -> (i32, i32) {
    %c0_i32 = arith.constant 0 : i32
    %c0_i32_0 = arith.constant 0 : i32
    %c0_i32_1 = arith.constant 0 : i32
    return %c0_i32, %c0_i32_0 : i32, i32
  }
  func.func @transform_3(%arg0: i32) -> (i32, i32) {
    %c0_i32 = arith.constant 0 : i32
    %c0_i32_0 = arith.constant 0 : i32
    %c0_i32_1 = arith.constant 0 : i32
    return %c0_i32, %c0_i32_0 : i32, i32
  }
  func.func @transform_4(%arg0: i32) -> (i32, i32) {
    %c0_i32 = arith.constant 0 : i32
    %c0_i32_0 = arith.constant 0 : i32
    %c0_i32_1 = arith.constant 0 : i32
    return %c0_i32, %c0_i32_0 : i32, i32
  }
  func.func @transform_5(%arg0: i32) -> (i32, i32) {
    %c0_i32 = arith.constant 0 : i32
    %c0_i32_0 = arith.constant 0 : i32
    %c0_i32_1 = arith.constant 0 : i32
    return %c0_i32, %c0_i32_0 : i32, i32
  }
  func.func @transform_6(%arg0: i32) -> (i32, i32) {
    %c0_i32 = arith.constant 0 : i32
    %c0_i32_0 = arith.constant 0 : i32
    %c0_i32_1 = arith.constant 0 : i32
    return %c0_i32, %c0_i32_0 : i32, i32
  }
  func.func @transform_7(%arg0: i32) -> (i32, i32) {
    %c0_i32 = arith.constant 0 : i32
    %c0_i32_0 = arith.constant 0 : i32
    %c0_i32_1 = arith.constant 0 : i32
    return %c0_i32, %c0_i32_0 : i32, i32
  }
  func.func @transform_8(%arg0: i32) -> (i32, i32) {
    %c0_i32 = arith.constant 0 : i32
    %c0_i32_0 = arith.constant 0 : i32
    %c0_i32_1 = arith.constant 0 : i32
    return %c0_i32, %c0_i32_0 : i32, i32
  }
  func.func @transform_9(%arg0: i32) -> (i32, i32) {
    %c0_i32 = arith.constant 0 : i32
    %c0_i32_0 = arith.constant 0 : i32
    %c0_i32_1 = arith.constant 0 : i32
    return %c0_i32, %c0_i32_0 : i32, i32
  }
  func.func @transform_10(%arg0: i32) -> (i32, i32) {
    %c0_i32 = arith.constant 0 : i32
    %c0_i32_0 = arith.constant 0 : i32
    %c0_i32_1 = arith.constant 0 : i32
    return %c0_i32, %c0_i32_0 : i32, i32
  }
  func.func @transform_11(%arg0: i32) -> (i32, i32) {
    %c0_i32 = arith.constant 0 : i32
    %c0_i32_0 = arith.constant 0 : i32
    %c0_i32_1 = arith.constant 0 : i32
    return %c0_i32, %c0_i32_0 : i32, i32
  }
  func.func @transform_12(%arg0: i32) -> (i32, i32, i32) {
    %c0_i32 = arith.constant 0 : i32
    %c0_i32_0 = arith.constant 0 : i32
    %c0_i32_1 = arith.constant 0 : i32
    return %c0_i32, %arg0, %c0_i32_0 : i32, i32, i32
  }
}

</mosaic_0001>

<llo_original>
// kernel: tpu_custom_call.1
$region0: #{tpu_custom_call.1}
  #allocation0 [shape = 'u32[]', space=smem, size = 0x4, offset = 0x4, fixed_abs, tag = 'smem constant byte address 0x4 - core index']
  #allocation1 [shape = 'u32[144,128]{1,0:T(1,128)}', space=vmem, size = 0x12000, scoped, tag = 'internal scratch']
  #allocation2 [shape = 'f32[16,8,128]{2,1,0:T(8,128)}', space=vmem, size = 0x10000, scoped, tag = 'scratch operand']
  #allocation3 [shape = 'f32[16,8,128]{2,1,0:T(8,128)}', space=vmem, size = 0x10000, scoped, tag = 'scratch operand']
  #allocation4 [shape = 'f32[16,8,32]{2,1,0:T(8,128)}', space=vmem, size = 0x10000, scoped, tag = 'scratch operand']
  #allocation5 [shape = 'f32[16,8,32]{2,1,0:T(8,128)}', space=vmem, size = 0x10000, scoped, tag = 'scratch operand']
  %s0 = inlined_call_operand.vmem [shape: f32[16,8,2], index: 0, kind: input, shape index: {}]
  %s1 = inlined_call_operand.vmem [shape: f32[2,128], index: 1, kind: input, shape index: {}]
  %s2 = inlined_call_operand.vmem [shape: f32[32,128], index: 2, kind: input, shape index: {}]
  %s3 = inlined_call_operand.vmem [shape: f32[1,128], index: 3, kind: input, shape index: {}]
  %s4 = inlined_call_operand.vmem [shape: f32[2,128], index: 4, kind: input, shape index: {}]
  %s5 = inlined_call_operand.vmem [shape: f32[32,128], index: 5, kind: input, shape index: {}]
  %s6 = inlined_call_operand.vmem [shape: f32[1,128], index: 6, kind: input, shape index: {}]
  %s7 = inlined_call_operand.vmem [shape: f32[32,16], index: 7, kind: input, shape index: {}]
  %s8 = inlined_call_operand.vmem [shape: f32[32,16], index: 8, kind: input, shape index: {}]
  %s9 = inlined_call_operand.vmem [shape: f32[1,16], index: 9, kind: input, shape index: {}]
  %s10 = inlined_call_operand.vmem [shape: f32[16,2], index: 10, kind: input, shape index: {}]
  %s11 = inlined_call_operand.vmem [shape: f32[1,2], index: 11, kind: input, shape index: {}]
  %s12 = inlined_call_operand.vmem [shape: f32[16,8,2], index: 12, kind: output, shape index: {}]
  %s13 = sld [smem:[#allocation0]]
  $region58: #{tpu_custom_call.1} parent=0
    _
  %s15 = ssub.s32 1, %s13
  %s16 = scalar_select 0, %s15, %s13
  // Predicated region
  $region2: #{tpu_custom_call.1} parent=0 // pred_check
    _
  $region3: #{tpu_custom_call.1} parent=0 // pred_check_branch
    %18 = sbr.rel (0) target = $region5
  $region4: #{tpu_custom_call.1} parent=0 // pred_region
    _
  $region5: #{tpu_custom_call.1} parent=0 // pred_fallthru
    _
  // Predicated region
  $region6: #{tpu_custom_call.1} parent=0 // pred_check
    _
  $region7: #{tpu_custom_call.1} parent=0 // pred_check_branch
    %20 = sbr.rel (0) target = $region9
  $region8: #{tpu_custom_call.1} parent=0 // pred_region
    _
  $region9: #{tpu_custom_call.1} parent=0 // pred_fallthru
    _
  // Predicated region
  $region10: #{tpu_custom_call.1} parent=0 // pred_check
    _
  $region11: #{tpu_custom_call.1} parent=0 // pred_check_branch
    %22 = sbr.rel (0) target = $region13
  $region12: #{tpu_custom_call.1} parent=0 // pred_region
    _
  $region13: #{tpu_custom_call.1} parent=0 // pred_fallthru
    _
  // Predicated region
  $region14: #{tpu_custom_call.1} parent=0 // pred_check
    _
  $region15: #{tpu_custom_call.1} parent=0 // pred_check_branch
    %24 = sbr.rel (0) target = $region17
  $region16: #{tpu_custom_call.1} parent=0 // pred_region
    _
  $region17: #{tpu_custom_call.1} parent=0 // pred_fallthru
    _
  // Predicated region
  $region18: #{tpu_custom_call.1} parent=0 // pred_check
    _
  $region19: #{tpu_custom_call.1} parent=0 // pred_check_branch
    %26 = sbr.rel (0) target = $region21
  $region20: #{tpu_custom_call.1} parent=0 // pred_region
    _
  $region21: #{tpu_custom_call.1} parent=0 // pred_fallthru
    _
  // Predicated region
  $region22: #{tpu_custom_call.1} parent=0 // pred_check
    _
  $region23: #{tpu_custom_call.1} parent=0 // pred_check_branch
    %28 = sbr.rel (0) target = $region25
  $region24: #{tpu_custom_call.1} parent=0 // pred_region
    _
  $region25: #{tpu_custom_call.1} parent=0 // pred_fallthru
    _
  // Predicated region
  $region26: #{tpu_custom_call.1} parent=0 // pred_check
    _
  $region27: #{tpu_custom_call.1} parent=0 // pred_check_branch
    %30 = sbr.rel (0) target = $region29
  $region28: #{tpu_custom_call.1} parent=0 // pred_region
    _
  $region29: #{tpu_custom_call.1} parent=0 // pred_fallthru
    _
  // Predicated region
  $region30: #{tpu_custom_call.1} parent=0 // pred_check
    _
  $region31: #{tpu_custom_call.1} parent=0 // pred_check_branch
    %32 = sbr.rel (0) target = $region33
  $region32: #{tpu_custom_call.1} parent=0 // pred_region
    _
  $region33: #{tpu_custom_call.1} parent=0 // pred_fallthru
    _
  // Predicated region
  $region34: #{tpu_custom_call.1} parent=0 // pred_check
    _
  $region35: #{tpu_custom_call.1} parent=0 // pred_check_branch
    %34 = sbr.rel (0) target = $region37
  $region36: #{tpu_custom_call.1} parent=0 // pred_region
    _
  $region37: #{tpu_custom_call.1} parent=0 // pred_fallthru
    _
  // Predicated region
  $region38: #{tpu_custom_call.1} parent=0 // pred_check
    _
  $region39: #{tpu_custom_call.1} parent=0 // pred_check_branch
    %36 = sbr.rel (0) target = $region41
  $region40: #{tpu_custom_call.1} parent=0 // pred_region
    _
  $region41: #{tpu_custom_call.1} parent=0 // pred_fallthru
    _
  // Predicated region
  $region42: #{tpu_custom_call.1} parent=0 // pred_check
    _
  $region43: #{tpu_custom_call.1} parent=0 // pred_check_branch
    %38 = sbr.rel (0) target = $region45
  $region44: #{tpu_custom_call.1} parent=0 // pred_region
    _
  $region45: #{tpu_custom_call.1} parent=0 // pred_fallthru
    _
  // Predicated region
  $region46: #{tpu_custom_call.1} parent=0 // pred_check
    _
  $region47: #{tpu_custom_call.1} parent=0 // pred_check_branch
    %40 = sbr.rel (0) target = $region49
  $region48: #{tpu_custom_call.1} parent=0 // pred_region
    _
  $region49: #{tpu_custom_call.1} parent=0 // pred_fallthru
    _
  %v41 = vld [vmem:[%s0] sm:$0xff]
  %v42 = vld [vmem:[%s0 + $0x8] sm:$0xff]
  %v43 = vld [vmem:[%s0 + $0x10] sm:$0xff]
  %v44 = vld [vmem:[%s0 + $0x18] sm:$0xff]
  %v45 = vld [vmem:[%s0 + $0x20] sm:$0xff]
  %v46 = vld [vmem:[%s0 + $0x28] sm:$0xff]
  %v47 = vld [vmem:[%s0 + $0x30] sm:$0xff]
  %v48 = vld [vmem:[%s0 + $0x38] sm:$0xff]
  %v49 = vld [vmem:[%s0 + $0x40] sm:$0xff]
  %v50 = vld [vmem:[%s0 + $0x48] sm:$0xff]
  %v51 = vld [vmem:[%s0 + $0x50] sm:$0xff]
  %v52 = vld [vmem:[%s0 + $0x58] sm:$0xff]
  %v53 = vld [vmem:[%s0 + $0x60] sm:$0xff]
  %v54 = vld [vmem:[%s0 + $0x68] sm:$0xff]
  %v55 = vld [vmem:[%s0 + $0x70] sm:$0xff]
  %v56 = vld [vmem:[%s0 + $0x78] sm:$0xff]
  %v57 = vld [vmem:[%s1] sm:$0x3]
  %v58 = vld [vmem:[%s3] sm:$0x1]
  %v60 = vlaneseq
  %v61 = vshrl.u32 %v60, 7
  %v62 = vsub.s32 0, %v61
  %v63 = vrot.slane %v58, %v62
  %vm65 = vcmask 15360
  %v67 = vsel %vm65, %v41, 0
  %v70 = vsel %vm65, %v42, 0
  %v73 = vsel %vm65, %v43, 0
  %v76 = vsel %vm65, %v44, 0
  %v79 = vsel %vm65, %v45, 0
  %v82 = vsel %vm65, %v46, 0
  %v85 = vsel %vm65, %v47, 0
  %v88 = vsel %vm65, %v48, 0
  %v91 = vsel %vm65, %v49, 0
  %v94 = vsel %vm65, %v50, 0
  %v97 = vsel %vm65, %v51, 0
  %v100 = vsel %vm65, %v52, 0
  %v103 = vsel %vm65, %v53, 0
  %v106 = vsel %vm65, %v54, 0
  %v109 = vsel %vm65, %v55, 0
  %v112 = vsel %vm65, %v56, 0
  %vm114 = vcmask 1041408
  %v116 = vsel %vm114, %v57, 0
  %118 = vmatprep.subr.mxu0 0.0
  %119 = vmatpush1.msra.mxu0 %v116
  %120 = vmatprep.subr.mxu0 0.0
  %121 = vmatpush1.msra.mxu0 0.0
  %122 = vmatprep.subr.mxu0 0.0
  %123 = vmatpush1.msra.mxu0 0.0
  %124 = vmatprep.subr.mxu0 0.0
  %125 = vmatpush1.msra.mxu0 0.0
  %126 = vmatprep.subr.mxu0 0.0
  %127 = vmatpush1.msra.mxu0 0.0
  %128 = vmatprep.subr.mxu0 0.0
  %129 = vmatpush1.msra.mxu0 0.0
  %130 = vmatprep.subr.mxu0 0.0
  %131 = vmatpush1.msra.mxu0 0.0
  %132 = vmatprep.subr.mxu0 0.0
  %133 = vmatpush1.msra.mxu0 0.0
  %134 = vmatprep.subr.mxu0 0.0
  %135 = vmatpush1.msra.mxu0 0.0
  %136 = vmatprep.subr.mxu0 0.0
  %137 = vmatpush1.msra.mxu0 0.0
  %138 = vmatprep.subr.mxu0 0.0
  %139 = vmatpush1.msra.mxu0 0.0
  %140 = vmatprep.subr.mxu0 0.0
  %141 = vmatpush1.msra.mxu0 0.0
  %142 = vmatprep.subr.mxu0 0.0
  %143 = vmatpush1.msra.mxu0 0.0
  %144 = vmatprep.subr.mxu0 0.0
  %145 = vmatpush1.msra.mxu0 0.0
  %146 = vmatprep.subr.mxu0 0.0
  %147 = vmatpush1.msra.mxu0 0.0
  %148 = vmatprep.subr.mxu0 0.0
  %149 = vmatpush1.msra.mxu0 0.0
  %150 = vmatprep.subr.mxu0 0.0
  %151 = vmatpush1.msra.mxu0 0.0
  %152 = vmatprep.subr.mxu0 0.0
  %153 = vmatpush1.msra.mxu0 0.0
  %154 = vmatprep.subr.mxu0 0.0
  %155 = vmatpush1.msra.mxu0 0.0
  %156 = vmatprep.subr.mxu0 0.0
  %157 = vmatpush1.msra.mxu0 0.0
  %158 = vmatprep.subr.mxu0 0.0
  %159 = vmatpush1.msra.mxu0 0.0
  %160 = vmatprep.subr.mxu0 0.0
  %161 = vmatpush1.msra.mxu0 0.0
  %162 = vmatprep.subr.mxu0 0.0
  %163 = vmatpush1.msra.mxu0 0.0
  %164 = vmatprep.subr.mxu0 0.0
  %165 = vmatpush1.msra.mxu0 0.0
  %166 = vmatprep.subr.mxu0 0.0
  %167 = vmatpush1.msra.mxu0 0.0
  %168 = vmatprep.subr.mxu0 0.0
  %169 = vmatpush1.msra.mxu0 0.0
  %170 = vmatprep.subr.mxu0 0.0
  %171 = vmatpush1.msra.mxu0 0.0
  %172 = vmatprep.subr.mxu0 0.0
  %173 = vmatpush1.msra.mxu0 0.0
  %174 = vmatprep.subr.mxu0 0.0
  %175 = vmatpush1.msra.mxu0 0.0
  %176 = vmatprep.subr.mxu0 0.0
  %177 = vmatpush1.msra.mxu0 0.0
  %178 = vmatprep.subr.mxu0 0.0
  %179 = vmatpush1.msra.mxu0 0.0
  %180 = vmatprep.subr.mxu0 0.0
  %181 = vmatpush1.msra.mxu0 0.0
  %182 = vmatprep.mubr.f32.mxu0 0.0
  %183 = vmatmul.mubr.f32.gmra.mrb[0].mxu0 %v67
  %v184 = vpop.f32.mrb[0].mxu0
  %v185 = vadd.f32 %v63, %v184
  %v186 = vpop.f32.mrb[0].mxu0
  %187 = vmatprep.mubr.f32.mxu0 0.0
  %188 = vmatmul.mubr.f32.gmra.mrb[0].mxu0 %v70
  %v189 = vpop.f32.mrb[0].mxu0
  %v190 = vadd.f32 %v63, %v189
  %v191 = vpop.f32.mrb[0].mxu0
  %192 = vmatprep.mubr.f32.mxu0 0.0
  %193 = vmatmul.mubr.f32.gmra.mrb[0].mxu0 %v73
  %v194 = vpop.f32.mrb[0].mxu0
  %v195 = vadd.f32 %v63, %v194
  %v196 = vpop.f32.mrb[0].mxu0
  %197 = vmatprep.mubr.f32.mxu0 0.0
  %198 = vmatmul.mubr.f32.gmra.mrb[0].mxu0 %v76
  %v199 = vpop.f32.mrb[0].mxu0
  %v200 = vadd.f32 %v63, %v199
  %v201 = vpop.f32.mrb[0].mxu0
  %202 = vmatprep.mubr.f32.mxu0 0.0
  %203 = vmatmul.mubr.f32.gmra.mrb[0].mxu0 %v79
  %v204 = vpop.f32.mrb[0].mxu0
  %v205 = vadd.f32 %v63, %v204
  %v206 = vpop.f32.mrb[0].mxu0
  %207 = vmatprep.mubr.f32.mxu0 0.0
  %208 = vmatmul.mubr.f32.gmra.mrb[0].mxu0 %v82
  %v209 = vpop.f32.mrb[0].mxu0
  %v210 = vadd.f32 %v63, %v209
  %v211 = vpop.f32.mrb[0].mxu0
  %212 = vmatprep.mubr.f32.mxu0 0.0
  %213 = vmatmul.mubr.f32.gmra.mrb[0].mxu0 %v85
  %v214 = vpop.f32.mrb[0].mxu0
  %v215 = vadd.f32 %v63, %v214
  %v216 = vpop.f32.mrb[0].mxu0
  %217 = vmatprep.mubr.f32.mxu0 0.0
  %218 = vmatmul.mubr.f32.gmra.mrb[0].mxu0 %v88
  %v219 = vpop.f32.mrb[0].mxu0
  %v220 = vadd.f32 %v63, %v219
  %v221 = vpop.f32.mrb[0].mxu0
  %222 = vmatprep.mubr.f32.mxu0 0.0
  %223 = vmatmul.mubr.f32.gmra.mrb[0].mxu0 %v91
  %v224 = vpop.f32.mrb[0].mxu0
  %v225 = vadd.f32 %v63, %v224
  %v226 = vpop.f32.mrb[0].mxu0
  %227 = vmatprep.mubr.f32.mxu0 0.0
  %228 = vmatmul.mubr.f32.gmra.mrb[0].mxu0 %v94
  %v229 = vpop.f32.mrb[0].mxu0
  %v230 = vadd.f32 %v63, %v229
  %v231 = vpop.f32.mrb[0].mxu0
  %232 = vmatprep.mubr.f32.mxu0 0.0
  %233 = vmatmul.mubr.f32.gmra.mrb[0].mxu0 %v97
  %v234 = vpop.f32.mrb[0].mxu0
  %v235 = vadd.f32 %v63, %v234
  %v236 = vpop.f32.mrb[0].mxu0
  %237 = vmatprep.mubr.f32.mxu0 0.0
  %238 = vmatmul.mubr.f32.gmra.mrb[0].mxu0 %v100
  %v239 = vpop.f32.mrb[0].mxu0
  %v240 = vadd.f32 %v63, %v239
  %v241 = vpop.f32.mrb[0].mxu0
  %242 = vmatprep.mubr.f32.mxu0 0.0
  %243 = vmatmul.mubr.f32.gmra.mrb[0].mxu0 %v103
  %v244 = vpop.f32.mrb[0].mxu0
  %v245 = vadd.f32 %v63, %v244
  %v246 = vpop.f32.mrb[0].mxu0
  %247 = vmatprep.mubr.f32.mxu0 0.0
  %248 = vmatmul.mubr.f32.gmra.mrb[0].mxu0 %v106
  %v249 = vpop.f32.mrb[0].mxu0
  %v250 = vadd.f32 %v63, %v249
  %v251 = vpop.f32.mrb[0].mxu0
  %252 = vmatprep.mubr.f32.mxu0 0.0
  %253 = vmatmul.mubr.f32.gmra.mrb[0].mxu0 %v109
  %v254 = vpop.f32.mrb[0].mxu0
  %v255 = vadd.f32 %v63, %v254
  %v256 = vpop.f32.mrb[0].mxu0
  %257 = vmatprep.mubr.f32.mxu0 0.0
  %258 = vmatmul.mubr.f32.gmra.mrb[0].mxu0 %v112
  %v259 = vpop.f32.mrb[0].mxu0
  %v260 = vadd.f32 %v63, %v259
  %v261 = vpop.f32.mrb[0].mxu0
  %262 = vdwg.mxu0
  %263 = vst [vmem:[#allocation2] sm:$0xff] %v185
  %264 = vst [vmem:[#allocation2 + $0x8] sm:$0xff] %v190
  %265 = vst [vmem:[#allocation2 + $0x10] sm:$0xff] %v195
  %266 = vst [vmem:[#allocation2 + $0x18] sm:$0xff] %v200
  %267 = vst [vmem:[#allocation2 + $0x20] sm:$0xff] %v205
  %268 = vst [vmem:[#allocation2 + $0x28] sm:$0xff] %v210
  %269 = vst [vmem:[#allocation2 + $0x30] sm:$0xff] %v215
  %270 = vst [vmem:[#allocation2 + $0x38] sm:$0xff] %v220
  %271 = vst [vmem:[#allocation2 + $0x40] sm:$0xff] %v225
  %272 = vst [vmem:[#allocation2 + $0x48] sm:$0xff] %v230
  %273 = vst [vmem:[#allocation2 + $0x50] sm:$0xff] %v235
  %274 = vst [vmem:[#allocation2 + $0x58] sm:$0xff] %v240
  %275 = vst [vmem:[#allocation2 + $0x60] sm:$0xff] %v245
  %276 = vst [vmem:[#allocation2 + $0x68] sm:$0xff] %v250
  %277 = vst [vmem:[#allocation2 + $0x70] sm:$0xff] %v255
  %278 = vst [vmem:[#allocation2 + $0x78] sm:$0xff] %v260
  %v279 = vld [vmem:[%s4] sm:$0x3]
  %v280 = vld [vmem:[%s6] sm:$0x1]
  %v282 = vlaneseq
  %v283 = vshrl.u32 %v282, 7
  %v284 = vsub.s32 0, %v283
  %v285 = vrot.slane %v280, %v284
  %v288 = vsel %vm114, %v279, 0
  %290 = vmatprep.subr.mxu0 0.0
  %291 = vmatpush1.msra.mxu0 %v288
  %292 = vmatprep.subr.mxu0 0.0
  %293 = vmatpush1.msra.mxu0 0.0
  %294 = vmatprep.subr.mxu0 0.0
  %295 = vmatpush1.msra.mxu0 0.0
  %296 = vmatprep.subr.mxu0 0.0
  %297 = vmatpush1.msra.mxu0 0.0
  %298 = vmatprep.subr.mxu0 0.0
  %299 = vmatpush1.msra.mxu0 0.0
  %300 = vmatprep.subr.mxu0 0.0
  %301 = vmatpush1.msra.mxu0 0.0
  %302 = vmatprep.subr.mxu0 0.0
  %303 = vmatpush1.msra.mxu0 0.0
  %304 = vmatprep.subr.mxu0 0.0
  %305 = vmatpush1.msra.mxu0 0.0
  %306 = vmatprep.subr.mxu0 0.0
  %307 = vmatpush1.msra.mxu0 0.0
  %308 = vmatprep.subr.mxu0 0.0
  %309 = vmatpush1.msra.mxu0 0.0
  %310 = vmatprep.subr.mxu0 0.0
  %311 = vmatpush1.msra.mxu0 0.0
  %312 = vmatprep.subr.mxu0 0.0
  %313 = vmatpush1.msra.mxu0 0.0
  %314 = vmatprep.subr.mxu0 0.0
  %315 = vmatpush1.msra.mxu0 0.0
  %316 = vmatprep.subr.mxu0 0.0
  %317 = vmatpush1.msra.mxu0 0.0
  %318 = vmatprep.subr.mxu0 0.0
  %319 = vmatpush1.msra.mxu0 0.0
  %320 = vmatprep.subr.mxu0 0.0
  %321 = vmatpush1.msra.mxu0 0.0
  %322 = vmatprep.subr.mxu0 0.0
  %323 = vmatpush1.msra.mxu0 0.0
  %324 = vmatprep.subr.mxu0 0.0
  %325 = vmatpush1.msra.mxu0 0.0
  %326 = vmatprep.subr.mxu0 0.0
  %327 = vmatpush1.msra.mxu0 0.0
  %328 = vmatprep.subr.mxu0 0.0
  %329 = vmatpush1.msra.mxu0 0.0
  %330 = vmatprep.subr.mxu0 0.0
  %331 = vmatpush1.msra.mxu0 0.0
  %332 = vmatprep.subr.mxu0 0.0
  %333 = vmatpush1.msra.mxu0 0.0
  %334 = vmatprep.subr.mxu0 0.0
  %335 = vmatpush1.msra.mxu0 0.0
  %336 = vmatprep.subr.mxu0 0.0
  %337 = vmatpush1.msra.mxu0 0.0
  %338 = vmatprep.subr.mxu0 0.0
  %339 = vmatpush1.msra.mxu0 0.0
  %340 = vmatprep.subr.mxu0 0.0
  %341 = vmatpush1.msra.mxu0 0.0
  %342 = vmatprep.subr.mxu0 0.0
  %343 = vmatpush1.msra.mxu0 0.0
  %344 = vmatprep.subr.mxu0 0.0
  %345 = vmatpush1.msra.mxu0 0.0
  %346 = vmatprep.subr.mxu0 0.0
  %347 = vmatpush1.msra.mxu0 0.0
  %348 = vmatprep.subr.mxu0 0.0
  %349 = vmatpush1.msra.mxu0 0.0
  %350 = vmatprep.subr.mxu0 0.0
  %351 = vmatpush1.msra.mxu0 0.0
  %352 = vmatprep.subr.mxu0 0.0
  %353 = vmatpush1.msra.mxu0 0.0
  %354 = vmatprep.mubr.f32.mxu0 0.0
  %355 = vmatmul.mubr.f32.gmra.mrb[0].mxu0 %v67
  %v356 = vpop.f32.mrb[0].mxu0
  %v357 = vadd.f32 %v285, %v356
  %v358 = vpop.f32.mrb[0].mxu0
  %359 = vmatprep.mubr.f32.mxu0 0.0
  %360 = vmatmul.mubr.f32.gmra.mrb[0].mxu0 %v70
  %v361 = vpop.f32.mrb[0].mxu0
  %v362 = vadd.f32 %v285, %v361
  %v363 = vpop.f32.mrb[0].mxu0
  %364 = vmatprep.mubr.f32.mxu0 0.0
  %365 = vmatmul.mubr.f32.gmra.mrb[0].mxu0 %v73
  %v366 = vpop.f32.mrb[0].mxu0
  %v367 = vadd.f32 %v285, %v366
  %v368 = vpop.f32.mrb[0].mxu0
  %369 = vmatprep.mubr.f32.mxu0 0.0
  %370 = vmatmul.mubr.f32.gmra.mrb[0].mxu0 %v76
  %v371 = vpop.f32.mrb[0].mxu0
  %v372 = vadd.f32 %v285, %v371
  %v373 = vpop.f32.mrb[0].mxu0
  %374 = vmatprep.mubr.f32.mxu0 0.0
  %375 = vmatmul.mubr.f32.gmra.mrb[0].mxu0 %v79
  %v376 = vpop.f32.mrb[0].mxu0
  %v377 = vadd.f32 %v285, %v376
  %v378 = vpop.f32.mrb[0].mxu0
  %379 = vmatprep.mubr.f32.mxu0 0.0
  %380 = vmatmul.mubr.f32.gmra.mrb[0].mxu0 %v82
  %v381 = vpop.f32.mrb[0].mxu0
  %v382 = vadd.f32 %v285, %v381
  %v383 = vpop.f32.mrb[0].mxu0
  %384 = vmatprep.mubr.f32.mxu0 0.0
  %385 = vmatmul.mubr.f32.gmra.mrb[0].mxu0 %v85
  %v386 = vpop.f32.mrb[0].mxu0
  %v387 = vadd.f32 %v285, %v386
  %v388 = vpop.f32.mrb[0].mxu0
  %389 = vmatprep.mubr.f32.mxu0 0.0
  %390 = vmatmul.mubr.f32.gmra.mrb[0].mxu0 %v88
  %v391 = vpop.f32.mrb[0].mxu0
  %v392 = vadd.f32 %v285, %v391
  %v393 = vpop.f32.mrb[0].mxu0
  %394 = vmatprep.mubr.f32.mxu0 0.0
  %395 = vmatmul.mubr.f32.gmra.mrb[0].mxu0 %v91
  %v396 = vpop.f32.mrb[0].mxu0
  %v397 = vadd.f32 %v285, %v396
  %v398 = vpop.f32.mrb[0].mxu0
  %399 = vmatprep.mubr.f32.mxu0 0.0
  %400 = vmatmul.mubr.f32.gmra.mrb[0].mxu0 %v94
  %v401 = vpop.f32.mrb[0].mxu0
  %v402 = vadd.f32 %v285, %v401
  %v403 = vpop.f32.mrb[0].mxu0
  %404 = vmatprep.mubr.f32.mxu0 0.0
  %405 = vmatmul.mubr.f32.gmra.mrb[0].mxu0 %v97
  %v406 = vpop.f32.mrb[0].mxu0
  %v407 = vadd.f32 %v285, %v406
  %v408 = vpop.f32.mrb[0].mxu0
  %409 = vmatprep.mubr.f32.mxu0 0.0
  %410 = vmatmul.mubr.f32.gmra.mrb[0].mxu0 %v100
  %v411 = vpop.f32.mrb[0].mxu0
  %v412 = vadd.f32 %v285, %v411
  %v413 = vpop.f32.mrb[0].mxu0
  %414 = vmatprep.mubr.f32.mxu0 0.0
  %415 = vmatmul.mubr.f32.gmra.mrb[0].mxu0 %v103
  %v416 = vpop.f32.mrb[0].mxu0
  %v417 = vadd.f32 %v285, %v416
  %v418 = vpop.f32.mrb[0].mxu0
  %419 = vmatprep.mubr.f32.mxu0 0.0
  %420 = vmatmul.mubr.f32.gmra.mrb[0].mxu0 %v106
  %v421 = vpop.f32.mrb[0].mxu0
  %v422 = vadd.f32 %v285, %v421
  %v423 = vpop.f32.mrb[0].mxu0
  %424 = vmatprep.mubr.f32.mxu0 0.0
  %425 = vmatmul.mubr.f32.gmra.mrb[0].mxu0 %v109
  %v426 = vpop.f32.mrb[0].mxu0
  %v427 = vadd.f32 %v285, %v426
  %v428 = vpop.f32.mrb[0].mxu0
  %429 = vmatprep.mubr.f32.mxu0 0.0
  %430 = vmatmul.mubr.f32.gmra.mrb[0].mxu0 %v112
  %v431 = vpop.f32.mrb[0].mxu0
  %v432 = vadd.f32 %v285, %v431
  %v433 = vpop.f32.mrb[0].mxu0
  %434 = vdwg.mxu0
  %435 = vst [vmem:[#allocation3] sm:$0xff] %v357
  %436 = vst [vmem:[#allocation3 + $0x8] sm:$0xff] %v362
  %437 = vst [vmem:[#allocation3 + $0x10] sm:$0xff] %v367
  %438 = vst [vmem:[#allocation3 + $0x18] sm:$0xff] %v372
  %439 = vst [vmem:[#allocation3 + $0x20] sm:$0xff] %v377
  %440 = vst [vmem:[#allocation3 + $0x28] sm:$0xff] %v382
  %441 = vst [vmem:[#allocation3 + $0x30] sm:$0xff] %v387
  %442 = vst [vmem:[#allocation3 + $0x38] sm:$0xff] %v392
  %443 = vst [vmem:[#allocation3 + $0x40] sm:$0xff] %v397
  %444 = vst [vmem:[#allocation3 + $0x48] sm:$0xff] %v402
  %445 = vst [vmem:[#allocation3 + $0x50] sm:$0xff] %v407
  %446 = vst [vmem:[#allocation3 + $0x58] sm:$0xff] %v412
  %447 = vst [vmem:[#allocation3 + $0x60] sm:$0xff] %v417
  %448 = vst [vmem:[#allocation3 + $0x68] sm:$0xff] %v422
  %449 = vst [vmem:[#allocation3 + $0x70] sm:$0xff] %v427
  %450 = vst [vmem:[#allocation3 + $0x78] sm:$0xff] %v432
  %v451 = vld [vmem:[%s2] sm:$0xff]
  %v452 = vld [vmem:[%s2 + $0x8] sm:$0xff]
  %v453 = vld [vmem:[%s2 + $0x10] sm:$0xff]
  %v454 = vld [vmem:[%s2 + $0x18] sm:$0xff]
  %v455 = vld [vmem:[%s5] sm:$0xff]
  %v456 = vld [vmem:[%s5 + $0x8] sm:$0xff]
  %v457 = vld [vmem:[%s5 + $0x10] sm:$0xff]
  %v458 = vld [vmem:[%s5 + $0x18] sm:$0xff]
  %v459 = vld [vmem:[#allocation2] sm:$0xff]
  %vm460 = vcmask 261120
  %v462 = vsel %vm460, 0.0, 0
  %464 = vmatprep.subr.mxu0 0.0
  %465 = vmatpush1.msra.mxu0 %v451
  %466 = vmatprep.subr.mxu0 0.0
  %467 = vmatpush1.msra.mxu0 %v452
  %468 = vmatprep.subr.mxu0 0.0
  %469 = vmatpush1.msra.mxu0 %v453
  %470 = vmatprep.subr.mxu0 0.0
  %471 = vmatpush1.msra.mxu0 %v454
  %472 = vmatprep.subr.mxu0 0.0
  %473 = vmatpush1.msra.mxu0 0.0
  %474 = vmatprep.subr.mxu0 0.0
  %475 = vmatpush1.msra.mxu0 0.0
  %476 = vmatprep.subr.mxu0 0.0
  %477 = vmatpush1.msra.mxu0 0.0
  %478 = vmatprep.subr.mxu0 0.0
  %479 = vmatpush1.msra.mxu0 0.0
  %480 = vmatprep.subr.mxu0 0.0
  %481 = vmatpush1.msra.mxu0 0.0
  %482 = vmatprep.subr.mxu0 0.0
  %483 = vmatpush1.msra.mxu0 0.0
  %484 = vmatprep.subr.mxu0 0.0
  %485 = vmatpush1.msra.mxu0 0.0
  %486 = vmatprep.subr.mxu0 0.0
  %487 = vmatpush1.msra.mxu0 0.0
  %488 = vmatprep.subr.mxu0 0.0
  %489 = vmatpush1.msra.mxu0 0.0
  %490 = vmatprep.subr.mxu0 0.0
  %491 = vmatpush1.msra.mxu0 0.0
  %492 = vmatprep.subr.mxu0 0.0
  %493 = vmatpush1.msra.mxu0 0.0
  %494 = vmatprep.subr.mxu0 0.0
  %495 = vmatpush1.msra.mxu0 0.0
  %496 = vmatprep.subr.mxu0 0.0
  %497 = vmatpush1.msra.mxu0 0.0
  %498 = vmatprep.subr.mxu0 0.0
  %499 = vmatpush1.msra.mxu0 0.0
  %500 = vmatprep.subr.mxu0 0.0
  %501 = vmatpush1.msra.mxu0 0.0
  %502 = vmatprep.subr.mxu0 0.0
  %503 = vmatpush1.msra.mxu0 0.0
  %504 = vmatprep.subr.mxu0 0.0
  %505 = vmatpush1.msra.mxu0 0.0
  %506 = vmatprep.subr.mxu0 0.0
  %507 = vmatpush1.msra.mxu0 0.0
  %508 = vmatprep.subr.mxu0 0.0
  %509 = vmatpush1.msra.mxu0 0.0
  %510 = vmatprep.subr.mxu0 0.0
  %511 = vmatpush1.msra.mxu0 0.0
  %512 = vmatprep.subr.mxu0 0.0
  %513 = vmatpush1.msra.mxu0 0.0
  %514 = vmatprep.subr.mxu0 0.0
  %515 = vmatpush1.msra.mxu0 0.0
  %516 = vmatprep.subr.mxu0 0.0
  %517 = vmatpush1.msra.mxu0 0.0
  %518 = vmatprep.subr.mxu0 0.0
  %519 = vmatpush1.msra.mxu0 0.0
  %520 = vmatprep.subr.mxu0 0.0
  %521 = vmatpush1.msra.mxu0 0.0
  %522 = vmatprep.subr.mxu0 0.0
  %523 = vmatpush1.msra.mxu0 0.0
  %524 = vmatprep.subr.mxu0 0.0
  %525 = vmatpush1.msra.mxu0 0.0
  %526 = vmatprep.subr.mxu0 0.0
  %527 = vmatpush1.msra.mxu0 0.0
  %528 = vmatprep.mubr.f32.mxu0 0.0
  %529 = vmatmul.mubr.f32.gmra.mrb[0].mxu0 %v462
  %v530 = vpop.f32.mrb[0].mxu0
  %v531 = vadd.f32 0.0, %v530
  %v532 = vpop.f32.mrb[0].mxu0
  %533 = vdwg.mxu0
  %v534 = vadd.f32 %v459, %v531
  %s535 = scalar_lea.vmem [#allocation3], 120
  %v536 = vld [vmem:[%s535] sm:$0xff]
  %537 = vmatprep.subr.mxu0 0.0
  %538 = vmatpush1.msra.mxu0 %v455
  %539 = vmatprep.subr.mxu0 0.0
  %540 = vmatpush1.msra.mxu0 %v456
  %541 = vmatprep.subr.mxu0 0.0
  %542 = vmatpush1.msra.mxu0 %v457
  %543 = vmatprep.subr.mxu0 0.0
  %544 = vmatpush1.msra.mxu0 %v458
  %545 = vmatprep.subr.mxu0 0.0
  %546 = vmatpush1.msra.mxu0 0.0
  %547 = vmatprep.subr.mxu0 0.0
  %548 = vmatpush1.msra.mxu0 0.0
  %549 = vmatprep.subr.mxu0 0.0
  %550 = vmatpush1.msra.mxu0 0.0
  %551 = vmatprep.subr.mxu0 0.0
  %552 = vmatpush1.msra.mxu0 0.0
  %553 = vmatprep.subr.mxu0 0.0
  %554 = vmatpush1.msra.mxu0 0.0
  %555 = vmatprep.subr.mxu0 0.0
  %556 = vmatpush1.msra.mxu0 0.0
  %557 = vmatprep.subr.mxu0 0.0
  %558 = vmatpush1.msra.mxu0 0.0
  %559 = vmatprep.subr.mxu0 0.0
  %560 = vmatpush1.msra.mxu0 0.0
  %561 = vmatprep.subr.mxu0 0.0
  %562 = vmatpush1.msra.mxu0 0.0
  %563 = vmatprep.subr.mxu0 0.0
  %564 = vmatpush1.msra.mxu0 0.0
  %565 = vmatprep.subr.mxu0 0.0
  %566 = vmatpush1.msra.mxu0 0.0
  %567 = vmatprep.subr.mxu0 0.0
  %568 = vmatpush1.msra.mxu0 0.0
  %569 = vmatprep.subr.mxu0 0.0
  %570 = vmatpush1.msra.mxu0 0.0
  %571 = vmatprep.subr.mxu0 0.0
  %572 = vmatpush1.msra.mxu0 0.0
  %573 = vmatprep.subr.mxu0 0.0
  %574 = vmatpush1.msra.mxu0 0.0
  %575 = vmatprep.subr.mxu0 0.0
  %576 = vmatpush1.msra.mxu0 0.0
  %577 = vmatprep.subr.mxu0 0.0
  %578 = vmatpush1.msra.mxu0 0.0
  %579 = vmatprep.subr.mxu0 0.0
  %580 = vmatpush1.msra.mxu0 0.0
  %581 = vmatprep.subr.mxu0 0.0
  %582 = vmatpush1.msra.mxu0 0.0
  %583 = vmatprep.subr.mxu0 0.0
  %584 = vmatpush1.msra.mxu0 0.0
  %585 = vmatprep.subr.mxu0 0.0
  %586 = vmatpush1.msra.mxu0 0.0
  %587 = vmatprep.subr.mxu0 0.0
  %588 = vmatpush1.msra.mxu0 0.0
  %589 = vmatprep.subr.mxu0 0.0
  %590 = vmatpush1.msra.mxu0 0.0
  %591 = vmatprep.subr.mxu0 0.0
  %592 = vmatpush1.msra.mxu0 0.0
  %593 = vmatprep.subr.mxu0 0.0
  %594 = vmatpush1.msra.mxu0 0.0
  %595 = vmatprep.subr.mxu0 0.0
  %596 = vmatpush1.msra.mxu0 0.0
  %597 = vmatprep.subr.mxu0 0.0
  %598 = vmatpush1.msra.mxu0 0.0
  %599 = vmatprep.subr.mxu0 0.0
  %600 = vmatpush1.msra.mxu0 0.0
  %601 = vmatprep.mubr.f32.mxu0 0.0
  %602 = vmatmul.mubr.f32.gmra.mrb[0].mxu0 %v462
  %v603 = vpop.f32.mrb[0].mxu0
  %v604 = vadd.f32 0.0, %v603
  %v605 = vpop.f32.mrb[0].mxu0
  %606 = vdwg.mxu0
  %v607 = vadd.f32 %v536, %v604
  %v608 = vxor.u32 %v534, 2147483648
  %v609 = vmul.f32 %v608, 1.442695
  %v610 = vpow.pop %v609
  %v611 = vadd.f32 %v610, 1.0
  %v612 = vrcp.pop %v611
  %v613 = vmul.f32 1.0, %v612
  %v614 = vtanh.pop %v534
  %v615 = vmul.f32 %v613, 0.0
  %617 = vrot.lane.b32.xlu0 %v614, 64
  %v618 = vpop.permute.xlu0 %617
  %v620 = vmul.f32 %v613, %v618
  %622 = vrot.lane.b32.xlu0 %v620, 32
  %v623 = vpop.permute.xlu0 %622
  %v625 = vadd.f32 %v615, %v623
  %v626 = vtanh.pop %v625
  %628 = vrot.lane.b32.xlu0 %v626, 64
  %v629 = vpop.permute.xlu0 %628
  %v631 = vmul.f32 %v613, %v629
  %v632 = vxor.u32 %v607, 2147483648
  %v633 = vmul.f32 %v632, 1.442695
  %v634 = vpow.pop %v633
  %v635 = vadd.f32 %v634, 1.0
  %v636 = vrcp.pop %v635
  %v637 = vmul.f32 1.0, %v636
  %v638 = vtanh.pop %v607
  %v639 = vmul.f32 %v637, 0.0
  %641 = vrot.lane.b32.xlu0 %v638, 64
  %v642 = vpop.permute.xlu0 %641
  %v644 = vmul.f32 %v637, %v642
  %646 = vrot.lane.b32.xlu0 %v644, 32
  %v647 = vpop.permute.xlu0 %646
  %v649 = vadd.f32 %v639, %v647
  %v650 = vtanh.pop %v649
  %652 = vrot.lane.b32.xlu0 %v650, 64
  %v653 = vpop.permute.xlu0 %652
  %v655 = vmul.f32 %v637, %v653
  %657 = vrot.lane.b32.xlu0 %v631, 32
  %v658 = vpop.permute.xlu0 %657
  %660 = vst.msk [vmem:[#allocation4] sm:$0xff] %vm460, %v658
  %662 = vrot.lane.b32.xlu0 %v655, 32
  %v663 = vpop.permute.xlu0 %662
  %s665 = scalar_lea.vmem [#allocation5], 120
  %666 = vst.msk [vmem:[%s665] sm:$0xff] %vm460, %v663
  %s667 = scalar_lea.vmem [#allocation2], 8
  %v668 = vld [vmem:[%s667] sm:$0xff]
  %v669 = vsel %vm460, %v658, 0
  %671 = vmatprep.subr.mxu0 0.0
  %672 = vmatpush1.msra.mxu0 %v451
  %673 = vmatprep.subr.mxu0 0.0
  %674 = vmatpush1.msra.mxu0 %v452
  %675 = vmatprep.subr.mxu0 0.0
  %676 = vmatpush1.msra.mxu0 %v453
  %677 = vmatprep.subr.mxu0 0.0
  %678 = vmatpush1.msra.mxu0 %v454
  %679 = vmatprep.subr.mxu0 0.0
  %680 = vmatpush1.msra.mxu0 0.0
  %681 = vmatprep.subr.mxu0 0.0
  %682 = vmatpush1.msra.mxu0 0.0
  %683 = vmatprep.subr.mxu0 0.0
  %684 = vmatpush1.msra.mxu0 0.0
  %685 = vmatprep.subr.mxu0 0.0
  %686 = vmatpush1.msra.mxu0 0.0
  %687 = vmatprep.subr.mxu0 0.0
  %688 = vmatpush1.msra.mxu0 0.0
  %689 = vmatprep.subr.mxu0 0.0
  %690 = vmatpush1.msra.mxu0 0.0
  %691 = vmatprep.subr.mxu0 0.0
  %692 = vmatpush1.msra.mxu0 0.0
  %693 = vmatprep.subr.mxu0 0.0
  %694 = vmatpush1.msra.mxu0 0.0
  %695 = vmatprep.subr.mxu0 0.0
  %696 = vmatpush1.msra.mxu0 0.0
  %697 = vmatprep.subr.mxu0 0.0
  %698 = vmatpush1.msra.mxu0 0.0
  %699 = vmatprep.subr.mxu0 0.0
  %700 = vmatpush1.msra.mxu0 0.0
  %701 = vmatprep.subr.mxu0 0.0
  %702 = vmatpush1.msra.mxu0 0.0
  %703 = vmatprep.subr.mxu0 0.0
  %704 = vmatpush1.msra.mxu0 0.0
  %705 = vmatprep.subr.mxu0 0.0
  %706 = vmatpush1.msra.mxu0 0.0
  %707 = vmatprep.subr.mxu0 0.0
  %708 = vmatpush1.msra.mxu0 0.0
  %709 = vmatprep.subr.mxu0 0.0
  %710 = vmatpush1.msra.mxu0 0.0
  %711 = vmatprep.subr.mxu0 0.0
  %712 = vmatpush1.msra.mxu0 0.0
  %713 = vmatprep.subr.mxu0 0.0
  %714 = vmatpush1.msra.mxu0 0.0
  %715 = vmatprep.subr.mxu0 0.0
  %716 = vmatpush1.msra.mxu0 0.0
  %717 = vmatprep.subr.mxu0 0.0
  %718 = vmatpush1.msra.mxu0 0.0
  %719 = vmatprep.subr.mxu0 0.0
  %720 = vmatpush1.msra.mxu0 0.0
  %721 = vmatprep.subr.mxu0 0.0
  %722 = vmatpush1.msra.mxu0 0.0
  %723 = vmatprep.subr.mxu0 0.0
  %724 = vmatpush1.msra.mxu0 0.0
  %725 = vmatprep.subr.mxu0 0.0
  %726 = vmatpush1.msra.mxu0 0.0
  %727 = vmatprep.subr.mxu0 0.0
  %728 = vmatpush1.msra.mxu0 0.0
  %729 = vmatprep.subr.mxu0 0.0
  %730 = vmatpush1.msra.mxu0 0.0
  %731 = vmatprep.subr.mxu0 0.0
  %732 = vmatpush1.msra.mxu0 0.0
  %733 = vmatprep.subr.mxu0 0.0
  %734 = vmatpush1.msra.mxu0 0.0
  %735 = vmatprep.mubr.f32.mxu0 0.0
  %736 = vmatmul.mubr.f32.gmra.mrb[0].mxu0 %v669
  %v737 = vpop.f32.mrb[0].mxu0
  %v738 = vadd.f32 0.0, %v737
  %v739 = vpop.f32.mrb[0].mxu0
  %740 = vdwg.mxu0
  %v741 = vadd.f32 %v668, %v738
  %s742 = scalar_lea.vmem [#allocation3], 112
  %v743 = vld [vmem:[%s742] sm:$0xff]
  %v744 = vsel %vm460, %v663, 0
  %746 = vmatprep.subr.mxu0 0.0
  %747 = vmatpush1.msra.mxu0 %v455
  %748 = vmatprep.subr.mxu0 0.0
  %749 = vmatpush1.msra.mxu0 %v456
  %750 = vmatprep.subr.mxu0 0.0
  %751 = vmatpush1.msra.mxu0 %v457
  %752 = vmatprep.subr.mxu0 0.0
  %753 = vmatpush1.msra.mxu0 %v458
  %754 = vmatprep.subr.mxu0 0.0
  %755 = vmatpush1.msra.mxu0 0.0
  %756 = vmatprep.subr.mxu0 0.0
  %757 = vmatpush1.msra.mxu0 0.0
  %758 = vmatprep.subr.mxu0 0.0
  %759 = vmatpush1.msra.mxu0 0.0
  %760 = vmatprep.subr.mxu0 0.0
  %761 = vmatpush1.msra.mxu0 0.0
  %762 = vmatprep.subr.mxu0 0.0
  %763 = vmatpush1.msra.mxu0 0.0
  %764 = vmatprep.subr.mxu0 0.0
  %765 = vmatpush1.msra.mxu0 0.0
  %766 = vmatprep.subr.mxu0 0.0
  %767 = vmatpush1.msra.mxu0 0.0
  %768 = vmatprep.subr.mxu0 0.0
  %769 = vmatpush1.msra.mxu0 0.0
  %770 = vmatprep.subr.mxu0 0.0
  %771 = vmatpush1.msra.mxu0 0.0
  %772 = vmatprep.subr.mxu0 0.0
  %773 = vmatpush1.msra.mxu0 0.0
  %774 = vmatprep.subr.mxu0 0.0
  %775 = vmatpush1.msra.mxu0 0.0
  %776 = vmatprep.subr.mxu0 0.0
  %777 = vmatpush1.msra.mxu0 0.0
  %778 = vmatprep.subr.mxu0 0.0
  %779 = vmatpush1.msra.mxu0 0.0
  %780 = vmatprep.subr.mxu0 0.0
  %781 = vmatpush1.msra.mxu0 0.0
  %782 = vmatprep.subr.mxu0 0.0
  %783 = vmatpush1.msra.mxu0 0.0
  %784 = vmatprep.subr.mxu0 0.0
  %785 = vmatpush1.msra.mxu0 0.0
  %786 = vmatprep.subr.mxu0 0.0
  %787 = vmatpush1.msra.mxu0 0.0
  %788 = vmatprep.subr.mxu0 0.0
  %789 = vmatpush1.msra.mxu0 0.0
  %790 = vmatprep.subr.mxu0 0.0
  %791 = vmatpush1.msra.mxu0 0.0
  %792 = vmatprep.subr.mxu0 0.0
  %793 = vmatpush1.msra.mxu0 0.0
  %794 = vmatprep.subr.mxu0 0.0
  %795 = vmatpush1.msra.mxu0 0.0
  %796 = vmatprep.subr.mxu0 0.0
  %797 = vmatpush1.msra.mxu0 0.0
  %798 = vmatprep.subr.mxu0 0.0
  %799 = vmatpush1.msra.mxu0 0.0
  %800 = vmatprep.subr.mxu0 0.0
  %801 = vmatpush1.msra.mxu0 0.0
  %802 = vmatprep.subr.mxu0 0.0
  %803 = vmatpush1.msra.mxu0 0.0
  %804 = vmatprep.subr.mxu0 0.0
  %805 = vmatpush1.msra.mxu0 0.0
  %806 = vmatprep.subr.mxu0 0.0
  %807 = vmatpush1.msra.mxu0 0.0
  %808 = vmatprep.subr.mxu0 0.0
  %809 = vmatpush1.msra.mxu0 0.0
  %810 = vmatprep.mubr.f32.mxu0 0.0
  %811 = vmatmul.mubr.f32.gmra.mrb[0].mxu0 %v744
  %v812 = vpop.f32.mrb[0].mxu0
  %v813 = vadd.f32 0.0, %v812
  %v814 = vpop.f32.mrb[0].mxu0
  %815 = vdwg.mxu0
  %v816 = vadd.f32 %v743, %v813
  %v817 = vxor.u32 %v741, 2147483648
  %v818 = vmul.f32 %v817, 1.442695
  %v819 = vpow.pop %v818
  %v820 = vadd.f32 %v819, 1.0
  %v821 = vrcp.pop %v820
  %v822 = vmul.f32 1.0, %v821
  %v823 = vtanh.pop %v741
  %v824 = vmul.f32 %v822, %v625
  %826 = vrot.lane.b32.xlu0 %v823, 64
  %v827 = vpop.permute.xlu0 %826
  %v829 = vmul.f32 %v822, %v827
  %831 = vrot.lane.b32.xlu0 %v829, 32
  %v832 = vpop.permute.xlu0 %831
  %v834 = vadd.f32 %v824, %v832
  %v835 = vtanh.pop %v834
  %837 = vrot.lane.b32.xlu0 %v835, 64
  %v838 = vpop.permute.xlu0 %837
  %v840 = vmul.f32 %v822, %v838
  %v841 = vxor.u32 %v816, 2147483648
  %v842 = vmul.f32 %v841, 1.442695
  %v843 = vpow.pop %v842
  %v844 = vadd.f32 %v843, 1.0
  %v845 = vrcp.pop %v844
  %v846 = vmul.f32 1.0, %v845
  %v847 = vtanh.pop %v816
  %v848 = vmul.f32 %v846, %v649
  %850 = vrot.lane.b32.xlu0 %v847, 64
  %v851 = vpop.permute.xlu0 %850
  %v853 = vmul.f32 %v846, %v851
  %855 = vrot.lane.b32.xlu0 %v853, 32
  %v856 = vpop.permute.xlu0 %855
  %v858 = vadd.f32 %v848, %v856
  %v859 = vtanh.pop %v858
  %861 = vrot.lane.b32.xlu0 %v859, 64
  %v862 = vpop.permute.xlu0 %861
  %v864 = vmul.f32 %v846, %v862
  %866 = vrot.lane.b32.xlu0 %v840, 32
  %v867 = vpop.permute.xlu0 %866
  %s869 = scalar_lea.vmem [#allocation4], 8
  %870 = vst.msk [vmem:[%s869] sm:$0xff] %vm460, %v867
  %872 = vrot.lane.b32.xlu0 %v864, 32
  %v873 = vpop.permute.xlu0 %872
  %s875 = scalar_lea.vmem [#allocation5], 112
  %876 = vst.msk [vmem:[%s875] sm:$0xff] %vm460, %v873
  %s877 = scalar_lea.vmem [#allocation2], 16
  %v878 = vld [vmem:[%s877] sm:$0xff]
  %v879 = vsel %vm460, %v867, 0
  %881 = vmatprep.subr.mxu0 0.0
  %882 = vmatpush1.msra.mxu0 %v451
  %883 = vmatprep.subr.mxu0 0.0
  %884 = vmatpush1.msra.mxu0 %v452
  %885 = vmatprep.subr.mxu0 0.0
  %886 = vmatpush1.msra.mxu0 %v453
  %887 = vmatprep.subr.mxu0 0.0
  %888 = vmatpush1.msra.mxu0 %v454
  %889 = vmatprep.subr.mxu0 0.0
  %890 = vmatpush1.msra.mxu0 0.0
  %891 = vmatprep.subr.mxu0 0.0
  %892 = vmatpush1.msra.mxu0 0.0
  %893 = vmatprep.subr.mxu0 0.0
  %894 = vmatpush1.msra.mxu0 0.0
  %895 = vmatprep.subr.mxu0 0.0
  %896 = vmatpush1.msra.mxu0 0.0
  %897 = vmatprep.subr.mxu0 0.0
  %898 = vmatpush1.msra.mxu0 0.0
  %899 = vmatprep.subr.mxu0 0.0
  %900 = vmatpush1.msra.mxu0 0.0
  %901 = vmatprep.subr.mxu0 0.0
  %902 = vmatpush1.msra.mxu0 0.0
  %903 = vmatprep.subr.mxu0 0.0
  %904 = vmatpush1.msra.mxu0 0.0
  %905 = vmatprep.subr.mxu0 0.0
  %906 = vmatpush1.msra.mxu0 0.0
  %907 = vmatprep.subr.mxu0 0.0
  %908 = vmatpush1.msra.mxu0 0.0
  %909 = vmatprep.subr.mxu0 0.0
  %910 = vmatpush1.msra.mxu0 0.0
  %911 = vmatprep.subr.mxu0 0.0
  %912 = vmatpush1.msra.mxu0 0.0
  %913 = vmatprep.subr.mxu0 0.0
  %914 = vmatpush1.msra.mxu0 0.0
  %915 = vmatprep.subr.mxu0 0.0
  %916 = vmatpush1.msra.mxu0 0.0
  %917 = vmatprep.subr.mxu0 0.0
  %918 = vmatpush1.msra.mxu0 0.0
  %919 = vmatprep.subr.mxu0 0.0
  %920 = vmatpush1.msra.mxu0 0.0
  %921 = vmatprep.subr.mxu0 0.0
  %922 = vmatpush1.msra.mxu0 0.0
  %923 = vmatprep.subr.mxu0 0.0
  %924 = vmatpush1.msra.mxu0 0.0
  %925 = vmatprep.subr.mxu0 0.0
  %926 = vmatpush1.msra.mxu0 0.0
  %927 = vmatprep.subr.mxu0 0.0
  %928 = vmatpush1.msra.mxu0 0.0
  %929 = vmatprep.subr.mxu0 0.0
  %930 = vmatpush1.msra.mxu0 0.0
  %931 = vmatprep.subr.mxu0 0.0
  %932 = vmatpush1.msra.mxu0 0.0
  %933 = vmatprep.subr.mxu0 0.0
  %934 = vmatpush1.msra.mxu0 0.0
  %935 = vmatprep.subr.mxu0 0.0
  %936 = vmatpush1.msra.mxu0 0.0
  %937 = vmatprep.subr.mxu0 0.0
  %938 = vmatpush1.msra.mxu0 0.0
  %939 = vmatprep.subr.mxu0 0.0
  %940 = vmatpush1.msra.mxu0 0.0
  %941 = vmatprep.subr.mxu0 0.0
  %942 = vmatpush1.msra.mxu0 0.0
  %943 = vmatprep.subr.mxu0 0.0
  %944 = vmatpush1.msra.mxu0 0.0
  %945 = vmatprep.mubr.f32.mxu0 0.0
  %946 = vmatmul.mubr.f32.gmra.mrb[0].mxu0 %v879
  %v947 = vpop.f32.mrb[0].mxu0
  %v948 = vadd.f32 0.0, %v947
  %v949 = vpop.f32.mrb[0].mxu0
  %950 = vdwg.mxu0
  %v951 = vadd.f32 %v878, %v948
  %s952 = scalar_lea.vmem [#allocation3], 104
  %v953 = vld [vmem:[%s952] sm:$0xff]
  %v954 = vsel %vm460, %v873, 0
  %956 = vmatprep.subr.mxu0 0.0
  %957 = vmatpush1.msra.mxu0 %v455
  %958 = vmatprep.subr.mxu0 0.0
  %959 = vmatpush1.msra.mxu0 %v456
  %960 = vmatprep.subr.mxu0 0.0
  %961 = vmatpush1.msra.mxu0 %v457
  %962 = vmatprep.subr.mxu0 0.0
  %963 = vmatpush1.msra.mxu0 %v458
  %964 = vmatprep.subr.mxu0 0.0
  %965 = vmatpush1.msra.mxu0 0.0
  %966 = vmatprep.subr.mxu0 0.0
  %967 = vmatpush1.msra.mxu0 0.0
  %968 = vmatprep.subr.mxu0 0.0
  %969 = vmatpush1.msra.mxu0 0.0
  %970 = vmatprep.subr.mxu0 0.0
  %971 = vmatpush1.msra.mxu0 0.0
  %972 = vmatprep.subr.mxu0 0.0
  %973 = vmatpush1.msra.mxu0 0.0
  %974 = vmatprep.subr.mxu0 0.0
  %975 = vmatpush1.msra.mxu0 0.0
  %976 = vmatprep.subr.mxu0 0.0
  %977 = vmatpush1.msra.mxu0 0.0
  %978 = vmatprep.subr.mxu0 0.0
  %979 = vmatpush1.msra.mxu0 0.0
  %980 = vmatprep.subr.mxu0 0.0
  %981 = vmatpush1.msra.mxu0 0.0
  %982 = vmatprep.subr.mxu0 0.0
  %983 = vmatpush1.msra.mxu0 0.0
  %984 = vmatprep.subr.mxu0 0.0
  %985 = vmatpush1.msra.mxu0 0.0
  %986 = vmatprep.subr.mxu0 0.0
  %987 = vmatpush1.msra.mxu0 0.0
  %988 = vmatprep.subr.mxu0 0.0
  %989 = vmatpush1.msra.mxu0 0.0
  %990 = vmatprep.subr.mxu0 0.0
  %991 = vmatpush1.msra.mxu0 0.0
  %992 = vmatprep.subr.mxu0 0.0
  %993 = vmatpush1.msra.mxu0 0.0
  %994 = vmatprep.subr.mxu0 0.0
  %995 = vmatpush1.msra.mxu0 0.0
  %996 = vmatprep.subr.mxu0 0.0
  %997 = vmatpush1.msra.mxu0 0.0
  %998 = vmatprep.subr.mxu0 0.0
  %999 = vmatpush1.msra.mxu0 0.0
  %1000 = vmatprep.subr.mxu0 0.0
  %1001 = vmatpush1.msra.mxu0 0.0
  %1002 = vmatprep.subr.mxu0 0.0
  %1003 = vmatpush1.msra.mxu0 0.0
  %1004 = vmatprep.subr.mxu0 0.0
  %1005 = vmatpush1.msra.mxu0 0.0
  %1006 = vmatprep.subr.mxu0 0.0
  %1007 = vmatpush1.msra.mxu0 0.0
  %1008 = vmatprep.subr.mxu0 0.0
  %1009 = vmatpush1.msra.mxu0 0.0
  %1010 = vmatprep.subr.mxu0 0.0
  %1011 = vmatpush1.msra.mxu0 0.0
  %1012 = vmatprep.subr.mxu0 0.0
  %1013 = vmatpush1.msra.mxu0 0.0
  %1014 = vmatprep.subr.mxu0 0.0
  %1015 = vmatpush1.msra.mxu0 0.0
  %1016 = vmatprep.subr.mxu0 0.0
  %1017 = vmatpush1.msra.mxu0 0.0
  %1018 = vmatprep.subr.mxu0 0.0
  %1019 = vmatpush1.msra.mxu0 0.0
  %1020 = vmatprep.mubr.f32.mxu0 0.0
  %1021 = vmatmul.mubr.f32.gmra.mrb[0].mxu0 %v954
  %v1022 = vpop.f32.mrb[0].mxu0
  %v1023 = vadd.f32 0.0, %v1022
  %v1024 = vpop.f32.mrb[0].mxu0
  %1025 = vdwg.mxu0
  %v1026 = vadd.f32 %v953, %v1023
  %v1027 = vxor.u32 %v951, 2147483648
  %v1028 = vmul.f32 %v1027, 1.442695
  %v1029 = vpow.pop %v1028
  %v1030 = vadd.f32 %v1029, 1.0
  %v1031 = vrcp.pop %v1030
  %v1032 = vmul.f32 1.0, %v1031
  %v1033 = vtanh.pop %v951
  %v1034 = vmul.f32 %v1032, %v834
  %1036 = vrot.lane.b32.xlu0 %v1033, 64
  %v1037 = vpop.permute.xlu0 %1036
  %v1039 = vmul.f32 %v1032, %v1037
  %1041 = vrot.lane.b32.xlu0 %v1039, 32
  %v1042 = vpop.permute.xlu0 %1041
  %v1044 = vadd.f32 %v1034, %v1042
  %v1045 = vtanh.pop %v1044
  %1047 = vrot.lane.b32.xlu0 %v1045, 64
  %v1048 = vpop.permute.xlu0 %1047
  %v1050 = vmul.f32 %v1032, %v1048
  %v1051 = vxor.u32 %v1026, 2147483648
  %v1052 = vmul.f32 %v1051, 1.442695
  %v1053 = vpow.pop %v1052
  %v1054 = vadd.f32 %v1053, 1.0
  %v1055 = vrcp.pop %v1054
  %v1056 = vmul.f32 1.0, %v1055
  %v1057 = vtanh.pop %v1026
  %v1058 = vmul.f32 %v1056, %v858
  %1060 = vrot.lane.b32.xlu0 %v1057, 64
  %v1061 = vpop.permute.xlu0 %1060
  %v1063 = vmul.f32 %v1056, %v1061
  %1065 = vrot.lane.b32.xlu0 %v1063, 32
  %v1066 = vpop.permute.xlu0 %1065
  %v1068 = vadd.f32 %v1058, %v1066
  %v1069 = vtanh.pop %v1068
  %1071 = vrot.lane.b32.xlu0 %v1069, 64
  %v1072 = vpop.permute.xlu0 %1071
  %v1074 = vmul.f32 %v1056, %v1072
  %1076 = vrot.lane.b32.xlu0 %v1050, 32
  %v1077 = vpop.permute.xlu0 %1076
  %s1079 = scalar_lea.vmem [#allocation4], 16
  %1080 = vst.msk [vmem:[%s1079] sm:$0xff] %vm460, %v1077
  %1082 = vrot.lane.b32.xlu0 %v1074, 32
  %v1083 = vpop.permute.xlu0 %1082
  %s1085 = scalar_lea.vmem [#allocation5], 104
  %1086 = vst.msk [vmem:[%s1085] sm:$0xff] %vm460, %v1083
  %s1087 = scalar_lea.vmem [#allocation2], 24
  %v1088 = vld [vmem:[%s1087] sm:$0xff]
  %v1089 = vsel %vm460, %v1077, 0
  %1091 = vmatprep.subr.mxu0 0.0
  %1092 = vmatpush1.msra.mxu0 %v451
  %1093 = vmatprep.subr.mxu0 0.0
  %1094 = vmatpush1.msra.mxu0 %v452
  %1095 = vmatprep.subr.mxu0 0.0
  %1096 = vmatpush1.msra.mxu0 %v453
  %1097 = vmatprep.subr.mxu0 0.0
  %1098 = vmatpush1.msra.mxu0 %v454
  %1099 = vmatprep.subr.mxu0 0.0
  %1100 = vmatpush1.msra.mxu0 0.0
  %1101 = vmatprep.subr.mxu0 0.0
  %1102 = vmatpush1.msra.mxu0 0.0
  %1103 = vmatprep.subr.mxu0 0.0
  %1104 = vmatpush1.msra.mxu0 0.0
  %1105 = vmatprep.subr.mxu0 0.0
  %1106 = vmatpush1.msra.mxu0 0.0
  %1107 = vmatprep.subr.mxu0 0.0
  %1108 = vmatpush1.msra.mxu0 0.0
  %1109 = vmatprep.subr.mxu0 0.0
  %1110 = vmatpush1.msra.mxu0 0.0
  %1111 = vmatprep.subr.mxu0 0.0
  %1112 = vmatpush1.msra.mxu0 0.0
  %1113 = vmatprep.subr.mxu0 0.0
  %1114 = vmatpush1.msra.mxu0 0.0
  %1115 = vmatprep.subr.mxu0 0.0
  %1116 = vmatpush1.msra.mxu0 0.0
  %1117 = vmatprep.subr.mxu0 0.0
  %1118 = vmatpush1.msra.mxu0 0.0
  %1119 = vmatprep.subr.mxu0 0.0
  %1120 = vmatpush1.msra.mxu0 0.0
  %1121 = vmatprep.subr.mxu0 0.0
  %1122 = vmatpush1.msra.mxu0 0.0
  %1123 = vmatprep.subr.mxu0 0.0
  %1124 = vmatpush1.msra.mxu0 0.0
  %1125 = vmatprep.subr.mxu0 0.0
  %1126 = vmatpush1.msra.mxu0 0.0
  %1127 = vmatprep.subr.mxu0 0.0
  %1128 = vmatpush1.msra.mxu0 0.0
  %1129 = vmatprep.subr.mxu0 0.0
  %1130 = vmatpush1.msra.mxu0 0.0
  %1131 = vmatprep.subr.mxu0 0.0
  %1132 = vmatpush1.msra.mxu0 0.0
  %1133 = vmatprep.subr.mxu0 0.0
  %1134 = vmatpush1.msra.mxu0 0.0
  %1135 = vmatprep.subr.mxu0 0.0
  %1136 = vmatpush1.msra.mxu0 0.0
  %1137 = vmatprep.subr.mxu0 0.0
  %1138 = vmatpush1.msra.mxu0 0.0
  %1139 = vmatprep.subr.mxu0 0.0
  %1140 = vmatpush1.msra.mxu0 0.0
  %1141 = vmatprep.subr.mxu0 0.0
  %1142 = vmatpush1.msra.mxu0 0.0
  %1143 = vmatprep.subr.mxu0 0.0
  %1144 = vmatpush1.msra.mxu0 0.0
  %1145 = vmatprep.subr.mxu0 0.0
  %1146 = vmatpush1.msra.mxu0 0.0
  %1147 = vmatprep.subr.mxu0 0.0
  %1148 = vmatpush1.msra.mxu0 0.0
  %1149 = vmatprep.subr.mxu0 0.0
  %1150 = vmatpush1.msra.mxu0 0.0
  %1151 = vmatprep.subr.mxu0 0.0
  %1152 = vmatpush1.msra.mxu0 0.0
  %1153 = vmatprep.subr.mxu0 0.0
  %1154 = vmatpush1.msra.mxu0 0.0
  %1155 = vmatprep.mubr.f32.mxu0 0.0
  %1156 = vmatmul.mubr.f32.gmra.mrb[0].mxu0 %v1089
  %v1157 = vpop.f32.mrb[0].mxu0
  %v1158 = vadd.f32 0.0, %v1157
  %v1159 = vpop.f32.mrb[0].mxu0
  %1160 = vdwg.mxu0
  %v1161 = vadd.f32 %v1088, %v1158
  %s1162 = scalar_lea.vmem [#allocation3], 96
  %v1163 = vld [vmem:[%s1162] sm:$0xff]
  %v1164 = vsel %vm460, %v1083, 0
  %1166 = vmatprep.subr.mxu0 0.0
  %1167 = vmatpush1.msra.mxu0 %v455
  %1168 = vmatprep.subr.mxu0 0.0
  %1169 = vmatpush1.msra.mxu0 %v456
  %1170 = vmatprep.subr.mxu0 0.0
  %1171 = vmatpush1.msra.mxu0 %v457
  %1172 = vmatprep.subr.mxu0 0.0
  %1173 = vmatpush1.msra.mxu0 %v458
  %1174 = vmatprep.subr.mxu0 0.0
  %1175 = vmatpush1.msra.mxu0 0.0
  %1176 = vmatprep.subr.mxu0 0.0
  %1177 = vmatpush1.msra.mxu0 0.0
  %1178 = vmatprep.subr.mxu0 0.0
  %1179 = vmatpush1.msra.mxu0 0.0
  %1180 = vmatprep.subr.mxu0 0.0
  %1181 = vmatpush1.msra.mxu0 0.0
  %1182 = vmatprep.subr.mxu0 0.0
  %1183 = vmatpush1.msra.mxu0 0.0
  %1184 = vmatprep.subr.mxu0 0.0
  %1185 = vmatpush1.msra.mxu0 0.0
  %1186 = vmatprep.subr.mxu0 0.0
  %1187 = vmatpush1.msra.mxu0 0.0
  %1188 = vmatprep.subr.mxu0 0.0
  %1189 = vmatpush1.msra.mxu0 0.0
  %1190 = vmatprep.subr.mxu0 0.0
  %1191 = vmatpush1.msra.mxu0 0.0
  %1192 = vmatprep.subr.mxu0 0.0
  %1193 = vmatpush1.msra.mxu0 0.0
  %1194 = vmatprep.subr.mxu0 0.0
  %1195 = vmatpush1.msra.mxu0 0.0
  %1196 = vmatprep.subr.mxu0 0.0
  %1197 = vmatpush1.msra.mxu0 0.0
  %1198 = vmatprep.subr.mxu0 0.0
  %1199 = vmatpush1.msra.mxu0 0.0
  %1200 = vmatprep.subr.mxu0 0.0
  %1201 = vmatpush1.msra.mxu0 0.0
  %1202 = vmatprep.subr.mxu0 0.0
  %1203 = vmatpush1.msra.mxu0 0.0
  %1204 = vmatprep.subr.mxu0 0.0
  %1205 = vmatpush1.msra.mxu0 0.0
  %1206 = vmatprep.subr.mxu0 0.0
  %1207 = vmatpush1.msra.mxu0 0.0
  %1208 = vmatprep.subr.mxu0 0.0
  %1209 = vmatpush1.msra.mxu0 0.0
  %1210 = vmatprep.subr.mxu0 0.0
  %1211 = vmatpush1.msra.mxu0 0.0
  %1212 = vmatprep.subr.mxu0 0.0
  %1213 = vmatpush1.msra.mxu0 0.0
  %1214 = vmatprep.subr.mxu0 0.0
  %1215 = vmatpush1.msra.mxu0 0.0
  %1216 = vmatprep.subr.mxu0 0.0
  %1217 = vmatpush1.msra.mxu0 0.0
  %1218 = vmatprep.subr.mxu0 0.0
  %1219 = vmatpush1.msra.mxu0 0.0
  %1220 = vmatprep.subr.mxu0 0.0
  %1221 = vmatpush1.msra.mxu0 0.0
  %1222 = vmatprep.subr.mxu0 0.0
  %1223 = vmatpush1.msra.mxu0 0.0
  %1224 = vmatprep.subr.mxu0 0.0
  %1225 = vmatpush1.msra.mxu0 0.0
  %1226 = vmatprep.subr.mxu0 0.0
  %1227 = vmatpush1.msra.mxu0 0.0
  %1228 = vmatprep.subr.mxu0 0.0
  %1229 = vmatpush1.msra.mxu0 0.0
  %1230 = vmatprep.mubr.f32.mxu0 0.0
  %1231 = vmatmul.mubr.f32.gmra.mrb[0].mxu0 %v1164
  %v1232 = vpop.f32.mrb[0].mxu0
  %v1233 = vadd.f32 0.0, %v1232
  %v1234 = vpop.f32.mrb[0].mxu0
  %1235 = vdwg.mxu0
  %v1236 = vadd.f32 %v1163, %v1233
  %v1237 = vxor.u32 %v1161, 2147483648
  %v1238 = vmul.f32 %v1237, 1.442695
  %v1239 = vpow.pop %v1238
  %v1240 = vadd.f32 %v1239, 1.0
  %v1241 = vrcp.pop %v1240
  %v1242 = vmul.f32 1.0, %v1241
  %v1243 = vtanh.pop %v1161
  %v1244 = vmul.f32 %v1242, %v1044
  %1246 = vrot.lane.b32.xlu0 %v1243, 64
  %v1247 = vpop.permute.xlu0 %1246
  %v1249 = vmul.f32 %v1242, %v1247
  %1251 = vrot.lane.b32.xlu0 %v1249, 32
  %v1252 = vpop.permute.xlu0 %1251
  %v1254 = vadd.f32 %v1244, %v1252
  %v1255 = vtanh.pop %v1254
  %1257 = vrot.lane.b32.xlu0 %v1255, 64
  %v1258 = vpop.permute.xlu0 %1257
  %v1260 = vmul.f32 %v1242, %v1258
  %v1261 = vxor.u32 %v1236, 2147483648
  %v1262 = vmul.f32 %v1261, 1.442695
  %v1263 = vpow.pop %v1262
  %v1264 = vadd.f32 %v1263, 1.0
  %v1265 = vrcp.pop %v1264
  %v1266 = vmul.f32 1.0, %v1265
  %v1267 = vtanh.pop %v1236
  %v1268 = vmul.f32 %v1266, %v1068
  %1270 = vrot.lane.b32.xlu0 %v1267, 64
  %v1271 = vpop.permute.xlu0 %1270
  %v1273 = vmul.f32 %v1266, %v1271
  %1275 = vrot.lane.b32.xlu0 %v1273, 32
  %v1276 = vpop.permute.xlu0 %1275
  %v1278 = vadd.f32 %v1268, %v1276
  %v1279 = vtanh.pop %v1278
  %1281 = vrot.lane.b32.xlu0 %v1279, 64
  %v1282 = vpop.permute.xlu0 %1281
  %v1284 = vmul.f32 %v1266, %v1282
  %1286 = vrot.lane.b32.xlu0 %v1260, 32
  %v1287 = vpop.permute.xlu0 %1286
  %s1289 = scalar_lea.vmem [#allocation4], 24
  %1290 = vst.msk [vmem:[%s1289] sm:$0xff] %vm460, %v1287
  %1292 = vrot.lane.b32.xlu0 %v1284, 32
  %v1293 = vpop.permute.xlu0 %1292
  %s1295 = scalar_lea.vmem [#allocation5], 96
  %1296 = vst.msk [vmem:[%s1295] sm:$0xff] %vm460, %v1293
  %s1297 = scalar_lea.vmem [#allocation2], 32
  %v1298 = vld [vmem:[%s1297] sm:$0xff]
  %v1299 = vsel %vm460, %v1287, 0
  %1301 = vmatprep.subr.mxu0 0.0
  %1302 = vmatpush1.msra.mxu0 %v451
  %1303 = vmatprep.subr.mxu0 0.0
  %1304 = vmatpush1.msra.mxu0 %v452
  %1305 = vmatprep.subr.mxu0 0.0
  %1306 = vmatpush1.msra.mxu0 %v453
  %1307 = vmatprep.subr.mxu0 0.0
  %1308 = vmatpush1.msra.mxu0 %v454
  %1309 = vmatprep.subr.mxu0 0.0
  %1310 = vmatpush1.msra.mxu0 0.0
  %1311 = vmatprep.subr.mxu0 0.0
  %1312 = vmatpush1.msra.mxu0 0.0
  %1313 = vmatprep.subr.mxu0 0.0
  %1314 = vmatpush1.msra.mxu0 0.0
  %1315 = vmatprep.subr.mxu0 0.0
  %1316 = vmatpush1.msra.mxu0 0.0
  %1317 = vmatprep.subr.mxu0 0.0
  %1318 = vmatpush1.msra.mxu0 0.0
  %1319 = vmatprep.subr.mxu0 0.0
  %1320 = vmatpush1.msra.mxu0 0.0
  %1321 = vmatprep.subr.mxu0 0.0
  %1322 = vmatpush1.msra.mxu0 0.0
  %1323 = vmatprep.subr.mxu0 0.0
  %1324 = vmatpush1.msra.mxu0 0.0
  %1325 = vmatprep.subr.mxu0 0.0
  %1326 = vmatpush1.msra.mxu0 0.0
  %1327 = vmatprep.subr.mxu0 0.0
  %1328 = vmatpush1.msra.mxu0 0.0
  %1329 = vmatprep.subr.mxu0 0.0
  %1330 = vmatpush1.msra.mxu0 0.0
  %1331 = vmatprep.subr.mxu0 0.0
  %1332 = vmatpush1.msra.mxu0 0.0
  %1333 = vmatprep.subr.mxu0 0.0
  %1334 = vmatpush1.msra.mxu0 0.0
  %1335 = vmatprep.subr.mxu0 0.0
  %1336 = vmatpush1.msra.mxu0 0.0
  %1337 = vmatprep.subr.mxu0 0.0
  %1338 = vmatpush1.msra.mxu0 0.0
  %1339 = vmatprep.subr.mxu0 0.0
  %1340 = vmatpush1.msra.mxu0 0.0
  %1341 = vmatprep.subr.mxu0 0.0
  %1342 = vmatpush1.msra.mxu0 0.0
  %1343 = vmatprep.subr.mxu0 0.0
  %1344 = vmatpush1.msra.mxu0 0.0
  %1345 = vmatprep.subr.mxu0 0.0
  %1346 = vmatpush1.msra.mxu0 0.0
  %1347 = vmatprep.subr.mxu0 0.0
  %1348 = vmatpush1.msra.mxu0 0.0
  %1349 = vmatprep.subr.mxu0 0.0
  %1350 = vmatpush1.msra.mxu0 0.0
  %1351 = vmatprep.subr.mxu0 0.0
  %1352 = vmatpush1.msra.mxu0 0.0
  %1353 = vmatprep.subr.mxu0 0.0
  %1354 = vmatpush1.msra.mxu0 0.0
  %1355 = vmatprep.subr.mxu0 0.0
  %1356 = vmatpush1.msra.mxu0 0.0
  %1357 = vmatprep.subr.mxu0 0.0
  %1358 = vmatpush1.msra.mxu0 0.0
  %1359 = vmatprep.subr.mxu0 0.0
  %1360 = vmatpush1.msra.mxu0 0.0
  %1361 = vmatprep.subr.mxu0 0.0
  %1362 = vmatpush1.msra.mxu0 0.0
  %1363 = vmatprep.subr.mxu0 0.0
  %1364 = vmatpush1.msra.mxu0 0.0
  %1365 = vmatprep.mubr.f32.mxu0 0.0
  %1366 = vmatmul.mubr.f32.gmra.mrb[0].mxu0 %v1299
  %v1367 = vpop.f32.mrb[0].mxu0
  %v1368 = vadd.f32 0.0, %v1367
  %v1369 = vpop.f32.mrb[0].mxu0
  %1370 = vdwg.mxu0
  %v1371 = vadd.f32 %v1298, %v1368
  %s1372 = scalar_lea.vmem [#allocation3], 88
  %v1373 = vld [vmem:[%s1372] sm:$0xff]
  %v1374 = vsel %vm460, %v1293, 0
  %1376 = vmatprep.subr.mxu0 0.0
  %1377 = vmatpush1.msra.mxu0 %v455
  %1378 = vmatprep.subr.mxu0 0.0
  %1379 = vmatpush1.msra.mxu0 %v456
  %1380 = vmatprep.subr.mxu0 0.0
  %1381 = vmatpush1.msra.mxu0 %v457
  %1382 = vmatprep.subr.mxu0 0.0
  %1383 = vmatpush1.msra.mxu0 %v458
  %1384 = vmatprep.subr.mxu0 0.0
  %1385 = vmatpush1.msra.mxu0 0.0
  %1386 = vmatprep.subr.mxu0 0.0
  %1387 = vmatpush1.msra.mxu0 0.0
  %1388 = vmatprep.subr.mxu0 0.0
  %1389 = vmatpush1.msra.mxu0 0.0
  %1390 = vmatprep.subr.mxu0 0.0
  %1391 = vmatpush1.msra.mxu0 0.0
  %1392 = vmatprep.subr.mxu0 0.0
  %1393 = vmatpush1.msra.mxu0 0.0
  %1394 = vmatprep.subr.mxu0 0.0
  %1395 = vmatpush1.msra.mxu0 0.0
  %1396 = vmatprep.subr.mxu0 0.0
  %1397 = vmatpush1.msra.mxu0 0.0
  %1398 = vmatprep.subr.mxu0 0.0
  %1399 = vmatpush1.msra.mxu0 0.0
  %1400 = vmatprep.subr.mxu0 0.0
  %1401 = vmatpush1.msra.mxu0 0.0
  %1402 = vmatprep.subr.mxu0 0.0
  %1403 = vmatpush1.msra.mxu0 0.0
  %1404 = vmatprep.subr.mxu0 0.0
  %1405 = vmatpush1.msra.mxu0 0.0
  %1406 = vmatprep.subr.mxu0 0.0
  %1407 = vmatpush1.msra.mxu0 0.0
  %1408 = vmatprep.subr.mxu0 0.0
  %1409 = vmatpush1.msra.mxu0 0.0
  %1410 = vmatprep.subr.mxu0 0.0
  %1411 = vmatpush1.msra.mxu0 0.0
  %1412 = vmatprep.subr.mxu0 0.0
  %1413 = vmatpush1.msra.mxu0 0.0
  %1414 = vmatprep.subr.mxu0 0.0
  %1415 = vmatpush1.msra.mxu0 0.0
  %1416 = vmatprep.subr.mxu0 0.0
  %1417 = vmatpush1.msra.mxu0 0.0
  %1418 = vmatprep.subr.mxu0 0.0
  %1419 = vmatpush1.msra.mxu0 0.0
  %1420 = vmatprep.subr.mxu0 0.0
  %1421 = vmatpush1.msra.mxu0 0.0
  %1422 = vmatprep.subr.mxu0 0.0
  %1423 = vmatpush1.msra.mxu0 0.0
  %1424 = vmatprep.subr.mxu0 0.0
  %1425 = vmatpush1.msra.mxu0 0.0
  %1426 = vmatprep.subr.mxu0 0.0
  %1427 = vmatpush1.msra.mxu0 0.0
  %1428 = vmatprep.subr.mxu0 0.0
  %1429 = vmatpush1.msra.mxu0 0.0
  %1430 = vmatprep.subr.mxu0 0.0
  %1431 = vmatpush1.msra.mxu0 0.0
  %1432 = vmatprep.subr.mxu0 0.0
  %1433 = vmatpush1.msra.mxu0 0.0
  %1434 = vmatprep.subr.mxu0 0.0
  %1435 = vmatpush1.msra.mxu0 0.0
  %1436 = vmatprep.subr.mxu0 0.0
  %1437 = vmatpush1.msra.mxu0 0.0
  %1438 = vmatprep.subr.mxu0 0.0
  %1439 = vmatpush1.msra.mxu0 0.0
  %1440 = vmatprep.mubr.f32.mxu0 0.0
  %1441 = vmatmul.mubr.f32.gmra.mrb[0].mxu0 %v1374
  %v1442 = vpop.f32.mrb[0].mxu0
  %v1443 = vadd.f32 0.0, %v1442
  %v1444 = vpop.f32.mrb[0].mxu0
  %1445 = vdwg.mxu0
  %v1446 = vadd.f32 %v1373, %v1443
  %v1447 = vxor.u32 %v1371, 2147483648
  %v1448 = vmul.f32 %v1447, 1.442695
  %v1449 = vpow.pop %v1448
  %v1450 = vadd.f32 %v1449, 1.0
  %v1451 = vrcp.pop %v1450
  %v1452 = vmul.f32 1.0, %v1451
  %v1453 = vtanh.pop %v1371
  %v1454 = vmul.f32 %v1452, %v1254
  %1456 = vrot.lane.b32.xlu0 %v1453, 64
  %v1457 = vpop.permute.xlu0 %1456
  %v1459 = vmul.f32 %v1452, %v1457
  %1461 = vrot.lane.b32.xlu0 %v1459, 32
  %v1462 = vpop.permute.xlu0 %1461
  %v1464 = vadd.f32 %v1454, %v1462
  %v1465 = vtanh.pop %v1464
  %1467 = vrot.lane.b32.xlu0 %v1465, 64
  %v1468 = vpop.permute.xlu0 %1467
  %v1470 = vmul.f32 %v1452, %v1468
  %v1471 = vxor.u32 %v1446, 2147483648
  %v1472 = vmul.f32 %v1471, 1.442695
  %v1473 = vpow.pop %v1472
  %v1474 = vadd.f32 %v1473, 1.0
  %v1475 = vrcp.pop %v1474
  %v1476 = vmul.f32 1.0, %v1475
  %v1477 = vtanh.pop %v1446
  %v1478 = vmul.f32 %v1476, %v1278
  %1480 = vrot.lane.b32.xlu0 %v1477, 64
  %v1481 = vpop.permute.xlu0 %1480
  %v1483 = vmul.f32 %v1476, %v1481
  %1485 = vrot.lane.b32.xlu0 %v1483, 32
  %v1486 = vpop.permute.xlu0 %1485
  %v1488 = vadd.f32 %v1478, %v1486
  %v1489 = vtanh.pop %v1488
  %1491 = vrot.lane.b32.xlu0 %v1489, 64
  %v1492 = vpop.permute.xlu0 %1491
  %v1494 = vmul.f32 %v1476, %v1492
  %1496 = vrot.lane.b32.xlu0 %v1470, 32
  %v1497 = vpop.permute.xlu0 %1496
  %s1499 = scalar_lea.vmem [#allocation4], 32
  %1500 = vst.msk [vmem:[%s1499] sm:$0xff] %vm460, %v1497
  %1502 = vrot.lane.b32.xlu0 %v1494, 32
  %v1503 = vpop.permute.xlu0 %1502
  %s1505 = scalar_lea.vmem [#allocation5], 88
  %1506 = vst.msk [vmem:[%s1505] sm:$0xff] %vm460, %v1503
  %s1507 = scalar_lea.vmem [#allocation2], 40
  %v1508 = vld [vmem:[%s1507] sm:$0xff]
  %v1509 = vsel %vm460, %v1497, 0
  %1511 = vmatprep.subr.mxu0 0.0
  %1512 = vmatpush1.msra.mxu0 %v451
  %1513 = vmatprep.subr.mxu0 0.0
  %1514 = vmatpush1.msra.mxu0 %v452
  %1515 = vmatprep.subr.mxu0 0.0
  %1516 = vmatpush1.msra.mxu0 %v453
  %1517 = vmatprep.subr.mxu0 0.0
  %1518 = vmatpush1.msra.mxu0 %v454
  %1519 = vmatprep.subr.mxu0 0.0
  %1520 = vmatpush1.msra.mxu0 0.0
  %1521 = vmatprep.subr.mxu0 0.0
  %1522 = vmatpush1.msra.mxu0 0.0
  %1523 = vmatprep.subr.mxu0 0.0
  %1524 = vmatpush1.msra.mxu0 0.0
  %1525 = vmatprep.subr.mxu0 0.0
  %1526 = vmatpush1.msra.mxu0 0.0
  %1527 = vmatprep.subr.mxu0 0.0
  %1528 = vmatpush1.msra.mxu0 0.0
  %1529 = vmatprep.subr.mxu0 0.0
  %1530 = vmatpush1.msra.mxu0 0.0
  %1531 = vmatprep.subr.mxu0 0.0
  %1532 = vmatpush1.msra.mxu0 0.0
  %1533 = vmatprep.subr.mxu0 0.0
  %1534 = vmatpush1.msra.mxu0 0.0
  %1535 = vmatprep.subr.mxu0 0.0
  %1536 = vmatpush1.msra.mxu0 0.0
  %1537 = vmatprep.subr.mxu0 0.0
  %1538 = vmatpush1.msra.mxu0 0.0
  %1539 = vmatprep.subr.mxu0 0.0
  %1540 = vmatpush1.msra.mxu0 0.0
  %1541 = vmatprep.subr.mxu0 0.0
  %1542 = vmatpush1.msra.mxu0 0.0
  %1543 = vmatprep.subr.mxu0 0.0
  %1544 = vmatpush1.msra.mxu0 0.0
  %1545 = vmatprep.subr.mxu0 0.0
  %1546 = vmatpush1.msra.mxu0 0.0
  %1547 = vmatprep.subr.mxu0 0.0
  %1548 = vmatpush1.msra.mxu0 0.0
  %1549 = vmatprep.subr.mxu0 0.0
  %1550 = vmatpush1.msra.mxu0 0.0
  %1551 = vmatprep.subr.mxu0 0.0
  %1552 = vmatpush1.msra.mxu0 0.0
  %1553 = vmatprep.subr.mxu0 0.0
  %1554 = vmatpush1.msra.mxu0 0.0
  %1555 = vmatprep.subr.mxu0 0.0
  %1556 = vmatpush1.msra.mxu0 0.0
  %1557 = vmatprep.subr.mxu0 0.0
  %1558 = vmatpush1.msra.mxu0 0.0
  %1559 = vmatprep.subr.mxu0 0.0
  %1560 = vmatpush1.msra.mxu0 0.0
  %1561 = vmatprep.subr.mxu0 0.0
  %1562 = vmatpush1.msra.mxu0 0.0
  %1563 = vmatprep.subr.mxu0 0.0
  %1564 = vmatpush1.msra.mxu0 0.0
  %1565 = vmatprep.subr.mxu0 0.0
  %1566 = vmatpush1.msra.mxu0 0.0
  %1567 = vmatprep.subr.mxu0 0.0
  %1568 = vmatpush1.msra.mxu0 0.0
  %1569 = vmatprep.subr.mxu0 0.0
  %1570 = vmatpush1.msra.mxu0 0.0
  %1571 = vmatprep.subr.mxu0 0.0
  %1572 = vmatpush1.msra.mxu0 0.0
  %1573 = vmatprep.subr.mxu0 0.0
  %1574 = vmatpush1.msra.mxu0 0.0
  %1575 = vmatprep.mubr.f32.mxu0 0.0
  %1576 = vmatmul.mubr.f32.gmra.mrb[0].mxu0 %v1509
  %v1577 = vpop.f32.mrb[0].mxu0
  %v1578 = vadd.f32 0.0, %v1577
  %v1579 = vpop.f32.mrb[0].mxu0
  %1580 = vdwg.mxu0
  %v1581 = vadd.f32 %v1508, %v1578
  %s1582 = scalar_lea.vmem [#allocation3], 80
  %v1583 = vld [vmem:[%s1582] sm:$0xff]
  %v1584 = vsel %vm460, %v1503, 0
  %1586 = vmatprep.subr.mxu0 0.0
  %1587 = vmatpush1.msra.mxu0 %v455
  %1588 = vmatprep.subr.mxu0 0.0
  %1589 = vmatpush1.msra.mxu0 %v456
  %1590 = vmatprep.subr.mxu0 0.0
  %1591 = vmatpush1.msra.mxu0 %v457
  %1592 = vmatprep.subr.mxu0 0.0
  %1593 = vmatpush1.msra.mxu0 %v458
  %1594 = vmatprep.subr.mxu0 0.0
  %1595 = vmatpush1.msra.mxu0 0.0
  %1596 = vmatprep.subr.mxu0 0.0
  %1597 = vmatpush1.msra.mxu0 0.0
  %1598 = vmatprep.subr.mxu0 0.0
  %1599 = vmatpush1.msra.mxu0 0.0
  %1600 = vmatprep.subr.mxu0 0.0
  %1601 = vmatpush1.msra.mxu0 0.0
  %1602 = vmatprep.subr.mxu0 0.0
  %1603 = vmatpush1.msra.mxu0 0.0
  %1604 = vmatprep.subr.mxu0 0.0
  %1605 = vmatpush1.msra.mxu0 0.0
  %1606 = vmatprep.subr.mxu0 0.0
  %1607 = vmatpush1.msra.mxu0 0.0
  %1608 = vmatprep.subr.mxu0 0.0
  %1609 = vmatpush1.msra.mxu0 0.0
  %1610 = vmatprep.subr.mxu0 0.0
  %1611 = vmatpush1.msra.mxu0 0.0
  %1612 = vmatprep.subr.mxu0 0.0
  %1613 = vmatpush1.msra.mxu0 0.0
  %1614 = vmatprep.subr.mxu0 0.0
  %1615 = vmatpush1.msra.mxu0 0.0
  %1616 = vmatprep.subr.mxu0 0.0
  %1617 = vmatpush1.msra.mxu0 0.0
  %1618 = vmatprep.subr.mxu0 0.0
  %1619 = vmatpush1.msra.mxu0 0.0
  %1620 = vmatprep.subr.mxu0 0.0
  %1621 = vmatpush1.msra.mxu0 0.0
  %1622 = vmatprep.subr.mxu0 0.0
  %1623 = vmatpush1.msra.mxu0 0.0
  %1624 = vmatprep.subr.mxu0 0.0
  %1625 = vmatpush1.msra.mxu0 0.0
  %1626 = vmatprep.subr.mxu0 0.0
  %1627 = vmatpush1.msra.mxu0 0.0
  %1628 = vmatprep.subr.mxu0 0.0
  %1629 = vmatpush1.msra.mxu0 0.0
  %1630 = vmatprep.subr.mxu0 0.0
  %1631 = vmatpush1.msra.mxu0 0.0
  %1632 = vmatprep.subr.mxu0 0.0
  %1633 = vmatpush1.msra.mxu0 0.0
  %1634 = vmatprep.subr.mxu0 0.0
  %1635 = vmatpush1.msra.mxu0 0.0
  %1636 = vmatprep.subr.mxu0 0.0
  %1637 = vmatpush1.msra.mxu0 0.0
  %1638 = vmatprep.subr.mxu0 0.0
  %1639 = vmatpush1.msra.mxu0 0.0
  %1640 = vmatprep.subr.mxu0 0.0
  %1641 = vmatpush1.msra.mxu0 0.0
  %1642 = vmatprep.subr.mxu0 0.0
  %1643 = vmatpush1.msra.mxu0 0.0
  %1644 = vmatprep.subr.mxu0 0.0
  %1645 = vmatpush1.msra.mxu0 0.0
  %1646 = vmatprep.subr.mxu0 0.0
  %1647 = vmatpush1.msra.mxu0 0.0
  %1648 = vmatprep.subr.mxu0 0.0
  %1649 = vmatpush1.msra.mxu0 0.0
  %1650 = vmatprep.mubr.f32.mxu0 0.0
  %1651 = vmatmul.mubr.f32.gmra.mrb[0].mxu0 %v1584
  %v1652 = vpop.f32.mrb[0].mxu0
  %v1653 = vadd.f32 0.0, %v1652
  %v1654 = vpop.f32.mrb[0].mxu0
  %1655 = vdwg.mxu0
  %v1656 = vadd.f32 %v1583, %v1653
  %v1657 = vxor.u32 %v1581, 2147483648
  %v1658 = vmul.f32 %v1657, 1.442695
  %v1659 = vpow.pop %v1658
  %v1660 = vadd.f32 %v1659, 1.0
  %v1661 = vrcp.pop %v1660
  %v1662 = vmul.f32 1.0, %v1661
  %v1663 = vtanh.pop %v1581
  %v1664 = vmul.f32 %v1662, %v1464
  %1666 = vrot.lane.b32.xlu0 %v1663, 64
  %v1667 = vpop.permute.xlu0 %1666
  %v1669 = vmul.f32 %v1662, %v1667
  %1671 = vrot.lane.b32.xlu0 %v1669, 32
  %v1672 = vpop.permute.xlu0 %1671
  %v1674 = vadd.f32 %v1664, %v1672
  %v1675 = vtanh.pop %v1674
  %1677 = vrot.lane.b32.xlu0 %v1675, 64
  %v1678 = vpop.permute.xlu0 %1677
  %v1680 = vmul.f32 %v1662, %v1678
  %v1681 = vxor.u32 %v1656, 2147483648
  %v1682 = vmul.f32 %v1681, 1.442695
  %v1683 = vpow.pop %v1682
  %v1684 = vadd.f32 %v1683, 1.0
  %v1685 = vrcp.pop %v1684
  %v1686 = vmul.f32 1.0, %v1685
  %v1687 = vtanh.pop %v1656
  %v1688 = vmul.f32 %v1686, %v1488
  %1690 = vrot.lane.b32.xlu0 %v1687, 64
  %v1691 = vpop.permute.xlu0 %1690
  %v1693 = vmul.f32 %v1686, %v1691
  %1695 = vrot.lane.b32.xlu0 %v1693, 32
  %v1696 = vpop.permute.xlu0 %1695
  %v1698 = vadd.f32 %v1688, %v1696
  %v1699 = vtanh.pop %v1698
  %1701 = vrot.lane.b32.xlu0 %v1699, 64
  %v1702 = vpop.permute.xlu0 %1701
  %v1704 = vmul.f32 %v1686, %v1702
  %1706 = vrot.lane.b32.xlu0 %v1680, 32
  %v1707 = vpop.permute.xlu0 %1706
  %s1709 = scalar_lea.vmem [#allocation4], 40
  %1710 = vst.msk [vmem:[%s1709] sm:$0xff] %vm460, %v1707
  %1712 = vrot.lane.b32.xlu0 %v1704, 32
  %v1713 = vpop.permute.xlu0 %1712
  %s1715 = scalar_lea.vmem [#allocation5], 80
  %1716 = vst.msk [vmem:[%s1715] sm:$0xff] %vm460, %v1713
  %s1717 = scalar_lea.vmem [#allocation2], 48
  %v1718 = vld [vmem:[%s1717] sm:$0xff]
  %v1719 = vsel %vm460, %v1707, 0
  %1721 = vmatprep.subr.mxu0 0.0
  %1722 = vmatpush1.msra.mxu0 %v451
  %1723 = vmatprep.subr.mxu0 0.0
  %1724 = vmatpush1.msra.mxu0 %v452
  %1725 = vmatprep.subr.mxu0 0.0
  %1726 = vmatpush1.msra.mxu0 %v453
  %1727 = vmatprep.subr.mxu0 0.0
  %1728 = vmatpush1.msra.mxu0 %v454
  %1729 = vmatprep.subr.mxu0 0.0
  %1730 = vmatpush1.msra.mxu0 0.0
  %1731 = vmatprep.subr.mxu0 0.0
  %1732 = vmatpush1.msra.mxu0 0.0
  %1733 = vmatprep.subr.mxu0 0.0
  %1734 = vmatpush1.msra.mxu0 0.0
  %1735 = vmatprep.subr.mxu0 0.0
  %1736 = vmatpush1.msra.mxu0 0.0
  %1737 = vmatprep.subr.mxu0 0.0
  %1738 = vmatpush1.msra.mxu0 0.0
  %1739 = vmatprep.subr.mxu0 0.0
  %1740 = vmatpush1.msra.mxu0 0.0
  %1741 = vmatprep.subr.mxu0 0.0
  %1742 = vmatpush1.msra.mxu0 0.0
  %1743 = vmatprep.subr.mxu0 0.0
  %1744 = vmatpush1.msra.mxu0 0.0
  %1745 = vmatprep.subr.mxu0 0.0
  %1746 = vmatpush1.msra.mxu0 0.0
  %1747 = vmatprep.subr.mxu0 0.0
  %1748 = vmatpush1.msra.mxu0 0.0
  %1749 = vmatprep.subr.mxu0 0.0
  %1750 = vmatpush1.msra.mxu0 0.0
  %1751 = vmatprep.subr.mxu0 0.0
  %1752 = vmatpush1.msra.mxu0 0.0
  %1753 = vmatprep.subr.mxu0 0.0
  %1754 = vmatpush1.msra.mxu0 0.0
  %1755 = vmatprep.subr.mxu0 0.0
  %1756 = vmatpush1.msra.mxu0 0.0
  %1757 = vmatprep.subr.mxu0 0.0
  %1758 = vmatpush1.msra.mxu0 0.0
  %1759 = vmatprep.subr.mxu0 0.0
  %1760 = vmatpush1.msra.mxu0 0.0
  %1761 = vmatprep.subr.mxu0 0.0
  %1762 = vmatpush1.msra.mxu0 0.0
  %1763 = vmatprep.subr.mxu0 0.0
  %1764 = vmatpush1.msra.mxu0 0.0
  %1765 = vmatprep.subr.mxu0 0.0
  %1766 = vmatpush1.msra.mxu0 0.0
  %1767 = vmatprep.subr.mxu0 0.0
  %1768 = vmatpush1.msra.mxu0 0.0
  %1769 = vmatprep.subr.mxu0 0.0
  %1770 = vmatpush1.msra.mxu0 0.0
  %1771 = vmatprep.subr.mxu0 0.0
  %1772 = vmatpush1.msra.mxu0 0.0
  %1773 = vmatprep.subr.mxu0 0.0
  %1774 = vmatpush1.msra.mxu0 0.0
  %1775 = vmatprep.subr.mxu0 0.0
  %1776 = vmatpush1.msra.mxu0 0.0
  %1777 = vmatprep.subr.mxu0 0.0
  %1778 = vmatpush1.msra.mxu0 0.0
  %1779 = vmatprep.subr.mxu0 0.0
  %1780 = vmatpush1.msra.mxu0 0.0
  %1781 = vmatprep.subr.mxu0 0.0
  %1782 = vmatpush1.msra.mxu0 0.0
  %1783 = vmatprep.subr.mxu0 0.0
  %1784 = vmatpush1.msra.mxu0 0.0
  %1785 = vmatprep.mubr.f32.mxu0 0.0
  %1786 = vmatmul.mubr.f32.gmra.mrb[0].mxu0 %v1719
  %v1787 = vpop.f32.mrb[0].mxu0
  %v1788 = vadd.f32 0.0, %v1787
  %v1789 = vpop.f32.mrb[0].mxu0
  %1790 = vdwg.mxu0
  %v1791 = vadd.f32 %v1718, %v1788
  %s1792 = scalar_lea.vmem [#allocation3], 72
  %v1793 = vld [vmem:[%s1792] sm:$0xff]
  %v1794 = vsel %vm460, %v1713, 0
  %1796 = vmatprep.subr.mxu0 0.0
  %1797 = vmatpush1.msra.mxu0 %v455
  %1798 = vmatprep.subr.mxu0 0.0
  %1799 = vmatpush1.msra.mxu0 %v456
  %1800 = vmatprep.subr.mxu0 0.0
  %1801 = vmatpush1.msra.mxu0 %v457
  %1802 = vmatprep.subr.mxu0 0.0
  %1803 = vmatpush1.msra.mxu0 %v458
  %1804 = vmatprep.subr.mxu0 0.0
  %1805 = vmatpush1.msra.mxu0 0.0
  %1806 = vmatprep.subr.mxu0 0.0
  %1807 = vmatpush1.msra.mxu0 0.0
  %1808 = vmatprep.subr.mxu0 0.0
  %1809 = vmatpush1.msra.mxu0 0.0
  %1810 = vmatprep.subr.mxu0 0.0
  %1811 = vmatpush1.msra.mxu0 0.0
  %1812 = vmatprep.subr.mxu0 0.0
  %1813 = vmatpush1.msra.mxu0 0.0
  %1814 = vmatprep.subr.mxu0 0.0
  %1815 = vmatpush1.msra.mxu0 0.0
  %1816 = vmatprep.subr.mxu0 0.0
  %1817 = vmatpush1.msra.mxu0 0.0
  %1818 = vmatprep.subr.mxu0 0.0
  %1819 = vmatpush1.msra.mxu0 0.0
  %1820 = vmatprep.subr.mxu0 0.0
  %1821 = vmatpush1.msra.mxu0 0.0
  %1822 = vmatprep.subr.mxu0 0.0
  %1823 = vmatpush1.msra.mxu0 0.0
  %1824 = vmatprep.subr.mxu0 0.0
  %1825 = vmatpush1.msra.mxu0 0.0
  %1826 = vmatprep.subr.mxu0 0.0
  %1827 = vmatpush1.msra.mxu0 0.0
  %1828 = vmatprep.subr.mxu0 0.0
  %1829 = vmatpush1.msra.mxu0 0.0
  %1830 = vmatprep.subr.mxu0 0.0
  %1831 = vmatpush1.msra.mxu0 0.0
  %1832 = vmatprep.subr.mxu0 0.0
  %1833 = vmatpush1.msra.mxu0 0.0
  %1834 = vmatprep.subr.mxu0 0.0
  %1835 = vmatpush1.msra.mxu0 0.0
  %1836 = vmatprep.subr.mxu0 0.0
  %1837 = vmatpush1.msra.mxu0 0.0
  %1838 = vmatprep.subr.mxu0 0.0
  %1839 = vmatpush1.msra.mxu0 0.0
  %1840 = vmatprep.subr.mxu0 0.0
  %1841 = vmatpush1.msra.mxu0 0.0
  %1842 = vmatprep.subr.mxu0 0.0
  %1843 = vmatpush1.msra.mxu0 0.0
  %1844 = vmatprep.subr.mxu0 0.0
  %1845 = vmatpush1.msra.mxu0 0.0
  %1846 = vmatprep.subr.mxu0 0.0
  %1847 = vmatpush1.msra.mxu0 0.0
  %1848 = vmatprep.subr.mxu0 0.0
  %1849 = vmatpush1.msra.mxu0 0.0
  %1850 = vmatprep.subr.mxu0 0.0
  %1851 = vmatpush1.msra.mxu0 0.0
  %1852 = vmatprep.subr.mxu0 0.0
  %1853 = vmatpush1.msra.mxu0 0.0
  %1854 = vmatprep.subr.mxu0 0.0
  %1855 = vmatpush1.msra.mxu0 0.0
  %1856 = vmatprep.subr.mxu0 0.0
  %1857 = vmatpush1.msra.mxu0 0.0
  %1858 = vmatprep.subr.mxu0 0.0
  %1859 = vmatpush1.msra.mxu0 0.0
  %1860 = vmatprep.mubr.f32.mxu0 0.0
  %1861 = vmatmul.mubr.f32.gmra.mrb[0].mxu0 %v1794
  %v1862 = vpop.f32.mrb[0].mxu0
  %v1863 = vadd.f32 0.0, %v1862
  %v1864 = vpop.f32.mrb[0].mxu0
  %1865 = vdwg.mxu0
  %v1866 = vadd.f32 %v1793, %v1863
  %v1867 = vxor.u32 %v1791, 2147483648
  %v1868 = vmul.f32 %v1867, 1.442695
  %v1869 = vpow.pop %v1868
  %v1870 = vadd.f32 %v1869, 1.0
  %v1871 = vrcp.pop %v1870
  %v1872 = vmul.f32 1.0, %v1871
  %v1873 = vtanh.pop %v1791
  %v1874 = vmul.f32 %v1872, %v1674
  %1876 = vrot.lane.b32.xlu0 %v1873, 64
  %v1877 = vpop.permute.xlu0 %1876
  %v1879 = vmul.f32 %v1872, %v1877
  %1881 = vrot.lane.b32.xlu0 %v1879, 32
  %v1882 = vpop.permute.xlu0 %1881
  %v1884 = vadd.f32 %v1874, %v1882
  %v1885 = vtanh.pop %v1884
  %1887 = vrot.lane.b32.xlu0 %v1885, 64
  %v1888 = vpop.permute.xlu0 %1887
  %v1890 = vmul.f32 %v1872, %v1888
  %v1891 = vxor.u32 %v1866, 2147483648
  %v1892 = vmul.f32 %v1891, 1.442695
  %v1893 = vpow.pop %v1892
  %v1894 = vadd.f32 %v1893, 1.0
  %v1895 = vrcp.pop %v1894
  %v1896 = vmul.f32 1.0, %v1895
  %v1897 = vtanh.pop %v1866
  %v1898 = vmul.f32 %v1896, %v1698
  %1900 = vrot.lane.b32.xlu0 %v1897, 64
  %v1901 = vpop.permute.xlu0 %1900
  %v1903 = vmul.f32 %v1896, %v1901
  %1905 = vrot.lane.b32.xlu0 %v1903, 32
  %v1906 = vpop.permute.xlu0 %1905
  %v1908 = vadd.f32 %v1898, %v1906
  %v1909 = vtanh.pop %v1908
  %1911 = vrot.lane.b32.xlu0 %v1909, 64
  %v1912 = vpop.permute.xlu0 %1911
  %v1914 = vmul.f32 %v1896, %v1912
  %1916 = vrot.lane.b32.xlu0 %v1890, 32
  %v1917 = vpop.permute.xlu0 %1916
  %s1919 = scalar_lea.vmem [#allocation4], 48
  %1920 = vst.msk [vmem:[%s1919] sm:$0xff] %vm460, %v1917
  %1922 = vrot.lane.b32.xlu0 %v1914, 32
  %v1923 = vpop.permute.xlu0 %1922
  %s1925 = scalar_lea.vmem [#allocation5], 72
  %1926 = vst.msk [vmem:[%s1925] sm:$0xff] %vm460, %v1923
  %s1927 = scalar_lea.vmem [#allocation2], 56
  %v1928 = vld [vmem:[%s1927] sm:$0xff]
  %v1929 = vsel %vm460, %v1917, 0
  %1931 = vmatprep.subr.mxu0 0.0
  %1932 = vmatpush1.msra.mxu0 %v451
  %1933 = vmatprep.subr.mxu0 0.0
  %1934 = vmatpush1.msra.mxu0 %v452
  %1935 = vmatprep.subr.mxu0 0.0
  %1936 = vmatpush1.msra.mxu0 %v453
  %1937 = vmatprep.subr.mxu0 0.0
  %1938 = vmatpush1.msra.mxu0 %v454
  %1939 = vmatprep.subr.mxu0 0.0
  %1940 = vmatpush1.msra.mxu0 0.0
  %1941 = vmatprep.subr.mxu0 0.0
  %1942 = vmatpush1.msra.mxu0 0.0
  %1943 = vmatprep.subr.mxu0 0.0
  %1944 = vmatpush1.msra.mxu0 0.0
  %1945 = vmatprep.subr.mxu0 0.0
  %1946 = vmatpush1.msra.mxu0 0.0
  %1947 = vmatprep.subr.mxu0 0.0
  %1948 = vmatpush1.msra.mxu0 0.0
  %1949 = vmatprep.subr.mxu0 0.0
  %1950 = vmatpush1.msra.mxu0 0.0
  %1951 = vmatprep.subr.mxu0 0.0
  %1952 = vmatpush1.msra.mxu0 0.0
  %1953 = vmatprep.subr.mxu0 0.0
  %1954 = vmatpush1.msra.mxu0 0.0
  %1955 = vmatprep.subr.mxu0 0.0
  %1956 = vmatpush1.msra.mxu0 0.0
  %1957 = vmatprep.subr.mxu0 0.0
  %1958 = vmatpush1.msra.mxu0 0.0
  %1959 = vmatprep.subr.mxu0 0.0
  %1960 = vmatpush1.msra.mxu0 0.0
  %1961 = vmatprep.subr.mxu0 0.0
  %1962 = vmatpush1.msra.mxu0 0.0
  %1963 = vmatprep.subr.mxu0 0.0
  %1964 = vmatpush1.msra.mxu0 0.0
  %1965 = vmatprep.subr.mxu0 0.0
  %1966 = vmatpush1.msra.mxu0 0.0
  %1967 = vmatprep.subr.mxu0 0.0
  %1968 = vmatpush1.msra.mxu0 0.0
  %1969 = vmatprep.subr.mxu0 0.0
  %1970 = vmatpush1.msra.mxu0 0.0
  %1971 = vmatprep.subr.mxu0 0.0
  %1972 = vmatpush1.msra.mxu0 0.0
  %1973 = vmatprep.subr.mxu0 0.0
  %1974 = vmatpush1.msra.mxu0 0.0
  %1975 = vmatprep.subr.mxu0 0.0
  %1976 = vmatpush1.msra.mxu0 0.0
  %1977 = vmatprep.subr.mxu0 0.0
  %1978 = vmatpush1.msra.mxu0 0.0
  %1979 = vmatprep.subr.mxu0 0.0
  %1980 = vmatpush1.msra.mxu0 0.0
  %1981 = vmatprep.subr.mxu0 0.0
  %1982 = vmatpush1.msra.mxu0 0.0
  %1983 = vmatprep.subr.mxu0 0.0
  %1984 = vmatpush1.msra.mxu0 0.0
  %1985 = vmatprep.subr.mxu0 0.0
  %1986 = vmatpush1.msra.mxu0 0.0
  %1987 = vmatprep.subr.mxu0 0.0
  %1988 = vmatpush1.msra.mxu0 0.0
  %1989 = vmatprep.subr.mxu0 0.0
  %1990 = vmatpush1.msra.mxu0 0.0
  %1991 = vmatprep.subr.mxu0 0.0
  %1992 = vmatpush1.msra.mxu0 0.0
  %1993 = vmatprep.subr.mxu0 0.0
  %1994 = vmatpush1.msra.mxu0 0.0
  %1995 = vmatprep.mubr.f32.mxu0 0.0
  %1996 = vmatmul.mubr.f32.gmra.mrb[0].mxu0 %v1929
  %v1997 = vpop.f32.mrb[0].mxu0
  %v1998 = vadd.f32 0.0, %v1997
  %v1999 = vpop.f32.mrb[0].mxu0
  %2000 = vdwg.mxu0
  %v2001 = vadd.f32 %v1928, %v1998
  %s2002 = scalar_lea.vmem [#allocation3], 64
  %v2003 = vld [vmem:[%s2002] sm:$0xff]
  %v2004 = vsel %vm460, %v1923, 0
  %2006 = vmatprep.subr.mxu0 0.0
  %2007 = vmatpush1.msra.mxu0 %v455
  %2008 = vmatprep.subr.mxu0 0.0
  %2009 = vmatpush1.msra.mxu0 %v456
  %2010 = vmatprep.subr.mxu0 0.0
  %2011 = vmatpush1.msra.mxu0 %v457
  %2012 = vmatprep.subr.mxu0 0.0
  %2013 = vmatpush1.msra.mxu0 %v458
  %2014 = vmatprep.subr.mxu0 0.0
  %2015 = vmatpush1.msra.mxu0 0.0
  %2016 = vmatprep.subr.mxu0 0.0
  %2017 = vmatpush1.msra.mxu0 0.0
  %2018 = vmatprep.subr.mxu0 0.0
  %2019 = vmatpush1.msra.mxu0 0.0
  %2020 = vmatprep.subr.mxu0 0.0
  %2021 = vmatpush1.msra.mxu0 0.0
  %2022 = vmatprep.subr.mxu0 0.0
  %2023 = vmatpush1.msra.mxu0 0.0
  %2024 = vmatprep.subr.mxu0 0.0
  %2025 = vmatpush1.msra.mxu0 0.0
  %2026 = vmatprep.subr.mxu0 0.0
  %2027 = vmatpush1.msra.mxu0 0.0
  %2028 = vmatprep.subr.mxu0 0.0
  %2029 = vmatpush1.msra.mxu0 0.0
  %2030 = vmatprep.subr.mxu0 0.0
  %2031 = vmatpush1.msra.mxu0 0.0
  %2032 = vmatprep.subr.mxu0 0.0
  %2033 = vmatpush1.msra.mxu0 0.0
  %2034 = vmatprep.subr.mxu0 0.0
  %2035 = vmatpush1.msra.mxu0 0.0
  %2036 = vmatprep.subr.mxu0 0.0
  %2037 = vmatpush1.msra.mxu0 0.0
  %2038 = vmatprep.subr.mxu0 0.0
  %2039 = vmatpush1.msra.mxu0 0.0
  %2040 = vmatprep.subr.mxu0 0.0
  %2041 = vmatpush1.msra.mxu0 0.0
  %2042 = vmatprep.subr.mxu0 0.0
  %2043 = vmatpush1.msra.mxu0 0.0
  %2044 = vmatprep.subr.mxu0 0.0
  %2045 = vmatpush1.msra.mxu0 0.0
  %2046 = vmatprep.subr.mxu0 0.0
  %2047 = vmatpush1.msra.mxu0 0.0
  %2048 = vmatprep.subr.mxu0 0.0
  %2049 = vmatpush1.msra.mxu0 0.0
  %2050 = vmatprep.subr.mxu0 0.0
  %2051 = vmatpush1.msra.mxu0 0.0
  %2052 = vmatprep.subr.mxu0 0.0
  %2053 = vmatpush1.msra.mxu0 0.0
  %2054 = vmatprep.subr.mxu0 0.0
  %2055 = vmatpush1.msra.mxu0 0.0
  %2056 = vmatprep.subr.mxu0 0.0
  %2057 = vmatpush1.msra.mxu0 0.0
  %2058 = vmatprep.subr.mxu0 0.0
  %2059 = vmatpush1.msra.mxu0 0.0
  %2060 = vmatprep.subr.mxu0 0.0
  %2061 = vmatpush1.msra.mxu0 0.0
  %2062 = vmatprep.subr.mxu0 0.0
  %2063 = vmatpush1.msra.mxu0 0.0
  %2064 = vmatprep.subr.mxu0 0.0
  %2065 = vmatpush1.msra.mxu0 0.0
  %2066 = vmatprep.subr.mxu0 0.0
  %2067 = vmatpush1.msra.mxu0 0.0
  %2068 = vmatprep.subr.mxu0 0.0
  %2069 = vmatpush1.msra.mxu0 0.0
  %2070 = vmatprep.mubr.f32.mxu0 0.0
  %2071 = vmatmul.mubr.f32.gmra.mrb[0].mxu0 %v2004
  %v2072 = vpop.f32.mrb[0].mxu0
  %v2073 = vadd.f32 0.0, %v2072
  %v2074 = vpop.f32.mrb[0].mxu0
  %2075 = vdwg.mxu0
  %v2076 = vadd.f32 %v2003, %v2073
  %v2077 = vxor.u32 %v2001, 2147483648
  %v2078 = vmul.f32 %v2077, 1.442695
  %v2079 = vpow.pop %v2078
  %v2080 = vadd.f32 %v2079, 1.0
  %v2081 = vrcp.pop %v2080
  %v2082 = vmul.f32 1.0, %v2081
  %v2083 = vtanh.pop %v2001
  %v2084 = vmul.f32 %v2082, %v1884
  %2086 = vrot.lane.b32.xlu0 %v2083, 64
  %v2087 = vpop.permute.xlu0 %2086
  %v2089 = vmul.f32 %v2082, %v2087
  %2091 = vrot.lane.b32.xlu0 %v2089, 32
  %v2092 = vpop.permute.xlu0 %2091
  %v2094 = vadd.f32 %v2084, %v2092
  %v2095 = vtanh.pop %v2094
  %2097 = vrot.lane.b32.xlu0 %v2095, 64
  %v2098 = vpop.permute.xlu0 %2097
  %v2100 = vmul.f32 %v2082, %v2098
  %v2101 = vxor.u32 %v2076, 2147483648
  %v2102 = vmul.f32 %v2101, 1.442695
  %v2103 = vpow.pop %v2102
  %v2104 = vadd.f32 %v2103, 1.0
  %v2105 = vrcp.pop %v2104
  %v2106 = vmul.f32 1.0, %v2105
  %v2107 = vtanh.pop %v2076
  %v2108 = vmul.f32 %v2106, %v1908
  %2110 = vrot.lane.b32.xlu0 %v2107, 64
  %v2111 = vpop.permute.xlu0 %2110
  %v2113 = vmul.f32 %v2106, %v2111
  %2115 = vrot.lane.b32.xlu0 %v2113, 32
  %v2116 = vpop.permute.xlu0 %2115
  %v2118 = vadd.f32 %v2108, %v2116
  %v2119 = vtanh.pop %v2118
  %2121 = vrot.lane.b32.xlu0 %v2119, 64
  %v2122 = vpop.permute.xlu0 %2121
  %v2124 = vmul.f32 %v2106, %v2122
  %2126 = vrot.lane.b32.xlu0 %v2100, 32
  %v2127 = vpop.permute.xlu0 %2126
  %s2129 = scalar_lea.vmem [#allocation4], 56
  %2130 = vst.msk [vmem:[%s2129] sm:$0xff] %vm460, %v2127
  %2132 = vrot.lane.b32.xlu0 %v2124, 32
  %v2133 = vpop.permute.xlu0 %2132
  %s2135 = scalar_lea.vmem [#allocation5], 64
  %2136 = vst.msk [vmem:[%s2135] sm:$0xff] %vm460, %v2133
  %s2137 = scalar_lea.vmem [#allocation2], 64
  %v2138 = vld [vmem:[%s2137] sm:$0xff]
  %v2139 = vsel %vm460, %v2127, 0
  %2141 = vmatprep.subr.mxu0 0.0
  %2142 = vmatpush1.msra.mxu0 %v451
  %2143 = vmatprep.subr.mxu0 0.0
  %2144 = vmatpush1.msra.mxu0 %v452
  %2145 = vmatprep.subr.mxu0 0.0
  %2146 = vmatpush1.msra.mxu0 %v453
  %2147 = vmatprep.subr.mxu0 0.0
  %2148 = vmatpush1.msra.mxu0 %v454
  %2149 = vmatprep.subr.mxu0 0.0
  %2150 = vmatpush1.msra.mxu0 0.0
  %2151 = vmatprep.subr.mxu0 0.0
  %2152 = vmatpush1.msra.mxu0 0.0
  %2153 = vmatprep.subr.mxu0 0.0
  %2154 = vmatpush1.msra.mxu0 0.0
  %2155 = vmatprep.subr.mxu0 0.0
  %2156 = vmatpush1.msra.mxu0 0.0
  %2157 = vmatprep.subr.mxu0 0.0
  %2158 = vmatpush1.msra.mxu0 0.0
  %2159 = vmatprep.subr.mxu0 0.0
  %2160 = vmatpush1.msra.mxu0 0.0
  %2161 = vmatprep.subr.mxu0 0.0
  %2162 = vmatpush1.msra.mxu0 0.0
  %2163 = vmatprep.subr.mxu0 0.0
  %2164 = vmatpush1.msra.mxu0 0.0
  %2165 = vmatprep.subr.mxu0 0.0
  %2166 = vmatpush1.msra.mxu0 0.0
  %2167 = vmatprep.subr.mxu0 0.0
  %2168 = vmatpush1.msra.mxu0 0.0
  %2169 = vmatprep.subr.mxu0 0.0
  %2170 = vmatpush1.msra.mxu0 0.0
  %2171 = vmatprep.subr.mxu0 0.0
  %2172 = vmatpush1.msra.mxu0 0.0
  %2173 = vmatprep.subr.mxu0 0.0
  %2174 = vmatpush1.msra.mxu0 0.0
  %2175 = vmatprep.subr.mxu0 0.0
  %2176 = vmatpush1.msra.mxu0 0.0
  %2177 = vmatprep.subr.mxu0 0.0
  %2178 = vmatpush1.msra.mxu0 0.0
  %2179 = vmatprep.subr.mxu0 0.0
  %2180 = vmatpush1.msra.mxu0 0.0
  %2181 = vmatprep.subr.mxu0 0.0
  %2182 = vmatpush1.msra.mxu0 0.0
  %2183 = vmatprep.subr.mxu0 0.0
  %2184 = vmatpush1.msra.mxu0 0.0
  %2185 = vmatprep.subr.mxu0 0.0
  %2186 = vmatpush1.msra.mxu0 0.0
  %2187 = vmatprep.subr.mxu0 0.0
  %2188 = vmatpush1.msra.mxu0 0.0
  %2189 = vmatprep.subr.mxu0 0.0
  %2190 = vmatpush1.msra.mxu0 0.0
  %2191 = vmatprep.subr.mxu0 0.0
  %2192 = vmatpush1.msra.mxu0 0.0
  %2193 = vmatprep.subr.mxu0 0.0
  %2194 = vmatpush1.msra.mxu0 0.0
  %2195 = vmatprep.subr.mxu0 0.0
  %2196 = vmatpush1.msra.mxu0 0.0
  %2197 = vmatprep.subr.mxu0 0.0
  %2198 = vmatpush1.msra.mxu0 0.0
  %2199 = vmatprep.subr.mxu0 0.0
  %2200 = vmatpush1.msra.mxu0 0.0
  %2201 = vmatprep.subr.mxu0 0.0
  %2202 = vmatpush1.msra.mxu0 0.0
  %2203 = vmatprep.subr.mxu0 0.0
  %2204 = vmatpush1.msra.mxu0 0.0
  %2205 = vmatprep.mubr.f32.mxu0 0.0
  %2206 = vmatmul.mubr.f32.gmra.mrb[0].mxu0 %v2139
  %v2207 = vpop.f32.mrb[0].mxu0
  %v2208 = vadd.f32 0.0, %v2207
  %v2209 = vpop.f32.mrb[0].mxu0
  %2210 = vdwg.mxu0
  %v2211 = vadd.f32 %v2138, %v2208
  %s2212 = scalar_lea.vmem [#allocation3], 56
  %v2213 = vld [vmem:[%s2212] sm:$0xff]
  %v2214 = vsel %vm460, %v2133, 0
  %2216 = vmatprep.subr.mxu0 0.0
  %2217 = vmatpush1.msra.mxu0 %v455
  %2218 = vmatprep.subr.mxu0 0.0
  %2219 = vmatpush1.msra.mxu0 %v456
  %2220 = vmatprep.subr.mxu0 0.0
  %2221 = vmatpush1.msra.mxu0 %v457
  %2222 = vmatprep.subr.mxu0 0.0
  %2223 = vmatpush1.msra.mxu0 %v458
  %2224 = vmatprep.subr.mxu0 0.0
  %2225 = vmatpush1.msra.mxu0 0.0
  %2226 = vmatprep.subr.mxu0 0.0
  %2227 = vmatpush1.msra.mxu0 0.0
  %2228 = vmatprep.subr.mxu0 0.0
  %2229 = vmatpush1.msra.mxu0 0.0
  %2230 = vmatprep.subr.mxu0 0.0
  %2231 = vmatpush1.msra.mxu0 0.0
  %2232 = vmatprep.subr.mxu0 0.0
  %2233 = vmatpush1.msra.mxu0 0.0
  %2234 = vmatprep.subr.mxu0 0.0
  %2235 = vmatpush1.msra.mxu0 0.0
  %2236 = vmatprep.subr.mxu0 0.0
  %2237 = vmatpush1.msra.mxu0 0.0
  %2238 = vmatprep.subr.mxu0 0.0
  %2239 = vmatpush1.msra.mxu0 0.0
  %2240 = vmatprep.subr.mxu0 0.0
  %2241 = vmatpush1.msra.mxu0 0.0
  %2242 = vmatprep.subr.mxu0 0.0
  %2243 = vmatpush1.msra.mxu0 0.0
  %2244 = vmatprep.subr.mxu0 0.0
  %2245 = vmatpush1.msra.mxu0 0.0
  %2246 = vmatprep.subr.mxu0 0.0
  %2247 = vmatpush1.msra.mxu0 0.0
  %2248 = vmatprep.subr.mxu0 0.0
  %2249 = vmatpush1.msra.mxu0 0.0
  %2250 = vmatprep.subr.mxu0 0.0
  %2251 = vmatpush1.msra.mxu0 0.0
  %2252 = vmatprep.subr.mxu0 0.0
  %2253 = vmatpush1.msra.mxu0 0.0
  %2254 = vmatprep.subr.mxu0 0.0
  %2255 = vmatpush1.msra.mxu0 0.0
  %2256 = vmatprep.subr.mxu0 0.0
  %2257 = vmatpush1.msra.mxu0 0.0
  %2258 = vmatprep.subr.mxu0 0.0
  %2259 = vmatpush1.msra.mxu0 0.0
  %2260 = vmatprep.subr.mxu0 0.0
  %2261 = vmatpush1.msra.mxu0 0.0
  %2262 = vmatprep.subr.mxu0 0.0
  %2263 = vmatpush1.msra.mxu0 0.0
  %2264 = vmatprep.subr.mxu0 0.0
  %2265 = vmatpush1.msra.mxu0 0.0
  %2266 = vmatprep.subr.mxu0 0.0
  %2267 = vmatpush1.msra.mxu0 0.0
  %2268 = vmatprep.subr.mxu0 0.0
  %2269 = vmatpush1.msra.mxu0 0.0
  %2270 = vmatprep.subr.mxu0 0.0
  %2271 = vmatpush1.msra.mxu0 0.0
  %2272 = vmatprep.subr.mxu0 0.0
  %2273 = vmatpush1.msra.mxu0 0.0
  %2274 = vmatprep.subr.mxu0 0.0
  %2275 = vmatpush1.msra.mxu0 0.0
  %2276 = vmatprep.subr.mxu0 0.0
  %2277 = vmatpush1.msra.mxu0 0.0
  %2278 = vmatprep.subr.mxu0 0.0
  %2279 = vmatpush1.msra.mxu0 0.0
  %2280 = vmatprep.mubr.f32.mxu0 0.0
  %2281 = vmatmul.mubr.f32.gmra.mrb[0].mxu0 %v2214
  %v2282 = vpop.f32.mrb[0].mxu0
  %v2283 = vadd.f32 0.0, %v2282
  %v2284 = vpop.f32.mrb[0].mxu0
  %2285 = vdwg.mxu0
  %v2286 = vadd.f32 %v2213, %v2283
  %v2287 = vxor.u32 %v2211, 2147483648
  %v2288 = vmul.f32 %v2287, 1.442695
  %v2289 = vpow.pop %v2288
  %v2290 = vadd.f32 %v2289, 1.0
  %v2291 = vrcp.pop %v2290
  %v2292 = vmul.f32 1.0, %v2291
  %v2293 = vtanh.pop %v2211
  %v2294 = vmul.f32 %v2292, %v2094
  %2296 = vrot.lane.b32.xlu0 %v2293, 64
  %v2297 = vpop.permute.xlu0 %2296
  %v2299 = vmul.f32 %v2292, %v2297
  %2301 = vrot.lane.b32.xlu0 %v2299, 32
  %v2302 = vpop.permute.xlu0 %2301
  %v2304 = vadd.f32 %v2294, %v2302
  %v2305 = vtanh.pop %v2304
  %2307 = vrot.lane.b32.xlu0 %v2305, 64
  %v2308 = vpop.permute.xlu0 %2307
  %v2310 = vmul.f32 %v2292, %v2308
  %v2311 = vxor.u32 %v2286, 2147483648
  %v2312 = vmul.f32 %v2311, 1.442695
  %v2313 = vpow.pop %v2312
  %v2314 = vadd.f32 %v2313, 1.0
  %v2315 = vrcp.pop %v2314
  %v2316 = vmul.f32 1.0, %v2315
  %v2317 = vtanh.pop %v2286
  %v2318 = vmul.f32 %v2316, %v2118
  %2320 = vrot.lane.b32.xlu0 %v2317, 64
  %v2321 = vpop.permute.xlu0 %2320
  %v2323 = vmul.f32 %v2316, %v2321
  %2325 = vrot.lane.b32.xlu0 %v2323, 32
  %v2326 = vpop.permute.xlu0 %2325
  %v2328 = vadd.f32 %v2318, %v2326
  %v2329 = vtanh.pop %v2328
  %2331 = vrot.lane.b32.xlu0 %v2329, 64
  %v2332 = vpop.permute.xlu0 %2331
  %v2334 = vmul.f32 %v2316, %v2332
  %2336 = vrot.lane.b32.xlu0 %v2310, 32
  %v2337 = vpop.permute.xlu0 %2336
  %s2339 = scalar_lea.vmem [#allocation4], 64
  %2340 = vst.msk [vmem:[%s2339] sm:$0xff] %vm460, %v2337
  %2342 = vrot.lane.b32.xlu0 %v2334, 32
  %v2343 = vpop.permute.xlu0 %2342
  %s2345 = scalar_lea.vmem [#allocation5], 56
  %2346 = vst.msk [vmem:[%s2345] sm:$0xff] %vm460, %v2343
  %s2347 = scalar_lea.vmem [#allocation2], 72
  %v2348 = vld [vmem:[%s2347] sm:$0xff]
  %v2349 = vsel %vm460, %v2337, 0
  %2351 = vmatprep.subr.mxu0 0.0
  %2352 = vmatpush1.msra.mxu0 %v451
  %2353 = vmatprep.subr.mxu0 0.0
  %2354 = vmatpush1.msra.mxu0 %v452
  %2355 = vmatprep.subr.mxu0 0.0
  %2356 = vmatpush1.msra.mxu0 %v453
  %2357 = vmatprep.subr.mxu0 0.0
  %2358 = vmatpush1.msra.mxu0 %v454
  %2359 = vmatprep.subr.mxu0 0.0
  %2360 = vmatpush1.msra.mxu0 0.0
  %2361 = vmatprep.subr.mxu0 0.0
  %2362 = vmatpush1.msra.mxu0 0.0
  %2363 = vmatprep.subr.mxu0 0.0
  %2364 = vmatpush1.msra.mxu0 0.0
  %2365 = vmatprep.subr.mxu0 0.0
  %2366 = vmatpush1.msra.mxu0 0.0
  %2367 = vmatprep.subr.mxu0 0.0
  %2368 = vmatpush1.msra.mxu0 0.0
  %2369 = vmatprep.subr.mxu0 0.0
  %2370 = vmatpush1.msra.mxu0 0.0
  %2371 = vmatprep.subr.mxu0 0.0
  %2372 = vmatpush1.msra.mxu0 0.0
  %2373 = vmatprep.subr.mxu0 0.0
  %2374 = vmatpush1.msra.mxu0 0.0
  %2375 = vmatprep.subr.mxu0 0.0
  %2376 = vmatpush1.msra.mxu0 0.0
  %2377 = vmatprep.subr.mxu0 0.0
  %2378 = vmatpush1.msra.mxu0 0.0
  %2379 = vmatprep.subr.mxu0 0.0
  %2380 = vmatpush1.msra.mxu0 0.0
  %2381 = vmatprep.subr.mxu0 0.0
  %2382 = vmatpush1.msra.mxu0 0.0
  %2383 = vmatprep.subr.mxu0 0.0
  %2384 = vmatpush1.msra.mxu0 0.0
  %2385 = vmatprep.subr.mxu0 0.0
  %2386 = vmatpush1.msra.mxu0 0.0
  %2387 = vmatprep.subr.mxu0 0.0
  %2388 = vmatpush1.msra.mxu0 0.0
  %2389 = vmatprep.subr.mxu0 0.0
  %2390 = vmatpush1.msra.mxu0 0.0
  %2391 = vmatprep.subr.mxu0 0.0
  %2392 = vmatpush1.msra.mxu0 0.0
  %2393 = vmatprep.subr.mxu0 0.0
  %2394 = vmatpush1.msra.mxu0 0.0
  %2395 = vmatprep.subr.mxu0 0.0
  %2396 = vmatpush1.msra.mxu0 0.0
  %2397 = vmatprep.subr.mxu0 0.0
  %2398 = vmatpush1.msra.mxu0 0.0
  %2399 = vmatprep.subr.mxu0 0.0
  %2400 = vmatpush1.msra.mxu0 0.0
  %2401 = vmatprep.subr.mxu0 0.0
  %2402 = vmatpush1.msra.mxu0 0.0
  %2403 = vmatprep.subr.mxu0 0.0
  %2404 = vmatpush1.msra.mxu0 0.0
  %2405 = vmatprep.subr.mxu0 0.0
  %2406 = vmatpush1.msra.mxu0 0.0
  %2407 = vmatprep.subr.mxu0 0.0
  %2408 = vmatpush1.msra.mxu0 0.0
  %2409 = vmatprep.subr.mxu0 0.0
  %2410 = vmatpush1.msra.mxu0 0.0
  %2411 = vmatprep.subr.mxu0 0.0
  %2412 = vmatpush1.msra.mxu0 0.0
  %2413 = vmatprep.subr.mxu0 0.0
  %2414 = vmatpush1.msra.mxu0 0.0
  %2415 = vmatprep.mubr.f32.mxu0 0.0
  %2416 = vmatmul.mubr.f32.gmra.mrb[0].mxu0 %v2349
  %v2417 = vpop.f32.mrb[0].mxu0
  %v2418 = vadd.f32 0.0, %v2417
  %v2419 = vpop.f32.mrb[0].mxu0
  %2420 = vdwg.mxu0
  %v2421 = vadd.f32 %v2348, %v2418
  %s2422 = scalar_lea.vmem [#allocation3], 48
  %v2423 = vld [vmem:[%s2422] sm:$0xff]
  %v2424 = vsel %vm460, %v2343, 0
  %2426 = vmatprep.subr.mxu0 0.0
  %2427 = vmatpush1.msra.mxu0 %v455
  %2428 = vmatprep.subr.mxu0 0.0
  %2429 = vmatpush1.msra.mxu0 %v456
  %2430 = vmatprep.subr.mxu0 0.0
  %2431 = vmatpush1.msra.mxu0 %v457
  %2432 = vmatprep.subr.mxu0 0.0
  %2433 = vmatpush1.msra.mxu0 %v458
  %2434 = vmatprep.subr.mxu0 0.0
  %2435 = vmatpush1.msra.mxu0 0.0
  %2436 = vmatprep.subr.mxu0 0.0
  %2437 = vmatpush1.msra.mxu0 0.0
  %2438 = vmatprep.subr.mxu0 0.0
  %2439 = vmatpush1.msra.mxu0 0.0
  %2440 = vmatprep.subr.mxu0 0.0
  %2441 = vmatpush1.msra.mxu0 0.0
  %2442 = vmatprep.subr.mxu0 0.0
  %2443 = vmatpush1.msra.mxu0 0.0
  %2444 = vmatprep.subr.mxu0 0.0
  %2445 = vmatpush1.msra.mxu0 0.0
  %2446 = vmatprep.subr.mxu0 0.0
  %2447 = vmatpush1.msra.mxu0 0.0
  %2448 = vmatprep.subr.mxu0 0.0
  %2449 = vmatpush1.msra.mxu0 0.0
  %2450 = vmatprep.subr.mxu0 0.0
  %2451 = vmatpush1.msra.mxu0 0.0
  %2452 = vmatprep.subr.mxu0 0.0
  %2453 = vmatpush1.msra.mxu0 0.0
  %2454 = vmatprep.subr.mxu0 0.0
  %2455 = vmatpush1.msra.mxu0 0.0
  %2456 = vmatprep.subr.mxu0 0.0
  %2457 = vmatpush1.msra.mxu0 0.0
  %2458 = vmatprep.subr.mxu0 0.0
  %2459 = vmatpush1.msra.mxu0 0.0
  %2460 = vmatprep.subr.mxu0 0.0
  %2461 = vmatpush1.msra.mxu0 0.0
  %2462 = vmatprep.subr.mxu0 0.0
  %2463 = vmatpush1.msra.mxu0 0.0
  %2464 = vmatprep.subr.mxu0 0.0
  %2465 = vmatpush1.msra.mxu0 0.0
  %2466 = vmatprep.subr.mxu0 0.0
  %2467 = vmatpush1.msra.mxu0 0.0
  %2468 = vmatprep.subr.mxu0 0.0
  %2469 = vmatpush1.msra.mxu0 0.0
  %2470 = vmatprep.subr.mxu0 0.0
  %2471 = vmatpush1.msra.mxu0 0.0
  %2472 = vmatprep.subr.mxu0 0.0
  %2473 = vmatpush1.msra.mxu0 0.0
  %2474 = vmatprep.subr.mxu0 0.0
  %2475 = vmatpush1.msra.mxu0 0.0
  %2476 = vmatprep.subr.mxu0 0.0
  %2477 = vmatpush1.msra.mxu0 0.0
  %2478 = vmatprep.subr.mxu0 0.0
  %2479 = vmatpush1.msra.mxu0 0.0
  %2480 = vmatprep.subr.mxu0 0.0
  %2481 = vmatpush1.msra.mxu0 0.0
  %2482 = vmatprep.subr.mxu0 0.0
  %2483 = vmatpush1.msra.mxu0 0.0
  %2484 = vmatprep.subr.mxu0 0.0
  %2485 = vmatpush1.msra.mxu0 0.0
  %2486 = vmatprep.subr.mxu0 0.0
  %2487 = vmatpush1.msra.mxu0 0.0
  %2488 = vmatprep.subr.mxu0 0.0
  %2489 = vmatpush1.msra.mxu0 0.0
  %2490 = vmatprep.mubr.f32.mxu0 0.0
  %2491 = vmatmul.mubr.f32.gmra.mrb[0].mxu0 %v2424
  %v2492 = vpop.f32.mrb[0].mxu0
  %v2493 = vadd.f32 0.0, %v2492
  %v2494 = vpop.f32.mrb[0].mxu0
  %2495 = vdwg.mxu0
  %v2496 = vadd.f32 %v2423, %v2493
  %v2497 = vxor.u32 %v2421, 2147483648
  %v2498 = vmul.f32 %v2497, 1.442695
  %v2499 = vpow.pop %v2498
  %v2500 = vadd.f32 %v2499, 1.0
  %v2501 = vrcp.pop %v2500
  %v2502 = vmul.f32 1.0, %v2501
  %v2503 = vtanh.pop %v2421
  %v2504 = vmul.f32 %v2502, %v2304
  %2506 = vrot.lane.b32.xlu0 %v2503, 64
  %v2507 = vpop.permute.xlu0 %2506
  %v2509 = vmul.f32 %v2502, %v2507
  %2511 = vrot.lane.b32.xlu0 %v2509, 32
  %v2512 = vpop.permute.xlu0 %2511
  %v2514 = vadd.f32 %v2504, %v2512
  %v2515 = vtanh.pop %v2514
  %2517 = vrot.lane.b32.xlu0 %v2515, 64
  %v2518 = vpop.permute.xlu0 %2517
  %v2520 = vmul.f32 %v2502, %v2518
  %v2521 = vxor.u32 %v2496, 2147483648
  %v2522 = vmul.f32 %v2521, 1.442695
  %v2523 = vpow.pop %v2522
  %v2524 = vadd.f32 %v2523, 1.0
  %v2525 = vrcp.pop %v2524
  %v2526 = vmul.f32 1.0, %v2525
  %v2527 = vtanh.pop %v2496
  %v2528 = vmul.f32 %v2526, %v2328
  %2530 = vrot.lane.b32.xlu0 %v2527, 64
  %v2531 = vpop.permute.xlu0 %2530
  %v2533 = vmul.f32 %v2526, %v2531
  %2535 = vrot.lane.b32.xlu0 %v2533, 32
  %v2536 = vpop.permute.xlu0 %2535
  %v2538 = vadd.f32 %v2528, %v2536
  %v2539 = vtanh.pop %v2538
  %2541 = vrot.lane.b32.xlu0 %v2539, 64
  %v2542 = vpop.permute.xlu0 %2541
  %v2544 = vmul.f32 %v2526, %v2542
  %2546 = vrot.lane.b32.xlu0 %v2520, 32
  %v2547 = vpop.permute.xlu0 %2546
  %s2549 = scalar_lea.vmem [#allocation4], 72
  %2550 = vst.msk [vmem:[%s2549] sm:$0xff] %vm460, %v2547
  %2552 = vrot.lane.b32.xlu0 %v2544, 32
  %v2553 = vpop.permute.xlu0 %2552
  %s2555 = scalar_lea.vmem [#allocation5], 48
  %2556 = vst.msk [vmem:[%s2555] sm:$0xff] %vm460, %v2553
  %s2557 = scalar_lea.vmem [#allocation2], 80
  %v2558 = vld [vmem:[%s2557] sm:$0xff]
  %v2559 = vsel %vm460, %v2547, 0
  %2561 = vmatprep.subr.mxu0 0.0
  %2562 = vmatpush1.msra.mxu0 %v451
  %2563 = vmatprep.subr.mxu0 0.0
  %2564 = vmatpush1.msra.mxu0 %v452
  %2565 = vmatprep.subr.mxu0 0.0
  %2566 = vmatpush1.msra.mxu0 %v453
  %2567 = vmatprep.subr.mxu0 0.0
  %2568 = vmatpush1.msra.mxu0 %v454
  %2569 = vmatprep.subr.mxu0 0.0
  %2570 = vmatpush1.msra.mxu0 0.0
  %2571 = vmatprep.subr.mxu0 0.0
  %2572 = vmatpush1.msra.mxu0 0.0
  %2573 = vmatprep.subr.mxu0 0.0
  %2574 = vmatpush1.msra.mxu0 0.0
  %2575 = vmatprep.subr.mxu0 0.0
  %2576 = vmatpush1.msra.mxu0 0.0
  %2577 = vmatprep.subr.mxu0 0.0
  %2578 = vmatpush1.msra.mxu0 0.0
  %2579 = vmatprep.subr.mxu0 0.0
  %2580 = vmatpush1.msra.mxu0 0.0
  %2581 = vmatprep.subr.mxu0 0.0
  %2582 = vmatpush1.msra.mxu0 0.0
  %2583 = vmatprep.subr.mxu0 0.0
  %2584 = vmatpush1.msra.mxu0 0.0
  %2585 = vmatprep.subr.mxu0 0.0
  %2586 = vmatpush1.msra.mxu0 0.0
  %2587 = vmatprep.subr.mxu0 0.0
  %2588 = vmatpush1.msra.mxu0 0.0
  %2589 = vmatprep.subr.mxu0 0.0
  %2590 = vmatpush1.msra.mxu0 0.0
  %2591 = vmatprep.subr.mxu0 0.0
  %2592 = vmatpush1.msra.mxu0 0.0
  %2593 = vmatprep.subr.mxu0 0.0
  %2594 = vmatpush1.msra.mxu0 0.0
  %2595 = vmatprep.subr.mxu0 0.0
  %2596 = vmatpush1.msra.mxu0 0.0
  %2597 = vmatprep.subr.mxu0 0.0
  %2598 = vmatpush1.msra.mxu0 0.0
  %2599 = vmatprep.subr.mxu0 0.0
  %2600 = vmatpush1.msra.mxu0 0.0
  %2601 = vmatprep.subr.mxu0 0.0
  %2602 = vmatpush1.msra.mxu0 0.0
  %2603 = vmatprep.subr.mxu0 0.0
  %2604 = vmatpush1.msra.mxu0 0.0
  %2605 = vmatprep.subr.mxu0 0.0
  %2606 = vmatpush1.msra.mxu0 0.0
  %2607 = vmatprep.subr.mxu0 0.0
  %2608 = vmatpush1.msra.mxu0 0.0
  %2609 = vmatprep.subr.mxu0 0.0
  %2610 = vmatpush1.msra.mxu0 0.0
  %2611 = vmatprep.subr.mxu0 0.0
  %2612 = vmatpush1.msra.mxu0 0.0
  %2613 = vmatprep.subr.mxu0 0.0
  %2614 = vmatpush1.msra.mxu0 0.0
  %2615 = vmatprep.subr.mxu0 0.0
  %2616 = vmatpush1.msra.mxu0 0.0
  %2617 = vmatprep.subr.mxu0 0.0
  %2618 = vmatpush1.msra.mxu0 0.0
  %2619 = vmatprep.subr.mxu0 0.0
  %2620 = vmatpush1.msra.mxu0 0.0
  %2621 = vmatprep.subr.mxu0 0.0
  %2622 = vmatpush1.msra.mxu0 0.0
  %2623 = vmatprep.subr.mxu0 0.0
  %2624 = vmatpush1.msra.mxu0 0.0
  %2625 = vmatprep.mubr.f32.mxu0 0.0
  %2626 = vmatmul.mubr.f32.gmra.mrb[0].mxu0 %v2559
  %v2627 = vpop.f32.mrb[0].mxu0
  %v2628 = vadd.f32 0.0, %v2627
  %v2629 = vpop.f32.mrb[0].mxu0
  %2630 = vdwg.mxu0
  %v2631 = vadd.f32 %v2558, %v2628
  %s2632 = scalar_lea.vmem [#allocation3], 40
  %v2633 = vld [vmem:[%s2632] sm:$0xff]
  %v2634 = vsel %vm460, %v2553, 0
  %2636 = vmatprep.subr.mxu0 0.0
  %2637 = vmatpush1.msra.mxu0 %v455
  %2638 = vmatprep.subr.mxu0 0.0
  %2639 = vmatpush1.msra.mxu0 %v456
  %2640 = vmatprep.subr.mxu0 0.0
  %2641 = vmatpush1.msra.mxu0 %v457
  %2642 = vmatprep.subr.mxu0 0.0
  %2643 = vmatpush1.msra.mxu0 %v458
  %2644 = vmatprep.subr.mxu0 0.0
  %2645 = vmatpush1.msra.mxu0 0.0
  %2646 = vmatprep.subr.mxu0 0.0
  %2647 = vmatpush1.msra.mxu0 0.0
  %2648 = vmatprep.subr.mxu0 0.0
  %2649 = vmatpush1.msra.mxu0 0.0
  %2650 = vmatprep.subr.mxu0 0.0
  %2651 = vmatpush1.msra.mxu0 0.0
  %2652 = vmatprep.subr.mxu0 0.0
  %2653 = vmatpush1.msra.mxu0 0.0
  %2654 = vmatprep.subr.mxu0 0.0
  %2655 = vmatpush1.msra.mxu0 0.0
  %2656 = vmatprep.subr.mxu0 0.0
  %2657 = vmatpush1.msra.mxu0 0.0
  %2658 = vmatprep.subr.mxu0 0.0
  %2659 = vmatpush1.msra.mxu0 0.0
  %2660 = vmatprep.subr.mxu0 0.0
  %2661 = vmatpush1.msra.mxu0 0.0
  %2662 = vmatprep.subr.mxu0 0.0
  %2663 = vmatpush1.msra.mxu0 0.0
  %2664 = vmatprep.subr.mxu0 0.0
  %2665 = vmatpush1.msra.mxu0 0.0
  %2666 = vmatprep.subr.mxu0 0.0
  %2667 = vmatpush1.msra.mxu0 0.0
  %2668 = vmatprep.subr.mxu0 0.0
  %2669 = vmatpush1.msra.mxu0 0.0
  %2670 = vmatprep.subr.mxu0 0.0
  %2671 = vmatpush1.msra.mxu0 0.0
  %2672 = vmatprep.subr.mxu0 0.0
  %2673 = vmatpush1.msra.mxu0 0.0
  %2674 = vmatprep.subr.mxu0 0.0
  %2675 = vmatpush1.msra.mxu0 0.0
  %2676 = vmatprep.subr.mxu0 0.0
  %2677 = vmatpush1.msra.mxu0 0.0
  %2678 = vmatprep.subr.mxu0 0.0
  %2679 = vmatpush1.msra.mxu0 0.0
  %2680 = vmatprep.subr.mxu0 0.0
  %2681 = vmatpush1.msra.mxu0 0.0
  %2682 = vmatprep.subr.mxu0 0.0
  %2683 = vmatpush1.msra.mxu0 0.0
  %2684 = vmatprep.subr.mxu0 0.0
  %2685 = vmatpush1.msra.mxu0 0.0
  %2686 = vmatprep.subr.mxu0 0.0
  %2687 = vmatpush1.msra.mxu0 0.0
  %2688 = vmatprep.subr.mxu0 0.0
  %2689 = vmatpush1.msra.mxu0 0.0
  %2690 = vmatprep.subr.mxu0 0.0
  %2691 = vmatpush1.msra.mxu0 0.0
  %2692 = vmatprep.subr.mxu0 0.0
  %2693 = vmatpush1.msra.mxu0 0.0
  %2694 = vmatprep.subr.mxu0 0.0
  %2695 = vmatpush1.msra.mxu0 0.0
  %2696 = vmatprep.subr.mxu0 0.0
  %2697 = vmatpush1.msra.mxu0 0.0
  %2698 = vmatprep.subr.mxu0 0.0
  %2699 = vmatpush1.msra.mxu0 0.0
  %2700 = vmatprep.mubr.f32.mxu0 0.0
  %2701 = vmatmul.mubr.f32.gmra.mrb[0].mxu0 %v2634
  %v2702 = vpop.f32.mrb[0].mxu0
  %v2703 = vadd.f32 0.0, %v2702
  %v2704 = vpop.f32.mrb[0].mxu0
  %2705 = vdwg.mxu0
  %v2706 = vadd.f32 %v2633, %v2703
  %v2707 = vxor.u32 %v2631, 2147483648
  %v2708 = vmul.f32 %v2707, 1.442695
  %v2709 = vpow.pop %v2708
  %v2710 = vadd.f32 %v2709, 1.0
  %v2711 = vrcp.pop %v2710
  %v2712 = vmul.f32 1.0, %v2711
  %v2713 = vtanh.pop %v2631
  %v2714 = vmul.f32 %v2712, %v2514
  %2716 = vrot.lane.b32.xlu0 %v2713, 64
  %v2717 = vpop.permute.xlu0 %2716
  %v2719 = vmul.f32 %v2712, %v2717
  %2721 = vrot.lane.b32.xlu0 %v2719, 32
  %v2722 = vpop.permute.xlu0 %2721
  %v2724 = vadd.f32 %v2714, %v2722
  %v2725 = vtanh.pop %v2724
  %2727 = vrot.lane.b32.xlu0 %v2725, 64
  %v2728 = vpop.permute.xlu0 %2727
  %v2730 = vmul.f32 %v2712, %v2728
  %v2731 = vxor.u32 %v2706, 2147483648
  %v2732 = vmul.f32 %v2731, 1.442695
  %v2733 = vpow.pop %v2732
  %v2734 = vadd.f32 %v2733, 1.0
  %v2735 = vrcp.pop %v2734
  %v2736 = vmul.f32 1.0, %v2735
  %v2737 = vtanh.pop %v2706
  %v2738 = vmul.f32 %v2736, %v2538
  %2740 = vrot.lane.b32.xlu0 %v2737, 64
  %v2741 = vpop.permute.xlu0 %2740
  %v2743 = vmul.f32 %v2736, %v2741
  %2745 = vrot.lane.b32.xlu0 %v2743, 32
  %v2746 = vpop.permute.xlu0 %2745
  %v2748 = vadd.f32 %v2738, %v2746
  %v2749 = vtanh.pop %v2748
  %2751 = vrot.lane.b32.xlu0 %v2749, 64
  %v2752 = vpop.permute.xlu0 %2751
  %v2754 = vmul.f32 %v2736, %v2752
  %2756 = vrot.lane.b32.xlu0 %v2730, 32
  %v2757 = vpop.permute.xlu0 %2756
  %s2759 = scalar_lea.vmem [#allocation4], 80
  %2760 = vst.msk [vmem:[%s2759] sm:$0xff] %vm460, %v2757
  %2762 = vrot.lane.b32.xlu0 %v2754, 32
  %v2763 = vpop.permute.xlu0 %2762
  %s2765 = scalar_lea.vmem [#allocation5], 40
  %2766 = vst.msk [vmem:[%s2765] sm:$0xff] %vm460, %v2763
  %s2767 = scalar_lea.vmem [#allocation2], 88
  %v2768 = vld [vmem:[%s2767] sm:$0xff]
  %v2769 = vsel %vm460, %v2757, 0
  %2771 = vmatprep.subr.mxu0 0.0
  %2772 = vmatpush1.msra.mxu0 %v451
  %2773 = vmatprep.subr.mxu0 0.0
  %2774 = vmatpush1.msra.mxu0 %v452
  %2775 = vmatprep.subr.mxu0 0.0
  %2776 = vmatpush1.msra.mxu0 %v453
  %2777 = vmatprep.subr.mxu0 0.0
  %2778 = vmatpush1.msra.mxu0 %v454
  %2779 = vmatprep.subr.mxu0 0.0
  %2780 = vmatpush1.msra.mxu0 0.0
  %2781 = vmatprep.subr.mxu0 0.0
  %2782 = vmatpush1.msra.mxu0 0.0
  %2783 = vmatprep.subr.mxu0 0.0
  %2784 = vmatpush1.msra.mxu0 0.0
  %2785 = vmatprep.subr.mxu0 0.0
  %2786 = vmatpush1.msra.mxu0 0.0
  %2787 = vmatprep.subr.mxu0 0.0
  %2788 = vmatpush1.msra.mxu0 0.0
  %2789 = vmatprep.subr.mxu0 0.0
  %2790 = vmatpush1.msra.mxu0 0.0
  %2791 = vmatprep.subr.mxu0 0.0
  %2792 = vmatpush1.msra.mxu0 0.0
  %2793 = vmatprep.subr.mxu0 0.0
  %2794 = vmatpush1.msra.mxu0 0.0
  %2795 = vmatprep.subr.mxu0 0.0
  %2796 = vmatpush1.msra.mxu0 0.0
  %2797 = vmatprep.subr.mxu0 0.0
  %2798 = vmatpush1.msra.mxu0 0.0
  %2799 = vmatprep.subr.mxu0 0.0
  %2800 = vmatpush1.msra.mxu0 0.0
  %2801 = vmatprep.subr.mxu0 0.0
  %2802 = vmatpush1.msra.mxu0 0.0
  %2803 = vmatprep.subr.mxu0 0.0
  %2804 = vmatpush1.msra.mxu0 0.0
  %2805 = vmatprep.subr.mxu0 0.0
  %2806 = vmatpush1.msra.mxu0 0.0
  %2807 = vmatprep.subr.mxu0 0.0
  %2808 = vmatpush1.msra.mxu0 0.0
  %2809 = vmatprep.subr.mxu0 0.0
  %2810 = vmatpush1.msra.mxu0 0.0
  %2811 = vmatprep.subr.mxu0 0.0
  %2812 = vmatpush1.msra.mxu0 0.0
  %2813 = vmatprep.subr.mxu0 0.0
  %2814 = vmatpush1.msra.mxu0 0.0
  %2815 = vmatprep.subr.mxu0 0.0
  %2816 = vmatpush1.msra.mxu0 0.0
  %2817 = vmatprep.subr.mxu0 0.0
  %2818 = vmatpush1.msra.mxu0 0.0
  %2819 = vmatprep.subr.mxu0 0.0
  %2820 = vmatpush1.msra.mxu0 0.0
  %2821 = vmatprep.subr.mxu0 0.0
  %2822 = vmatpush1.msra.mxu0 0.0
  %2823 = vmatprep.subr.mxu0 0.0
  %2824 = vmatpush1.msra.mxu0 0.0
  %2825 = vmatprep.subr.mxu0 0.0
  %2826 = vmatpush1.msra.mxu0 0.0
  %2827 = vmatprep.subr.mxu0 0.0
  %2828 = vmatpush1.msra.mxu0 0.0
  %2829 = vmatprep.subr.mxu0 0.0
  %2830 = vmatpush1.msra.mxu0 0.0
  %2831 = vmatprep.subr.mxu0 0.0
  %2832 = vmatpush1.msra.mxu0 0.0
  %2833 = vmatprep.subr.mxu0 0.0
  %2834 = vmatpush1.msra.mxu0 0.0
  %2835 = vmatprep.mubr.f32.mxu0 0.0
  %2836 = vmatmul.mubr.f32.gmra.mrb[0].mxu0 %v2769
  %v2837 = vpop.f32.mrb[0].mxu0
  %v2838 = vadd.f32 0.0, %v2837
  %v2839 = vpop.f32.mrb[0].mxu0
  %2840 = vdwg.mxu0
  %v2841 = vadd.f32 %v2768, %v2838
  %s2842 = scalar_lea.vmem [#allocation3], 32
  %v2843 = vld [vmem:[%s2842] sm:$0xff]
  %v2844 = vsel %vm460, %v2763, 0
  %2846 = vmatprep.subr.mxu0 0.0
  %2847 = vmatpush1.msra.mxu0 %v455
  %2848 = vmatprep.subr.mxu0 0.0
  %2849 = vmatpush1.msra.mxu0 %v456
  %2850 = vmatprep.subr.mxu0 0.0
  %2851 = vmatpush1.msra.mxu0 %v457
  %2852 = vmatprep.subr.mxu0 0.0
  %2853 = vmatpush1.msra.mxu0 %v458
  %2854 = vmatprep.subr.mxu0 0.0
  %2855 = vmatpush1.msra.mxu0 0.0
  %2856 = vmatprep.subr.mxu0 0.0
  %2857 = vmatpush1.msra.mxu0 0.0
  %2858 = vmatprep.subr.mxu0 0.0
  %2859 = vmatpush1.msra.mxu0 0.0
  %2860 = vmatprep.subr.mxu0 0.0
  %2861 = vmatpush1.msra.mxu0 0.0
  %2862 = vmatprep.subr.mxu0 0.0
  %2863 = vmatpush1.msra.mxu0 0.0
  %2864 = vmatprep.subr.mxu0 0.0
  %2865 = vmatpush1.msra.mxu0 0.0
  %2866 = vmatprep.subr.mxu0 0.0
  %2867 = vmatpush1.msra.mxu0 0.0
  %2868 = vmatprep.subr.mxu0 0.0
  %2869 = vmatpush1.msra.mxu0 0.0
  %2870 = vmatprep.subr.mxu0 0.0
  %2871 = vmatpush1.msra.mxu0 0.0
  %2872 = vmatprep.subr.mxu0 0.0
  %2873 = vmatpush1.msra.mxu0 0.0
  %2874 = vmatprep.subr.mxu0 0.0
  %2875 = vmatpush1.msra.mxu0 0.0
  %2876 = vmatprep.subr.mxu0 0.0
  %2877 = vmatpush1.msra.mxu0 0.0
  %2878 = vmatprep.subr.mxu0 0.0
  %2879 = vmatpush1.msra.mxu0 0.0
  %2880 = vmatprep.subr.mxu0 0.0
  %2881 = vmatpush1.msra.mxu0 0.0
  %2882 = vmatprep.subr.mxu0 0.0
  %2883 = vmatpush1.msra.mxu0 0.0
  %2884 = vmatprep.subr.mxu0 0.0
  %2885 = vmatpush1.msra.mxu0 0.0
  %2886 = vmatprep.subr.mxu0 0.0
  %2887 = vmatpush1.msra.mxu0 0.0
  %2888 = vmatprep.subr.mxu0 0.0
  %2889 = vmatpush1.msra.mxu0 0.0
  %2890 = vmatprep.subr.mxu0 0.0
  %2891 = vmatpush1.msra.mxu0 0.0
  %2892 = vmatprep.subr.mxu0 0.0
  %2893 = vmatpush1.msra.mxu0 0.0
  %2894 = vmatprep.subr.mxu0 0.0
  %2895 = vmatpush1.msra.mxu0 0.0
  %2896 = vmatprep.subr.mxu0 0.0
  %2897 = vmatpush1.msra.mxu0 0.0
  %2898 = vmatprep.subr.mxu0 0.0
  %2899 = vmatpush1.msra.mxu0 0.0
  %2900 = vmatprep.subr.mxu0 0.0
  %2901 = vmatpush1.msra.mxu0 0.0
  %2902 = vmatprep.subr.mxu0 0.0
  %2903 = vmatpush1.msra.mxu0 0.0
  %2904 = vmatprep.subr.mxu0 0.0
  %2905 = vmatpush1.msra.mxu0 0.0
  %2906 = vmatprep.subr.mxu0 0.0
  %2907 = vmatpush1.msra.mxu0 0.0
  %2908 = vmatprep.subr.mxu0 0.0
  %2909 = vmatpush1.msra.mxu0 0.0
  %2910 = vmatprep.mubr.f32.mxu0 0.0
  %2911 = vmatmul.mubr.f32.gmra.mrb[0].mxu0 %v2844
  %v2912 = vpop.f32.mrb[0].mxu0
  %v2913 = vadd.f32 0.0, %v2912
  %v2914 = vpop.f32.mrb[0].mxu0
  %2915 = vdwg.mxu0
  %v2916 = vadd.f32 %v2843, %v2913
  %v2917 = vxor.u32 %v2841, 2147483648
  %v2918 = vmul.f32 %v2917, 1.442695
  %v2919 = vpow.pop %v2918
  %v2920 = vadd.f32 %v2919, 1.0
  %v2921 = vrcp.pop %v2920
  %v2922 = vmul.f32 1.0, %v2921
  %v2923 = vtanh.pop %v2841
  %v2924 = vmul.f32 %v2922, %v2724
  %2926 = vrot.lane.b32.xlu0 %v2923, 64
  %v2927 = vpop.permute.xlu0 %2926
  %v2929 = vmul.f32 %v2922, %v2927
  %2931 = vrot.lane.b32.xlu0 %v2929, 32
  %v2932 = vpop.permute.xlu0 %2931
  %v2934 = vadd.f32 %v2924, %v2932
  %v2935 = vtanh.pop %v2934
  %2937 = vrot.lane.b32.xlu0 %v2935, 64
  %v2938 = vpop.permute.xlu0 %2937
  %v2940 = vmul.f32 %v2922, %v2938
  %v2941 = vxor.u32 %v2916, 2147483648
  %v2942 = vmul.f32 %v2941, 1.442695
  %v2943 = vpow.pop %v2942
  %v2944 = vadd.f32 %v2943, 1.0
  %v2945 = vrcp.pop %v2944
  %v2946 = vmul.f32 1.0, %v2945
  %v2947 = vtanh.pop %v2916
  %v2948 = vmul.f32 %v2946, %v2748
  %2950 = vrot.lane.b32.xlu0 %v2947, 64
  %v2951 = vpop.permute.xlu0 %2950
  %v2953 = vmul.f32 %v2946, %v2951
  %2955 = vrot.lane.b32.xlu0 %v2953, 32
  %v2956 = vpop.permute.xlu0 %2955
  %v2958 = vadd.f32 %v2948, %v2956
  %v2959 = vtanh.pop %v2958
  %2961 = vrot.lane.b32.xlu0 %v2959, 64
  %v2962 = vpop.permute.xlu0 %2961
  %v2964 = vmul.f32 %v2946, %v2962
  %2966 = vrot.lane.b32.xlu0 %v2940, 32
  %v2967 = vpop.permute.xlu0 %2966
  %s2969 = scalar_lea.vmem [#allocation4], 88
  %2970 = vst.msk [vmem:[%s2969] sm:$0xff] %vm460, %v2967
  %2972 = vrot.lane.b32.xlu0 %v2964, 32
  %v2973 = vpop.permute.xlu0 %2972
  %s2975 = scalar_lea.vmem [#allocation5], 32
  %2976 = vst.msk [vmem:[%s2975] sm:$0xff] %vm460, %v2973
  %s2977 = scalar_lea.vmem [#allocation2], 96
  %v2978 = vld [vmem:[%s2977] sm:$0xff]
  %v2979 = vsel %vm460, %v2967, 0
  %2981 = vmatprep.subr.mxu0 0.0
  %2982 = vmatpush1.msra.mxu0 %v451
  %2983 = vmatprep.subr.mxu0 0.0
  %2984 = vmatpush1.msra.mxu0 %v452
  %2985 = vmatprep.subr.mxu0 0.0
  %2986 = vmatpush1.msra.mxu0 %v453
  %2987 = vmatprep.subr.mxu0 0.0
  %2988 = vmatpush1.msra.mxu0 %v454
  %2989 = vmatprep.subr.mxu0 0.0
  %2990 = vmatpush1.msra.mxu0 0.0
  %2991 = vmatprep.subr.mxu0 0.0
  %2992 = vmatpush1.msra.mxu0 0.0
  %2993 = vmatprep.subr.mxu0 0.0
  %2994 = vmatpush1.msra.mxu0 0.0
  %2995 = vmatprep.subr.mxu0 0.0
  %2996 = vmatpush1.msra.mxu0 0.0
  %2997 = vmatprep.subr.mxu0 0.0
  %2998 = vmatpush1.msra.mxu0 0.0
  %2999 = vmatprep.subr.mxu0 0.0
  %3000 = vmatpush1.msra.mxu0 0.0
  %3001 = vmatprep.subr.mxu0 0.0
  %3002 = vmatpush1.msra.mxu0 0.0
  %3003 = vmatprep.subr.mxu0 0.0
  %3004 = vmatpush1.msra.mxu0 0.0
  %3005 = vmatprep.subr.mxu0 0.0
  %3006 = vmatpush1.msra.mxu0 0.0
  %3007 = vmatprep.subr.mxu0 0.0
  %3008 = vmatpush1.msra.mxu0 0.0
  %3009 = vmatprep.subr.mxu0 0.0
  %3010 = vmatpush1.msra.mxu0 0.0
  %3011 = vmatprep.subr.mxu0 0.0
  %3012 = vmatpush1.msra.mxu0 0.0
  %3013 = vmatprep.subr.mxu0 0.0
  %3014 = vmatpush1.msra.mxu0 0.0
  %3015 = vmatprep.subr.mxu0 0.0
  %3016 = vmatpush1.msra.mxu0 0.0
  %3017 = vmatprep.subr.mxu0 0.0
  %3018 = vmatpush1.msra.mxu0 0.0
  %3019 = vmatprep.subr.mxu0 0.0
  %3020 = vmatpush1.msra.mxu0 0.0
  %3021 = vmatprep.subr.mxu0 0.0
  %3022 = vmatpush1.msra.mxu0 0.0
  %3023 = vmatprep.subr.mxu0 0.0
  %3024 = vmatpush1.msra.mxu0 0.0
  %3025 = vmatprep.subr.mxu0 0.0
  %3026 = vmatpush1.msra.mxu0 0.0
  %3027 = vmatprep.subr.mxu0 0.0
  %3028 = vmatpush1.msra.mxu0 0.0
  %3029 = vmatprep.subr.mxu0 0.0
  %3030 = vmatpush1.msra.mxu0 0.0
  %3031 = vmatprep.subr.mxu0 0.0
  %3032 = vmatpush1.msra.mxu0 0.0
  %3033 = vmatprep.subr.mxu0 0.0
  %3034 = vmatpush1.msra.mxu0 0.0
  %3035 = vmatprep.subr.mxu0 0.0
  %3036 = vmatpush1.msra.mxu0 0.0
  %3037 = vmatprep.subr.mxu0 0.0
  %3038 = vmatpush1.msra.mxu0 0.0
  %3039 = vmatprep.subr.mxu0 0.0
  %3040 = vmatpush1.msra.mxu0 0.0
  %3041 = vmatprep.subr.mxu0 0.0
  %3042 = vmatpush1.msra.mxu0 0.0
  %3043 = vmatprep.subr.mxu0 0.0
  %3044 = vmatpush1.msra.mxu0 0.0
  %3045 = vmatprep.mubr.f32.mxu0 0.0
  %3046 = vmatmul.mubr.f32.gmra.mrb[0].mxu0 %v2979
  %v3047 = vpop.f32.mrb[0].mxu0
  %v3048 = vadd.f32 0.0, %v3047
  %v3049 = vpop.f32.mrb[0].mxu0
  %3050 = vdwg.mxu0
  %v3051 = vadd.f32 %v2978, %v3048
  %s3052 = scalar_lea.vmem [#allocation3], 24
  %v3053 = vld [vmem:[%s3052] sm:$0xff]
  %v3054 = vsel %vm460, %v2973, 0
  %3056 = vmatprep.subr.mxu0 0.0
  %3057 = vmatpush1.msra.mxu0 %v455
  %3058 = vmatprep.subr.mxu0 0.0
  %3059 = vmatpush1.msra.mxu0 %v456
  %3060 = vmatprep.subr.mxu0 0.0
  %3061 = vmatpush1.msra.mxu0 %v457
  %3062 = vmatprep.subr.mxu0 0.0
  %3063 = vmatpush1.msra.mxu0 %v458
  %3064 = vmatprep.subr.mxu0 0.0
  %3065 = vmatpush1.msra.mxu0 0.0
  %3066 = vmatprep.subr.mxu0 0.0
  %3067 = vmatpush1.msra.mxu0 0.0
  %3068 = vmatprep.subr.mxu0 0.0
  %3069 = vmatpush1.msra.mxu0 0.0
  %3070 = vmatprep.subr.mxu0 0.0
  %3071 = vmatpush1.msra.mxu0 0.0
  %3072 = vmatprep.subr.mxu0 0.0
  %3073 = vmatpush1.msra.mxu0 0.0
  %3074 = vmatprep.subr.mxu0 0.0
  %3075 = vmatpush1.msra.mxu0 0.0
  %3076 = vmatprep.subr.mxu0 0.0
  %3077 = vmatpush1.msra.mxu0 0.0
  %3078 = vmatprep.subr.mxu0 0.0
  %3079 = vmatpush1.msra.mxu0 0.0
  %3080 = vmatprep.subr.mxu0 0.0
  %3081 = vmatpush1.msra.mxu0 0.0
  %3082 = vmatprep.subr.mxu0 0.0
  %3083 = vmatpush1.msra.mxu0 0.0
  %3084 = vmatprep.subr.mxu0 0.0
  %3085 = vmatpush1.msra.mxu0 0.0
  %3086 = vmatprep.subr.mxu0 0.0
  %3087 = vmatpush1.msra.mxu0 0.0
  %3088 = vmatprep.subr.mxu0 0.0
  %3089 = vmatpush1.msra.mxu0 0.0
  %3090 = vmatprep.subr.mxu0 0.0
  %3091 = vmatpush1.msra.mxu0 0.0
  %3092 = vmatprep.subr.mxu0 0.0
  %3093 = vmatpush1.msra.mxu0 0.0
  %3094 = vmatprep.subr.mxu0 0.0
  %3095 = vmatpush1.msra.mxu0 0.0
  %3096 = vmatprep.subr.mxu0 0.0
  %3097 = vmatpush1.msra.mxu0 0.0
  %3098 = vmatprep.subr.mxu0 0.0
  %3099 = vmatpush1.msra.mxu0 0.0
  %3100 = vmatprep.subr.mxu0 0.0
  %3101 = vmatpush1.msra.mxu0 0.0
  %3102 = vmatprep.subr.mxu0 0.0
  %3103 = vmatpush1.msra.mxu0 0.0
  %3104 = vmatprep.subr.mxu0 0.0
  %3105 = vmatpush1.msra.mxu0 0.0
  %3106 = vmatprep.subr.mxu0 0.0
  %3107 = vmatpush1.msra.mxu0 0.0
  %3108 = vmatprep.subr.mxu0 0.0
  %3109 = vmatpush1.msra.mxu0 0.0
  %3110 = vmatprep.subr.mxu0 0.0
  %3111 = vmatpush1.msra.mxu0 0.0
  %3112 = vmatprep.subr.mxu0 0.0
  %3113 = vmatpush1.msra.mxu0 0.0
  %3114 = vmatprep.subr.mxu0 0.0
  %3115 = vmatpush1.msra.mxu0 0.0
  %3116 = vmatprep.subr.mxu0 0.0
  %3117 = vmatpush1.msra.mxu0 0.0
  %3118 = vmatprep.subr.mxu0 0.0
  %3119 = vmatpush1.msra.mxu0 0.0
  %3120 = vmatprep.mubr.f32.mxu0 0.0
  %3121 = vmatmul.mubr.f32.gmra.mrb[0].mxu0 %v3054
  %v3122 = vpop.f32.mrb[0].mxu0
  %v3123 = vadd.f32 0.0, %v3122
  %v3124 = vpop.f32.mrb[0].mxu0
  %3125 = vdwg.mxu0
  %v3126 = vadd.f32 %v3053, %v3123
  %v3127 = vxor.u32 %v3051, 2147483648
  %v3128 = vmul.f32 %v3127, 1.442695
  %v3129 = vpow.pop %v3128
  %v3130 = vadd.f32 %v3129, 1.0
  %v3131 = vrcp.pop %v3130
  %v3132 = vmul.f32 1.0, %v3131
  %v3133 = vtanh.pop %v3051
  %v3134 = vmul.f32 %v3132, %v2934
  %3136 = vrot.lane.b32.xlu0 %v3133, 64
  %v3137 = vpop.permute.xlu0 %3136
  %v3139 = vmul.f32 %v3132, %v3137
  %3141 = vrot.lane.b32.xlu0 %v3139, 32
  %v3142 = vpop.permute.xlu0 %3141
  %v3144 = vadd.f32 %v3134, %v3142
  %v3145 = vtanh.pop %v3144
  %3147 = vrot.lane.b32.xlu0 %v3145, 64
  %v3148 = vpop.permute.xlu0 %3147
  %v3150 = vmul.f32 %v3132, %v3148
  %v3151 = vxor.u32 %v3126, 2147483648
  %v3152 = vmul.f32 %v3151, 1.442695
  %v3153 = vpow.pop %v3152
  %v3154 = vadd.f32 %v3153, 1.0
  %v3155 = vrcp.pop %v3154
  %v3156 = vmul.f32 1.0, %v3155
  %v3157 = vtanh.pop %v3126
  %v3158 = vmul.f32 %v3156, %v2958
  %3160 = vrot.lane.b32.xlu0 %v3157, 64
  %v3161 = vpop.permute.xlu0 %3160
  %v3163 = vmul.f32 %v3156, %v3161
  %3165 = vrot.lane.b32.xlu0 %v3163, 32
  %v3166 = vpop.permute.xlu0 %3165
  %v3168 = vadd.f32 %v3158, %v3166
  %v3169 = vtanh.pop %v3168
  %3171 = vrot.lane.b32.xlu0 %v3169, 64
  %v3172 = vpop.permute.xlu0 %3171
  %v3174 = vmul.f32 %v3156, %v3172
  %3176 = vrot.lane.b32.xlu0 %v3150, 32
  %v3177 = vpop.permute.xlu0 %3176
  %s3179 = scalar_lea.vmem [#allocation4], 96
  %3180 = vst.msk [vmem:[%s3179] sm:$0xff] %vm460, %v3177
  %3182 = vrot.lane.b32.xlu0 %v3174, 32
  %v3183 = vpop.permute.xlu0 %3182
  %s3185 = scalar_lea.vmem [#allocation5], 24
  %3186 = vst.msk [vmem:[%s3185] sm:$0xff] %vm460, %v3183
  %s3187 = scalar_lea.vmem [#allocation2], 104
  %v3188 = vld [vmem:[%s3187] sm:$0xff]
  %v3189 = vsel %vm460, %v3177, 0
  %3191 = vmatprep.subr.mxu0 0.0
  %3192 = vmatpush1.msra.mxu0 %v451
  %3193 = vmatprep.subr.mxu0 0.0
  %3194 = vmatpush1.msra.mxu0 %v452
  %3195 = vmatprep.subr.mxu0 0.0
  %3196 = vmatpush1.msra.mxu0 %v453
  %3197 = vmatprep.subr.mxu0 0.0
  %3198 = vmatpush1.msra.mxu0 %v454
  %3199 = vmatprep.subr.mxu0 0.0
  %3200 = vmatpush1.msra.mxu0 0.0
  %3201 = vmatprep.subr.mxu0 0.0
  %3202 = vmatpush1.msra.mxu0 0.0
  %3203 = vmatprep.subr.mxu0 0.0
  %3204 = vmatpush1.msra.mxu0 0.0
  %3205 = vmatprep.subr.mxu0 0.0
  %3206 = vmatpush1.msra.mxu0 0.0
  %3207 = vmatprep.subr.mxu0 0.0
  %3208 = vmatpush1.msra.mxu0 0.0
  %3209 = vmatprep.subr.mxu0 0.0
  %3210 = vmatpush1.msra.mxu0 0.0
  %3211 = vmatprep.subr.mxu0 0.0
  %3212 = vmatpush1.msra.mxu0 0.0
  %3213 = vmatprep.subr.mxu0 0.0
  %3214 = vmatpush1.msra.mxu0 0.0
  %3215 = vmatprep.subr.mxu0 0.0
  %3216 = vmatpush1.msra.mxu0 0.0
  %3217 = vmatprep.subr.mxu0 0.0
  %3218 = vmatpush1.msra.mxu0 0.0
  %3219 = vmatprep.subr.mxu0 0.0
  %3220 = vmatpush1.msra.mxu0 0.0
  %3221 = vmatprep.subr.mxu0 0.0
  %3222 = vmatpush1.msra.mxu0 0.0
  %3223 = vmatprep.subr.mxu0 0.0
  %3224 = vmatpush1.msra.mxu0 0.0
  %3225 = vmatprep.subr.mxu0 0.0
  %3226 = vmatpush1.msra.mxu0 0.0
  %3227 = vmatprep.subr.mxu0 0.0
  %3228 = vmatpush1.msra.mxu0 0.0
  %3229 = vmatprep.subr.mxu0 0.0
  %3230 = vmatpush1.msra.mxu0 0.0
  %3231 = vmatprep.subr.mxu0 0.0
  %3232 = vmatpush1.msra.mxu0 0.0
  %3233 = vmatprep.subr.mxu0 0.0
  %3234 = vmatpush1.msra.mxu0 0.0
  %3235 = vmatprep.subr.mxu0 0.0
  %3236 = vmatpush1.msra.mxu0 0.0
  %3237 = vmatprep.subr.mxu0 0.0
  %3238 = vmatpush1.msra.mxu0 0.0
  %3239 = vmatprep.subr.mxu0 0.0
  %3240 = vmatpush1.msra.mxu0 0.0
  %3241 = vmatprep.subr.mxu0 0.0
  %3242 = vmatpush1.msra.mxu0 0.0
  %3243 = vmatprep.subr.mxu0 0.0
  %3244 = vmatpush1.msra.mxu0 0.0
  %3245 = vmatprep.subr.mxu0 0.0
  %3246 = vmatpush1.msra.mxu0 0.0
  %3247 = vmatprep.subr.mxu0 0.0
  %3248 = vmatpush1.msra.mxu0 0.0
  %3249 = vmatprep.subr.mxu0 0.0
  %3250 = vmatpush1.msra.mxu0 0.0
  %3251 = vmatprep.subr.mxu0 0.0
  %3252 = vmatpush1.msra.mxu0 0.0
  %3253 = vmatprep.subr.mxu0 0.0
  %3254 = vmatpush1.msra.mxu0 0.0
  %3255 = vmatprep.mubr.f32.mxu0 0.0
  %3256 = vmatmul.mubr.f32.gmra.mrb[0].mxu0 %v3189
  %v3257 = vpop.f32.mrb[0].mxu0
  %v3258 = vadd.f32 0.0, %v3257
  %v3259 = vpop.f32.mrb[0].mxu0
  %3260 = vdwg.mxu0
  %v3261 = vadd.f32 %v3188, %v3258
  %s3262 = scalar_lea.vmem [#allocation3], 16
  %v3263 = vld [vmem:[%s3262] sm:$0xff]
  %v3264 = vsel %vm460, %v3183, 0
  %3266 = vmatprep.subr.mxu0 0.0
  %3267 = vmatpush1.msra.mxu0 %v455
  %3268 = vmatprep.subr.mxu0 0.0
  %3269 = vmatpush1.msra.mxu0 %v456
  %3270 = vmatprep.subr.mxu0 0.0
  %3271 = vmatpush1.msra.mxu0 %v457
  %3272 = vmatprep.subr.mxu0 0.0
  %3273 = vmatpush1.msra.mxu0 %v458
  %3274 = vmatprep.subr.mxu0 0.0
  %3275 = vmatpush1.msra.mxu0 0.0
  %3276 = vmatprep.subr.mxu0 0.0
  %3277 = vmatpush1.msra.mxu0 0.0
  %3278 = vmatprep.subr.mxu0 0.0
  %3279 = vmatpush1.msra.mxu0 0.0
  %3280 = vmatprep.subr.mxu0 0.0
  %3281 = vmatpush1.msra.mxu0 0.0
  %3282 = vmatprep.subr.mxu0 0.0
  %3283 = vmatpush1.msra.mxu0 0.0
  %3284 = vmatprep.subr.mxu0 0.0
  %3285 = vmatpush1.msra.mxu0 0.0
  %3286 = vmatprep.subr.mxu0 0.0
  %3287 = vmatpush1.msra.mxu0 0.0
  %3288 = vmatprep.subr.mxu0 0.0
  %3289 = vmatpush1.msra.mxu0 0.0
  %3290 = vmatprep.subr.mxu0 0.0
  %3291 = vmatpush1.msra.mxu0 0.0
  %3292 = vmatprep.subr.mxu0 0.0
  %3293 = vmatpush1.msra.mxu0 0.0
  %3294 = vmatprep.subr.mxu0 0.0
  %3295 = vmatpush1.msra.mxu0 0.0
  %3296 = vmatprep.subr.mxu0 0.0
  %3297 = vmatpush1.msra.mxu0 0.0
  %3298 = vmatprep.subr.mxu0 0.0
  %3299 = vmatpush1.msra.mxu0 0.0
  %3300 = vmatprep.subr.mxu0 0.0
  %3301 = vmatpush1.msra.mxu0 0.0
  %3302 = vmatprep.subr.mxu0 0.0
  %3303 = vmatpush1.msra.mxu0 0.0
  %3304 = vmatprep.subr.mxu0 0.0
  %3305 = vmatpush1.msra.mxu0 0.0
  %3306 = vmatprep.subr.mxu0 0.0
  %3307 = vmatpush1.msra.mxu0 0.0
  %3308 = vmatprep.subr.mxu0 0.0
  %3309 = vmatpush1.msra.mxu0 0.0
  %3310 = vmatprep.subr.mxu0 0.0
  %3311 = vmatpush1.msra.mxu0 0.0
  %3312 = vmatprep.subr.mxu0 0.0
  %3313 = vmatpush1.msra.mxu0 0.0
  %3314 = vmatprep.subr.mxu0 0.0
  %3315 = vmatpush1.msra.mxu0 0.0
  %3316 = vmatprep.subr.mxu0 0.0
  %3317 = vmatpush1.msra.mxu0 0.0
  %3318 = vmatprep.subr.mxu0 0.0
  %3319 = vmatpush1.msra.mxu0 0.0
  %3320 = vmatprep.subr.mxu0 0.0
  %3321 = vmatpush1.msra.mxu0 0.0
  %3322 = vmatprep.subr.mxu0 0.0
  %3323 = vmatpush1.msra.mxu0 0.0
  %3324 = vmatprep.subr.mxu0 0.0
  %3325 = vmatpush1.msra.mxu0 0.0
  %3326 = vmatprep.subr.mxu0 0.0
  %3327 = vmatpush1.msra.mxu0 0.0
  %3328 = vmatprep.subr.mxu0 0.0
  %3329 = vmatpush1.msra.mxu0 0.0
  %3330 = vmatprep.mubr.f32.mxu0 0.0
  %3331 = vmatmul.mubr.f32.gmra.mrb[0].mxu0 %v3264
  %v3332 = vpop.f32.mrb[0].mxu0
  %v3333 = vadd.f32 0.0, %v3332
  %v3334 = vpop.f32.mrb[0].mxu0
  %3335 = vdwg.mxu0
  %v3336 = vadd.f32 %v3263, %v3333
  %v3337 = vxor.u32 %v3261, 2147483648
  %v3338 = vmul.f32 %v3337, 1.442695
  %v3339 = vpow.pop %v3338
  %v3340 = vadd.f32 %v3339, 1.0
  %v3341 = vrcp.pop %v3340
  %v3342 = vmul.f32 1.0, %v3341
  %v3343 = vtanh.pop %v3261
  %v3344 = vmul.f32 %v3342, %v3144
  %3346 = vrot.lane.b32.xlu0 %v3343, 64
  %v3347 = vpop.permute.xlu0 %3346
  %v3349 = vmul.f32 %v3342, %v3347
  %3351 = vrot.lane.b32.xlu0 %v3349, 32
  %v3352 = vpop.permute.xlu0 %3351
  %v3354 = vadd.f32 %v3344, %v3352
  %v3355 = vtanh.pop %v3354
  %3357 = vrot.lane.b32.xlu0 %v3355, 64
  %v3358 = vpop.permute.xlu0 %3357
  %v3360 = vmul.f32 %v3342, %v3358
  %v3361 = vxor.u32 %v3336, 2147483648
  %v3362 = vmul.f32 %v3361, 1.442695
  %v3363 = vpow.pop %v3362
  %v3364 = vadd.f32 %v3363, 1.0
  %v3365 = vrcp.pop %v3364
  %v3366 = vmul.f32 1.0, %v3365
  %v3367 = vtanh.pop %v3336
  %v3368 = vmul.f32 %v3366, %v3168
  %3370 = vrot.lane.b32.xlu0 %v3367, 64
  %v3371 = vpop.permute.xlu0 %3370
  %v3373 = vmul.f32 %v3366, %v3371
  %3375 = vrot.lane.b32.xlu0 %v3373, 32
  %v3376 = vpop.permute.xlu0 %3375
  %v3378 = vadd.f32 %v3368, %v3376
  %v3379 = vtanh.pop %v3378
  %3381 = vrot.lane.b32.xlu0 %v3379, 64
  %v3382 = vpop.permute.xlu0 %3381
  %v3384 = vmul.f32 %v3366, %v3382
  %3386 = vrot.lane.b32.xlu0 %v3360, 32
  %v3387 = vpop.permute.xlu0 %3386
  %s3389 = scalar_lea.vmem [#allocation4], 104
  %3390 = vst.msk [vmem:[%s3389] sm:$0xff] %vm460, %v3387
  %3392 = vrot.lane.b32.xlu0 %v3384, 32
  %v3393 = vpop.permute.xlu0 %3392
  %s3395 = scalar_lea.vmem [#allocation5], 16
  %3396 = vst.msk [vmem:[%s3395] sm:$0xff] %vm460, %v3393
  %s3397 = scalar_lea.vmem [#allocation2], 112
  %v3398 = vld [vmem:[%s3397] sm:$0xff]
  %v3399 = vsel %vm460, %v3387, 0
  %3401 = vmatprep.subr.mxu0 0.0
  %3402 = vmatpush1.msra.mxu0 %v451
  %3403 = vmatprep.subr.mxu0 0.0
  %3404 = vmatpush1.msra.mxu0 %v452
  %3405 = vmatprep.subr.mxu0 0.0
  %3406 = vmatpush1.msra.mxu0 %v453
  %3407 = vmatprep.subr.mxu0 0.0
  %3408 = vmatpush1.msra.mxu0 %v454
  %3409 = vmatprep.subr.mxu0 0.0
  %3410 = vmatpush1.msra.mxu0 0.0
  %3411 = vmatprep.subr.mxu0 0.0
  %3412 = vmatpush1.msra.mxu0 0.0
  %3413 = vmatprep.subr.mxu0 0.0
  %3414 = vmatpush1.msra.mxu0 0.0
  %3415 = vmatprep.subr.mxu0 0.0
  %3416 = vmatpush1.msra.mxu0 0.0
  %3417 = vmatprep.subr.mxu0 0.0
  %3418 = vmatpush1.msra.mxu0 0.0
  %3419 = vmatprep.subr.mxu0 0.0
  %3420 = vmatpush1.msra.mxu0 0.0
  %3421 = vmatprep.subr.mxu0 0.0
  %3422 = vmatpush1.msra.mxu0 0.0
  %3423 = vmatprep.subr.mxu0 0.0
  %3424 = vmatpush1.msra.mxu0 0.0
  %3425 = vmatprep.subr.mxu0 0.0
  %3426 = vmatpush1.msra.mxu0 0.0
  %3427 = vmatprep.subr.mxu0 0.0
  %3428 = vmatpush1.msra.mxu0 0.0
  %3429 = vmatprep.subr.mxu0 0.0
  %3430 = vmatpush1.msra.mxu0 0.0
  %3431 = vmatprep.subr.mxu0 0.0
  %3432 = vmatpush1.msra.mxu0 0.0
  %3433 = vmatprep.subr.mxu0 0.0
  %3434 = vmatpush1.msra.mxu0 0.0
  %3435 = vmatprep.subr.mxu0 0.0
  %3436 = vmatpush1.msra.mxu0 0.0
  %3437 = vmatprep.subr.mxu0 0.0
  %3438 = vmatpush1.msra.mxu0 0.0
  %3439 = vmatprep.subr.mxu0 0.0
  %3440 = vmatpush1.msra.mxu0 0.0
  %3441 = vmatprep.subr.mxu0 0.0
  %3442 = vmatpush1.msra.mxu0 0.0
  %3443 = vmatprep.subr.mxu0 0.0
  %3444 = vmatpush1.msra.mxu0 0.0
  %3445 = vmatprep.subr.mxu0 0.0
  %3446 = vmatpush1.msra.mxu0 0.0
  %3447 = vmatprep.subr.mxu0 0.0
  %3448 = vmatpush1.msra.mxu0 0.0
  %3449 = vmatprep.subr.mxu0 0.0
  %3450 = vmatpush1.msra.mxu0 0.0
  %3451 = vmatprep.subr.mxu0 0.0
  %3452 = vmatpush1.msra.mxu0 0.0
  %3453 = vmatprep.subr.mxu0 0.0
  %3454 = vmatpush1.msra.mxu0 0.0
  %3455 = vmatprep.subr.mxu0 0.0
  %3456 = vmatpush1.msra.mxu0 0.0
  %3457 = vmatprep.subr.mxu0 0.0
  %3458 = vmatpush1.msra.mxu0 0.0
  %3459 = vmatprep.subr.mxu0 0.0
  %3460 = vmatpush1.msra.mxu0 0.0
  %3461 = vmatprep.subr.mxu0 0.0
  %3462 = vmatpush1.msra.mxu0 0.0
  %3463 = vmatprep.subr.mxu0 0.0
  %3464 = vmatpush1.msra.mxu0 0.0
  %3465 = vmatprep.mubr.f32.mxu0 0.0
  %3466 = vmatmul.mubr.f32.gmra.mrb[0].mxu0 %v3399
  %v3467 = vpop.f32.mrb[0].mxu0
  %v3468 = vadd.f32 0.0, %v3467
  %v3469 = vpop.f32.mrb[0].mxu0
  %3470 = vdwg.mxu0
  %v3471 = vadd.f32 %v3398, %v3468
  %s3472 = scalar_lea.vmem [#allocation3], 8
  %v3473 = vld [vmem:[%s3472] sm:$0xff]
  %v3474 = vsel %vm460, %v3393, 0
  %3476 = vmatprep.subr.mxu0 0.0
  %3477 = vmatpush1.msra.mxu0 %v455
  %3478 = vmatprep.subr.mxu0 0.0
  %3479 = vmatpush1.msra.mxu0 %v456
  %3480 = vmatprep.subr.mxu0 0.0
  %3481 = vmatpush1.msra.mxu0 %v457
  %3482 = vmatprep.subr.mxu0 0.0
  %3483 = vmatpush1.msra.mxu0 %v458
  %3484 = vmatprep.subr.mxu0 0.0
  %3485 = vmatpush1.msra.mxu0 0.0
  %3486 = vmatprep.subr.mxu0 0.0
  %3487 = vmatpush1.msra.mxu0 0.0
  %3488 = vmatprep.subr.mxu0 0.0
  %3489 = vmatpush1.msra.mxu0 0.0
  %3490 = vmatprep.subr.mxu0 0.0
  %3491 = vmatpush1.msra.mxu0 0.0
  %3492 = vmatprep.subr.mxu0 0.0
  %3493 = vmatpush1.msra.mxu0 0.0
  %3494 = vmatprep.subr.mxu0 0.0
  %3495 = vmatpush1.msra.mxu0 0.0
  %3496 = vmatprep.subr.mxu0 0.0
  %3497 = vmatpush1.msra.mxu0 0.0
  %3498 = vmatprep.subr.mxu0 0.0
  %3499 = vmatpush1.msra.mxu0 0.0
  %3500 = vmatprep.subr.mxu0 0.0
  %3501 = vmatpush1.msra.mxu0 0.0
  %3502 = vmatprep.subr.mxu0 0.0
  %3503 = vmatpush1.msra.mxu0 0.0
  %3504 = vmatprep.subr.mxu0 0.0
  %3505 = vmatpush1.msra.mxu0 0.0
  %3506 = vmatprep.subr.mxu0 0.0
  %3507 = vmatpush1.msra.mxu0 0.0
  %3508 = vmatprep.subr.mxu0 0.0
  %3509 = vmatpush1.msra.mxu0 0.0
  %3510 = vmatprep.subr.mxu0 0.0
  %3511 = vmatpush1.msra.mxu0 0.0
  %3512 = vmatprep.subr.mxu0 0.0
  %3513 = vmatpush1.msra.mxu0 0.0
  %3514 = vmatprep.subr.mxu0 0.0
  %3515 = vmatpush1.msra.mxu0 0.0
  %3516 = vmatprep.subr.mxu0 0.0
  %3517 = vmatpush1.msra.mxu0 0.0
  %3518 = vmatprep.subr.mxu0 0.0
  %3519 = vmatpush1.msra.mxu0 0.0
  %3520 = vmatprep.subr.mxu0 0.0
  %3521 = vmatpush1.msra.mxu0 0.0
  %3522 = vmatprep.subr.mxu0 0.0
  %3523 = vmatpush1.msra.mxu0 0.0
  %3524 = vmatprep.subr.mxu0 0.0
  %3525 = vmatpush1.msra.mxu0 0.0
  %3526 = vmatprep.subr.mxu0 0.0
  %3527 = vmatpush1.msra.mxu0 0.0
  %3528 = vmatprep.subr.mxu0 0.0
  %3529 = vmatpush1.msra.mxu0 0.0
  %3530 = vmatprep.subr.mxu0 0.0
  %3531 = vmatpush1.msra.mxu0 0.0
  %3532 = vmatprep.subr.mxu0 0.0
  %3533 = vmatpush1.msra.mxu0 0.0
  %3534 = vmatprep.subr.mxu0 0.0
  %3535 = vmatpush1.msra.mxu0 0.0
  %3536 = vmatprep.subr.mxu0 0.0
  %3537 = vmatpush1.msra.mxu0 0.0
  %3538 = vmatprep.subr.mxu0 0.0
  %3539 = vmatpush1.msra.mxu0 0.0
  %3540 = vmatprep.mubr.f32.mxu0 0.0
  %3541 = vmatmul.mubr.f32.gmra.mrb[0].mxu0 %v3474
  %v3542 = vpop.f32.mrb[0].mxu0
  %v3543 = vadd.f32 0.0, %v3542
  %v3544 = vpop.f32.mrb[0].mxu0
  %3545 = vdwg.mxu0
  %v3546 = vadd.f32 %v3473, %v3543
  %v3547 = vxor.u32 %v3471, 2147483648
  %v3548 = vmul.f32 %v3547, 1.442695
  %v3549 = vpow.pop %v3548
  %v3550 = vadd.f32 %v3549, 1.0
  %v3551 = vrcp.pop %v3550
  %v3552 = vmul.f32 1.0, %v3551
  %v3553 = vtanh.pop %v3471
  %v3554 = vmul.f32 %v3552, %v3354
  %3556 = vrot.lane.b32.xlu0 %v3553, 64
  %v3557 = vpop.permute.xlu0 %3556
  %v3559 = vmul.f32 %v3552, %v3557
  %3561 = vrot.lane.b32.xlu0 %v3559, 32
  %v3562 = vpop.permute.xlu0 %3561
  %v3564 = vadd.f32 %v3554, %v3562
  %v3565 = vtanh.pop %v3564
  %3567 = vrot.lane.b32.xlu0 %v3565, 64
  %v3568 = vpop.permute.xlu0 %3567
  %v3570 = vmul.f32 %v3552, %v3568
  %v3571 = vxor.u32 %v3546, 2147483648
  %v3572 = vmul.f32 %v3571, 1.442695
  %v3573 = vpow.pop %v3572
  %v3574 = vadd.f32 %v3573, 1.0
  %v3575 = vrcp.pop %v3574
  %v3576 = vmul.f32 1.0, %v3575
  %v3577 = vtanh.pop %v3546
  %v3578 = vmul.f32 %v3576, %v3378
  %3580 = vrot.lane.b32.xlu0 %v3577, 64
  %v3581 = vpop.permute.xlu0 %3580
  %v3583 = vmul.f32 %v3576, %v3581
  %3585 = vrot.lane.b32.xlu0 %v3583, 32
  %v3586 = vpop.permute.xlu0 %3585
  %v3588 = vadd.f32 %v3578, %v3586
  %v3589 = vtanh.pop %v3588
  %3591 = vrot.lane.b32.xlu0 %v3589, 64
  %v3592 = vpop.permute.xlu0 %3591
  %v3594 = vmul.f32 %v3576, %v3592
  %3596 = vrot.lane.b32.xlu0 %v3570, 32
  %v3597 = vpop.permute.xlu0 %3596
  %s3599 = scalar_lea.vmem [#allocation4], 112
  %3600 = vst.msk [vmem:[%s3599] sm:$0xff] %vm460, %v3597
  %3602 = vrot.lane.b32.xlu0 %v3594, 32
  %v3603 = vpop.permute.xlu0 %3602
  %s3605 = scalar_lea.vmem [#allocation5], 8
  %3606 = vst.msk [vmem:[%s3605] sm:$0xff] %vm460, %v3603
  %s3607 = scalar_lea.vmem [#allocation2], 120
  %v3608 = vld [vmem:[%s3607] sm:$0xff]
  %v3609 = vsel %vm460, %v3597, 0
  %3611 = vmatprep.subr.mxu0 0.0
  %3612 = vmatpush1.msra.mxu0 %v451
  %3613 = vmatprep.subr.mxu0 0.0
  %3614 = vmatpush1.msra.mxu0 %v452
  %3615 = vmatprep.subr.mxu0 0.0
  %3616 = vmatpush1.msra.mxu0 %v453
  %3617 = vmatprep.subr.mxu0 0.0
  %3618 = vmatpush1.msra.mxu0 %v454
  %3619 = vmatprep.subr.mxu0 0.0
  %3620 = vmatpush1.msra.mxu0 0.0
  %3621 = vmatprep.subr.mxu0 0.0
  %3622 = vmatpush1.msra.mxu0 0.0
  %3623 = vmatprep.subr.mxu0 0.0
  %3624 = vmatpush1.msra.mxu0 0.0
  %3625 = vmatprep.subr.mxu0 0.0
  %3626 = vmatpush1.msra.mxu0 0.0
  %3627 = vmatprep.subr.mxu0 0.0
  %3628 = vmatpush1.msra.mxu0 0.0
  %3629 = vmatprep.subr.mxu0 0.0
  %3630 = vmatpush1.msra.mxu0 0.0
  %3631 = vmatprep.subr.mxu0 0.0
  %3632 = vmatpush1.msra.mxu0 0.0
  %3633 = vmatprep.subr.mxu0 0.0
  %3634 = vmatpush1.msra.mxu0 0.0
  %3635 = vmatprep.subr.mxu0 0.0
  %3636 = vmatpush1.msra.mxu0 0.0
  %3637 = vmatprep.subr.mxu0 0.0
  %3638 = vmatpush1.msra.mxu0 0.0
  %3639 = vmatprep.subr.mxu0 0.0
  %3640 = vmatpush1.msra.mxu0 0.0
  %3641 = vmatprep.subr.mxu0 0.0
  %3642 = vmatpush1.msra.mxu0 0.0
  %3643 = vmatprep.subr.mxu0 0.0
  %3644 = vmatpush1.msra.mxu0 0.0
  %3645 = vmatprep.subr.mxu0 0.0
  %3646 = vmatpush1.msra.mxu0 0.0
  %3647 = vmatprep.subr.mxu0 0.0
  %3648 = vmatpush1.msra.mxu0 0.0
  %3649 = vmatprep.subr.mxu0 0.0
  %3650 = vmatpush1.msra.mxu0 0.0
  %3651 = vmatprep.subr.mxu0 0.0
  %3652 = vmatpush1.msra.mxu0 0.0
  %3653 = vmatprep.subr.mxu0 0.0
  %3654 = vmatpush1.msra.mxu0 0.0
  %3655 = vmatprep.subr.mxu0 0.0
  %3656 = vmatpush1.msra.mxu0 0.0
  %3657 = vmatprep.subr.mxu0 0.0
  %3658 = vmatpush1.msra.mxu0 0.0
  %3659 = vmatprep.subr.mxu0 0.0
  %3660 = vmatpush1.msra.mxu0 0.0
  %3661 = vmatprep.subr.mxu0 0.0
  %3662 = vmatpush1.msra.mxu0 0.0
  %3663 = vmatprep.subr.mxu0 0.0
  %3664 = vmatpush1.msra.mxu0 0.0
  %3665 = vmatprep.subr.mxu0 0.0
  %3666 = vmatpush1.msra.mxu0 0.0
  %3667 = vmatprep.subr.mxu0 0.0
  %3668 = vmatpush1.msra.mxu0 0.0
  %3669 = vmatprep.subr.mxu0 0.0
  %3670 = vmatpush1.msra.mxu0 0.0
  %3671 = vmatprep.subr.mxu0 0.0
  %3672 = vmatpush1.msra.mxu0 0.0
  %3673 = vmatprep.subr.mxu0 0.0
  %3674 = vmatpush1.msra.mxu0 0.0
  %3675 = vmatprep.mubr.f32.mxu0 0.0
  %3676 = vmatmul.mubr.f32.gmra.mrb[0].mxu0 %v3609
  %v3677 = vpop.f32.mrb[0].mxu0
  %v3678 = vadd.f32 0.0, %v3677
  %v3679 = vpop.f32.mrb[0].mxu0
  %3680 = vdwg.mxu0
  %v3681 = vadd.f32 %v3608, %v3678
  %v3682 = vld [vmem:[#allocation3] sm:$0xff]
  %v3683 = vsel %vm460, %v3603, 0
  %3685 = vmatprep.subr.mxu0 0.0
  %3686 = vmatpush1.msra.mxu0 %v455
  %3687 = vmatprep.subr.mxu0 0.0
  %3688 = vmatpush1.msra.mxu0 %v456
  %3689 = vmatprep.subr.mxu0 0.0
  %3690 = vmatpush1.msra.mxu0 %v457
  %3691 = vmatprep.subr.mxu0 0.0
  %3692 = vmatpush1.msra.mxu0 %v458
  %3693 = vmatprep.subr.mxu0 0.0
  %3694 = vmatpush1.msra.mxu0 0.0
  %3695 = vmatprep.subr.mxu0 0.0
  %3696 = vmatpush1.msra.mxu0 0.0
  %3697 = vmatprep.subr.mxu0 0.0
  %3698 = vmatpush1.msra.mxu0 0.0
  %3699 = vmatprep.subr.mxu0 0.0
  %3700 = vmatpush1.msra.mxu0 0.0
  %3701 = vmatprep.subr.mxu0 0.0
  %3702 = vmatpush1.msra.mxu0 0.0
  %3703 = vmatprep.subr.mxu0 0.0
  %3704 = vmatpush1.msra.mxu0 0.0
  %3705 = vmatprep.subr.mxu0 0.0
  %3706 = vmatpush1.msra.mxu0 0.0
  %3707 = vmatprep.subr.mxu0 0.0
  %3708 = vmatpush1.msra.mxu0 0.0
  %3709 = vmatprep.subr.mxu0 0.0
  %3710 = vmatpush1.msra.mxu0 0.0
  %3711 = vmatprep.subr.mxu0 0.0
  %3712 = vmatpush1.msra.mxu0 0.0
  %3713 = vmatprep.subr.mxu0 0.0
  %3714 = vmatpush1.msra.mxu0 0.0
  %3715 = vmatprep.subr.mxu0 0.0
  %3716 = vmatpush1.msra.mxu0 0.0
  %3717 = vmatprep.subr.mxu0 0.0
  %3718 = vmatpush1.msra.mxu0 0.0
  %3719 = vmatprep.subr.mxu0 0.0
  %3720 = vmatpush1.msra.mxu0 0.0
  %3721 = vmatprep.subr.mxu0 0.0
  %3722 = vmatpush1.msra.mxu0 0.0
  %3723 = vmatprep.subr.mxu0 0.0
  %3724 = vmatpush1.msra.mxu0 0.0
  %3725 = vmatprep.subr.mxu0 0.0
  %3726 = vmatpush1.msra.mxu0 0.0
  %3727 = vmatprep.subr.mxu0 0.0
  %3728 = vmatpush1.msra.mxu0 0.0
  %3729 = vmatprep.subr.mxu0 0.0
  %3730 = vmatpush1.msra.mxu0 0.0
  %3731 = vmatprep.subr.mxu0 0.0
  %3732 = vmatpush1.msra.mxu0 0.0
  %3733 = vmatprep.subr.mxu0 0.0
  %3734 = vmatpush1.msra.mxu0 0.0
  %3735 = vmatprep.subr.mxu0 0.0
  %3736 = vmatpush1.msra.mxu0 0.0
  %3737 = vmatprep.subr.mxu0 0.0
  %3738 = vmatpush1.msra.mxu0 0.0
  %3739 = vmatprep.subr.mxu0 0.0
  %3740 = vmatpush1.msra.mxu0 0.0
  %3741 = vmatprep.subr.mxu0 0.0
  %3742 = vmatpush1.msra.mxu0 0.0
  %3743 = vmatprep.subr.mxu0 0.0
  %3744 = vmatpush1.msra.mxu0 0.0
  %3745 = vmatprep.subr.mxu0 0.0
  %3746 = vmatpush1.msra.mxu0 0.0
  %3747 = vmatprep.subr.mxu0 0.0
  %3748 = vmatpush1.msra.mxu0 0.0
  %3749 = vmatprep.mubr.f32.mxu0 0.0
  %3750 = vmatmul.mubr.f32.gmra.mrb[0].mxu0 %v3683
  %v3751 = vpop.f32.mrb[0].mxu0
  %v3752 = vadd.f32 0.0, %v3751
  %v3753 = vpop.f32.mrb[0].mxu0
  %3754 = vdwg.mxu0
  %v3755 = vadd.f32 %v3682, %v3752
  %v3756 = vxor.u32 %v3681, 2147483648
  %v3757 = vmul.f32 %v3756, 1.442695
  %v3758 = vpow.pop %v3757
  %v3759 = vadd.f32 %v3758, 1.0
  %v3760 = vrcp.pop %v3759
  %v3761 = vmul.f32 1.0, %v3760
  %v3762 = vtanh.pop %v3681
  %v3763 = vmul.f32 %v3761, %v3564
  %3765 = vrot.lane.b32.xlu0 %v3762, 64
  %v3766 = vpop.permute.xlu0 %3765
  %v3768 = vmul.f32 %v3761, %v3766
  %3770 = vrot.lane.b32.xlu0 %v3768, 32
  %v3771 = vpop.permute.xlu0 %3770
  %v3773 = vadd.f32 %v3763, %v3771
  %v3774 = vtanh.pop %v3773
  %3776 = vrot.lane.b32.xlu0 %v3774, 64
  %v3777 = vpop.permute.xlu0 %3776
  %v3779 = vmul.f32 %v3761, %v3777
  %v3780 = vxor.u32 %v3755, 2147483648
  %v3781 = vmul.f32 %v3780, 1.442695
  %v3782 = vpow.pop %v3781
  %v3783 = vadd.f32 %v3782, 1.0
  %v3784 = vrcp.pop %v3783
  %v3785 = vmul.f32 1.0, %v3784
  %v3786 = vtanh.pop %v3755
  %v3787 = vmul.f32 %v3785, %v3588
  %3789 = vrot.lane.b32.xlu0 %v3786, 64
  %v3790 = vpop.permute.xlu0 %3789
  %v3792 = vmul.f32 %v3785, %v3790
  %3794 = vrot.lane.b32.xlu0 %v3792, 32
  %v3795 = vpop.permute.xlu0 %3794
  %v3797 = vadd.f32 %v3787, %v3795
  %v3798 = vtanh.pop %v3797
  %3800 = vrot.lane.b32.xlu0 %v3798, 64
  %v3801 = vpop.permute.xlu0 %3800
  %v3803 = vmul.f32 %v3785, %v3801
  %3805 = vrot.lane.b32.xlu0 %v3779, 32
  %v3806 = vpop.permute.xlu0 %3805
  %s3808 = scalar_lea.vmem [#allocation4], 120
  %3809 = vst.msk [vmem:[%s3808] sm:$0xff] %vm460, %v3806
  %3811 = vrot.lane.b32.xlu0 %v3803, 32
  %v3812 = vpop.permute.xlu0 %3811
  %3814 = vst.msk [vmem:[#allocation5] sm:$0xff] %vm460, %v3812
  %v3815 = vld [vmem:[#allocation4] sm:$0xff]
  %v3816 = vld [vmem:[#allocation4 + $0x8] sm:$0xff]
  %v3817 = vld [vmem:[#allocation4 + $0x10] sm:$0xff]
  %v3818 = vld [vmem:[#allocation4 + $0x18] sm:$0xff]
  %v3819 = vld [vmem:[#allocation4 + $0x20] sm:$0xff]
  %v3820 = vld [vmem:[#allocation4 + $0x28] sm:$0xff]
  %v3821 = vld [vmem:[#allocation4 + $0x30] sm:$0xff]
  %v3822 = vld [vmem:[#allocation4 + $0x38] sm:$0xff]
  %v3823 = vld [vmem:[#allocation4 + $0x40] sm:$0xff]
  %v3824 = vld [vmem:[#allocation4 + $0x48] sm:$0xff]
  %v3825 = vld [vmem:[#allocation4 + $0x50] sm:$0xff]
  %v3826 = vld [vmem:[#allocation4 + $0x58] sm:$0xff]
  %v3827 = vld [vmem:[#allocation4 + $0x60] sm:$0xff]
  %v3828 = vld [vmem:[#allocation4 + $0x68] sm:$0xff]
  %v3829 = vld [vmem:[#allocation4 + $0x70] sm:$0xff]
  %v3830 = vld [vmem:[#allocation4 + $0x78] sm:$0xff]
  %v3831 = vld [vmem:[#allocation5] sm:$0xff]
  %v3832 = vld [vmem:[#allocation5 + $0x8] sm:$0xff]
  %v3833 = vld [vmem:[#allocation5 + $0x10] sm:$0xff]
  %v3834 = vld [vmem:[#allocation5 + $0x18] sm:$0xff]
  %v3835 = vld [vmem:[#allocation5 + $0x20] sm:$0xff]
  %v3836 = vld [vmem:[#allocation5 + $0x28] sm:$0xff]
  %v3837 = vld [vmem:[#allocation5 + $0x30] sm:$0xff]
  %v3838 = vld [vmem:[#allocation5 + $0x38] sm:$0xff]
  %v3839 = vld [vmem:[#allocation5 + $0x40] sm:$0xff]
  %v3840 = vld [vmem:[#allocation5 + $0x48] sm:$0xff]
  %v3841 = vld [vmem:[#allocation5 + $0x50] sm:$0xff]
  %v3842 = vld [vmem:[#allocation5 + $0x58] sm:$0xff]
  %v3843 = vld [vmem:[#allocation5 + $0x60] sm:$0xff]
  %v3844 = vld [vmem:[#allocation5 + $0x68] sm:$0xff]
  %v3845 = vld [vmem:[#allocation5 + $0x70] sm:$0xff]
  %v3846 = vld [vmem:[#allocation5 + $0x78] sm:$0xff]
  %v3847 = vld [vmem:[%s7] sm:$0xff]
  %v3848 = vld [vmem:[%s7 + $0x8] sm:$0xff]
  %v3849 = vld [vmem:[%s7 + $0x10] sm:$0xff]
  %v3850 = vld [vmem:[%s7 + $0x18] sm:$0xff]
  %v3851 = vld [vmem:[%s8] sm:$0xff]
  %v3852 = vld [vmem:[%s8 + $0x8] sm:$0xff]
  %v3853 = vld [vmem:[%s8 + $0x10] sm:$0xff]
  %v3854 = vld [vmem:[%s8 + $0x18] sm:$0xff]
  %v3856 = vsel %vm460, %v3831, 0
  %v3859 = vsel %vm460, %v3832, 0
  %v3862 = vsel %vm460, %v3833, 0
  %v3865 = vsel %vm460, %v3834, 0
  %v3868 = vsel %vm460, %v3835, 0
  %v3871 = vsel %vm460, %v3836, 0
  %v3874 = vsel %vm460, %v3837, 0
  %v3877 = vsel %vm460, %v3838, 0
  %v3880 = vsel %vm460, %v3839, 0
  %v3883 = vsel %vm460, %v3840, 0
  %v3886 = vsel %vm460, %v3841, 0
  %v3889 = vsel %vm460, %v3842, 0
  %v3892 = vsel %vm460, %v3843, 0
  %v3895 = vsel %vm460, %v3844, 0
  %v3898 = vsel %vm460, %v3845, 0
  %v3901 = vsel %vm460, %v3846, 0
  %3903 = vmatprep.subr.mxu0 0.0
  %3904 = vmatpush1.msra.mxu0 %v3851
  %3905 = vmatprep.subr.mxu0 0.0
  %3906 = vmatpush1.msra.mxu0 %v3852
  %3907 = vmatprep.subr.mxu0 0.0
  %3908 = vmatpush1.msra.mxu0 %v3853
  %3909 = vmatprep.subr.mxu0 0.0
  %3910 = vmatpush1.msra.mxu0 %v3854
  %3911 = vmatprep.subr.mxu0 0.0
  %3912 = vmatpush1.msra.mxu0 0.0
  %3913 = vmatprep.subr.mxu0 0.0
  %3914 = vmatpush1.msra.mxu0 0.0
  %3915 = vmatprep.subr.mxu0 0.0
  %3916 = vmatpush1.msra.mxu0 0.0
  %3917 = vmatprep.subr.mxu0 0.0
  %3918 = vmatpush1.msra.mxu0 0.0
  %3919 = vmatprep.subr.mxu0 0.0
  %3920 = vmatpush1.msra.mxu0 0.0
  %3921 = vmatprep.subr.mxu0 0.0
  %3922 = vmatpush1.msra.mxu0 0.0
  %3923 = vmatprep.subr.mxu0 0.0
  %3924 = vmatpush1.msra.mxu0 0.0
  %3925 = vmatprep.subr.mxu0 0.0
  %3926 = vmatpush1.msra.mxu0 0.0
  %3927 = vmatprep.subr.mxu0 0.0
  %3928 = vmatpush1.msra.mxu0 0.0
  %3929 = vmatprep.subr.mxu0 0.0
  %3930 = vmatpush1.msra.mxu0 0.0
  %3931 = vmatprep.subr.mxu0 0.0
  %3932 = vmatpush1.msra.mxu0 0.0
  %3933 = vmatprep.subr.mxu0 0.0
  %3934 = vmatpush1.msra.mxu0 0.0
  %3935 = vmatprep.subr.mxu0 0.0
  %3936 = vmatpush1.msra.mxu0 0.0
  %3937 = vmatprep.subr.mxu0 0.0
  %3938 = vmatpush1.msra.mxu0 0.0
  %3939 = vmatprep.subr.mxu0 0.0
  %3940 = vmatpush1.msra.mxu0 0.0
  %3941 = vmatprep.subr.mxu0 0.0
  %3942 = vmatpush1.msra.mxu0 0.0
  %3943 = vmatprep.subr.mxu0 0.0
  %3944 = vmatpush1.msra.mxu0 0.0
  %3945 = vmatprep.subr.mxu0 0.0
  %3946 = vmatpush1.msra.mxu0 0.0
  %3947 = vmatprep.subr.mxu0 0.0
  %3948 = vmatpush1.msra.mxu0 0.0
  %3949 = vmatprep.subr.mxu0 0.0
  %3950 = vmatpush1.msra.mxu0 0.0
  %3951 = vmatprep.subr.mxu0 0.0
  %3952 = vmatpush1.msra.mxu0 0.0
  %3953 = vmatprep.subr.mxu0 0.0
  %3954 = vmatpush1.msra.mxu0 0.0
  %3955 = vmatprep.subr.mxu0 0.0
  %3956 = vmatpush1.msra.mxu0 0.0
  %3957 = vmatprep.subr.mxu0 0.0
  %3958 = vmatpush1.msra.mxu0 0.0
  %3959 = vmatprep.subr.mxu0 0.0
  %3960 = vmatpush1.msra.mxu0 0.0
  %3961 = vmatprep.subr.mxu0 0.0
  %3962 = vmatpush1.msra.mxu0 0.0
  %3963 = vmatprep.subr.mxu0 0.0
  %3964 = vmatpush1.msra.mxu0 0.0
  %3965 = vmatprep.subr.mxu0 0.0
  %3966 = vmatpush1.msra.mxu0 0.0
  %3967 = vmatprep.mubr.f32.mxu0 0.0
  %3968 = vmatmul.mubr.f32.gmra.mrb[0].mxu0 %v3856
  %v3969 = vpop.f32.mrb[0].mxu0
  %v3970 = vadd.f32 0.0, %v3969
  %v3971 = vpop.f32.mrb[0].mxu0
  %3972 = vmatprep.mubr.f32.mxu0 0.0
  %3973 = vmatmul.mubr.f32.gmra.mrb[0].mxu0 %v3859
  %v3974 = vpop.f32.mrb[0].mxu0
  %v3975 = vadd.f32 0.0, %v3974
  %v3976 = vpop.f32.mrb[0].mxu0
  %3977 = vmatprep.mubr.f32.mxu0 0.0
  %3978 = vmatmul.mubr.f32.gmra.mrb[0].mxu0 %v3862
  %v3979 = vpop.f32.mrb[0].mxu0
  %v3980 = vadd.f32 0.0, %v3979
  %v3981 = vpop.f32.mrb[0].mxu0
  %3982 = vmatprep.mubr.f32.mxu0 0.0
  %3983 = vmatmul.mubr.f32.gmra.mrb[0].mxu0 %v3865
  %v3984 = vpop.f32.mrb[0].mxu0
  %v3985 = vadd.f32 0.0, %v3984
  %v3986 = vpop.f32.mrb[0].mxu0
  %3987 = vmatprep.mubr.f32.mxu0 0.0
  %3988 = vmatmul.mubr.f32.gmra.mrb[0].mxu0 %v3868
  %v3989 = vpop.f32.mrb[0].mxu0
  %v3990 = vadd.f32 0.0, %v3989
  %v3991 = vpop.f32.mrb[0].mxu0
  %3992 = vmatprep.mubr.f32.mxu0 0.0
  %3993 = vmatmul.mubr.f32.gmra.mrb[0].mxu0 %v3871
  %v3994 = vpop.f32.mrb[0].mxu0
  %v3995 = vadd.f32 0.0, %v3994
  %v3996 = vpop.f32.mrb[0].mxu0
  %3997 = vmatprep.mubr.f32.mxu0 0.0
  %3998 = vmatmul.mubr.f32.gmra.mrb[0].mxu0 %v3874
  %v3999 = vpop.f32.mrb[0].mxu0
  %v4000 = vadd.f32 0.0, %v3999
  %v4001 = vpop.f32.mrb[0].mxu0
  %4002 = vmatprep.mubr.f32.mxu0 0.0
  %4003 = vmatmul.mubr.f32.gmra.mrb[0].mxu0 %v3877
  %v4004 = vpop.f32.mrb[0].mxu0
  %v4005 = vadd.f32 0.0, %v4004
  %v4006 = vpop.f32.mrb[0].mxu0
  %4007 = vmatprep.mubr.f32.mxu0 0.0
  %4008 = vmatmul.mubr.f32.gmra.mrb[0].mxu0 %v3880
  %v4009 = vpop.f32.mrb[0].mxu0
  %v4010 = vadd.f32 0.0, %v4009
  %v4011 = vpop.f32.mrb[0].mxu0
  %4012 = vmatprep.mubr.f32.mxu0 0.0
  %4013 = vmatmul.mubr.f32.gmra.mrb[0].mxu0 %v3883
  %v4014 = vpop.f32.mrb[0].mxu0
  %v4015 = vadd.f32 0.0, %v4014
  %v4016 = vpop.f32.mrb[0].mxu0
  %4017 = vmatprep.mubr.f32.mxu0 0.0
  %4018 = vmatmul.mubr.f32.gmra.mrb[0].mxu0 %v3886
  %v4019 = vpop.f32.mrb[0].mxu0
  %v4020 = vadd.f32 0.0, %v4019
  %v4021 = vpop.f32.mrb[0].mxu0
  %4022 = vmatprep.mubr.f32.mxu0 0.0
  %4023 = vmatmul.mubr.f32.gmra.mrb[0].mxu0 %v3889
  %v4024 = vpop.f32.mrb[0].mxu0
  %v4025 = vadd.f32 0.0, %v4024
  %v4026 = vpop.f32.mrb[0].mxu0
  %4027 = vmatprep.mubr.f32.mxu0 0.0
  %4028 = vmatmul.mubr.f32.gmra.mrb[0].mxu0 %v3892
  %v4029 = vpop.f32.mrb[0].mxu0
  %v4030 = vadd.f32 0.0, %v4029
  %v4031 = vpop.f32.mrb[0].mxu0
  %4032 = vmatprep.mubr.f32.mxu0 0.0
  %4033 = vmatmul.mubr.f32.gmra.mrb[0].mxu0 %v3895
  %v4034 = vpop.f32.mrb[0].mxu0
  %v4035 = vadd.f32 0.0, %v4034
  %v4036 = vpop.f32.mrb[0].mxu0
  %4037 = vmatprep.mubr.f32.mxu0 0.0
  %4038 = vmatmul.mubr.f32.gmra.mrb[0].mxu0 %v3898
  %v4039 = vpop.f32.mrb[0].mxu0
  %v4040 = vadd.f32 0.0, %v4039
  %v4041 = vpop.f32.mrb[0].mxu0
  %4042 = vmatprep.mubr.f32.mxu0 0.0
  %4043 = vmatmul.mubr.f32.gmra.mrb[0].mxu0 %v3901
  %v4044 = vpop.f32.mrb[0].mxu0
  %v4045 = vadd.f32 0.0, %v4044
  %v4046 = vpop.f32.mrb[0].mxu0
  %4047 = vdwg.mxu0
  %v4049 = vsel %vm460, %v3815, 0
  %v4052 = vsel %vm460, %v3816, 0
  %v4055 = vsel %vm460, %v3817, 0
  %v4058 = vsel %vm460, %v3818, 0
  %v4061 = vsel %vm460, %v3819, 0
  %v4064 = vsel %vm460, %v3820, 0
  %v4067 = vsel %vm460, %v3821, 0
  %v4070 = vsel %vm460, %v3822, 0
  %v4073 = vsel %vm460, %v3823, 0
  %v4076 = vsel %vm460, %v3824, 0
  %v4079 = vsel %vm460, %v3825, 0
  %v4082 = vsel %vm460, %v3826, 0
  %v4085 = vsel %vm460, %v3827, 0
  %v4088 = vsel %vm460, %v3828, 0
  %v4091 = vsel %vm460, %v3829, 0
  %v4094 = vsel %vm460, %v3830, 0
  %4096 = vmatprep.subr.mxu0 0.0
  %4097 = vmatpush1.msra.mxu0 %v3847
  %4098 = vmatprep.subr.mxu0 0.0
  %4099 = vmatpush1.msra.mxu0 %v3848
  %4100 = vmatprep.subr.mxu0 0.0
  %4101 = vmatpush1.msra.mxu0 %v3849
  %4102 = vmatprep.subr.mxu0 0.0
  %4103 = vmatpush1.msra.mxu0 %v3850
  %4104 = vmatprep.subr.mxu0 0.0
  %4105 = vmatpush1.msra.mxu0 0.0
  %4106 = vmatprep.subr.mxu0 0.0
  %4107 = vmatpush1.msra.mxu0 0.0
  %4108 = vmatprep.subr.mxu0 0.0
  %4109 = vmatpush1.msra.mxu0 0.0
  %4110 = vmatprep.subr.mxu0 0.0
  %4111 = vmatpush1.msra.mxu0 0.0
  %4112 = vmatprep.subr.mxu0 0.0
  %4113 = vmatpush1.msra.mxu0 0.0
  %4114 = vmatprep.subr.mxu0 0.0
  %4115 = vmatpush1.msra.mxu0 0.0
  %4116 = vmatprep.subr.mxu0 0.0
  %4117 = vmatpush1.msra.mxu0 0.0
  %4118 = vmatprep.subr.mxu0 0.0
  %4119 = vmatpush1.msra.mxu0 0.0
  %4120 = vmatprep.subr.mxu0 0.0
  %4121 = vmatpush1.msra.mxu0 0.0
  %4122 = vmatprep.subr.mxu0 0.0
  %4123 = vmatpush1.msra.mxu0 0.0
  %4124 = vmatprep.subr.mxu0 0.0
  %4125 = vmatpush1.msra.mxu0 0.0
  %4126 = vmatprep.subr.mxu0 0.0
  %4127 = vmatpush1.msra.mxu0 0.0
  %4128 = vmatprep.subr.mxu0 0.0
  %4129 = vmatpush1.msra.mxu0 0.0
  %4130 = vmatprep.subr.mxu0 0.0
  %4131 = vmatpush1.msra.mxu0 0.0
  %4132 = vmatprep.subr.mxu0 0.0
  %4133 = vmatpush1.msra.mxu0 0.0
  %4134 = vmatprep.subr.mxu0 0.0
  %4135 = vmatpush1.msra.mxu0 0.0
  %4136 = vmatprep.subr.mxu0 0.0
  %4137 = vmatpush1.msra.mxu0 0.0
  %4138 = vmatprep.subr.mxu0 0.0
  %4139 = vmatpush1.msra.mxu0 0.0
  %4140 = vmatprep.subr.mxu0 0.0
  %4141 = vmatpush1.msra.mxu0 0.0
  %4142 = vmatprep.subr.mxu0 0.0
  %4143 = vmatpush1.msra.mxu0 0.0
  %4144 = vmatprep.subr.mxu0 0.0
  %4145 = vmatpush1.msra.mxu0 0.0
  %4146 = vmatprep.subr.mxu0 0.0
  %4147 = vmatpush1.msra.mxu0 0.0
  %4148 = vmatprep.subr.mxu0 0.0
  %4149 = vmatpush1.msra.mxu0 0.0
  %4150 = vmatprep.subr.mxu0 0.0
  %4151 = vmatpush1.msra.mxu0 0.0
  %4152 = vmatprep.subr.mxu0 0.0
  %4153 = vmatpush1.msra.mxu0 0.0
  %4154 = vmatprep.subr.mxu0 0.0
  %4155 = vmatpush1.msra.mxu0 0.0
  %4156 = vmatprep.subr.mxu0 0.0
  %4157 = vmatpush1.msra.mxu0 0.0
  %4158 = vmatprep.subr.mxu0 0.0
  %4159 = vmatpush1.msra.mxu0 0.0
  %4160 = vmatprep.mubr.f32.mxu0 0.0
  %4161 = vmatmul.mubr.f32.gmra.mrb[0].mxu0 %v4049
  %v4162 = vpop.f32.mrb[0].mxu0
  %v4163 = vadd.f32 %v3970, %v4162
  %v4164 = vpop.f32.mrb[0].mxu0
  %4165 = vmatprep.mubr.f32.mxu0 0.0
  %4166 = vmatmul.mubr.f32.gmra.mrb[0].mxu0 %v4052
  %v4167 = vpop.f32.mrb[0].mxu0
  %v4168 = vadd.f32 %v3975, %v4167
  %v4169 = vpop.f32.mrb[0].mxu0
  %4170 = vmatprep.mubr.f32.mxu0 0.0
  %4171 = vmatmul.mubr.f32.gmra.mrb[0].mxu0 %v4055
  %v4172 = vpop.f32.mrb[0].mxu0
  %v4173 = vadd.f32 %v3980, %v4172
  %v4174 = vpop.f32.mrb[0].mxu0
  %4175 = vmatprep.mubr.f32.mxu0 0.0
  %4176 = vmatmul.mubr.f32.gmra.mrb[0].mxu0 %v4058
  %v4177 = vpop.f32.mrb[0].mxu0
  %v4178 = vadd.f32 %v3985, %v4177
  %v4179 = vpop.f32.mrb[0].mxu0
  %4180 = vmatprep.mubr.f32.mxu0 0.0
  %4181 = vmatmul.mubr.f32.gmra.mrb[0].mxu0 %v4061
  %v4182 = vpop.f32.mrb[0].mxu0
  %v4183 = vadd.f32 %v3990, %v4182
  %v4184 = vpop.f32.mrb[0].mxu0
  %4185 = vmatprep.mubr.f32.mxu0 0.0
  %4186 = vmatmul.mubr.f32.gmra.mrb[0].mxu0 %v4064
  %v4187 = vpop.f32.mrb[0].mxu0
  %v4188 = vadd.f32 %v3995, %v4187
  %v4189 = vpop.f32.mrb[0].mxu0
  %4190 = vmatprep.mubr.f32.mxu0 0.0
  %4191 = vmatmul.mubr.f32.gmra.mrb[0].mxu0 %v4067
  %v4192 = vpop.f32.mrb[0].mxu0
  %v4193 = vadd.f32 %v4000, %v4192
  %v4194 = vpop.f32.mrb[0].mxu0
  %4195 = vmatprep.mubr.f32.mxu0 0.0
  %4196 = vmatmul.mubr.f32.gmra.mrb[0].mxu0 %v4070
  %v4197 = vpop.f32.mrb[0].mxu0
  %v4198 = vadd.f32 %v4005, %v4197
  %v4199 = vpop.f32.mrb[0].mxu0
  %4200 = vmatprep.mubr.f32.mxu0 0.0
  %4201 = vmatmul.mubr.f32.gmra.mrb[0].mxu0 %v4073
  %v4202 = vpop.f32.mrb[0].mxu0
  %v4203 = vadd.f32 %v4010, %v4202
  %v4204 = vpop.f32.mrb[0].mxu0
  %4205 = vmatprep.mubr.f32.mxu0 0.0
  %4206 = vmatmul.mubr.f32.gmra.mrb[0].mxu0 %v4076
  %v4207 = vpop.f32.mrb[0].mxu0
  %v4208 = vadd.f32 %v4015, %v4207
  %v4209 = vpop.f32.mrb[0].mxu0
  %4210 = vmatprep.mubr.f32.mxu0 0.0
  %4211 = vmatmul.mubr.f32.gmra.mrb[0].mxu0 %v4079
  %v4212 = vpop.f32.mrb[0].mxu0
  %v4213 = vadd.f32 %v4020, %v4212
  %v4214 = vpop.f32.mrb[0].mxu0
  %4215 = vmatprep.mubr.f32.mxu0 0.0
  %4216 = vmatmul.mubr.f32.gmra.mrb[0].mxu0 %v4082
  %v4217 = vpop.f32.mrb[0].mxu0
  %v4218 = vadd.f32 %v4025, %v4217
  %v4219 = vpop.f32.mrb[0].mxu0
  %4220 = vmatprep.mubr.f32.mxu0 0.0
  %4221 = vmatmul.mubr.f32.gmra.mrb[0].mxu0 %v4085
  %v4222 = vpop.f32.mrb[0].mxu0
  %v4223 = vadd.f32 %v4030, %v4222
  %v4224 = vpop.f32.mrb[0].mxu0
  %4225 = vmatprep.mubr.f32.mxu0 0.0
  %4226 = vmatmul.mubr.f32.gmra.mrb[0].mxu0 %v4088
  %v4227 = vpop.f32.mrb[0].mxu0
  %v4228 = vadd.f32 %v4035, %v4227
  %v4229 = vpop.f32.mrb[0].mxu0
  %4230 = vmatprep.mubr.f32.mxu0 0.0
  %4231 = vmatmul.mubr.f32.gmra.mrb[0].mxu0 %v4091
  %v4232 = vpop.f32.mrb[0].mxu0
  %v4233 = vadd.f32 %v4040, %v4232
  %v4234 = vpop.f32.mrb[0].mxu0
  %4235 = vmatprep.mubr.f32.mxu0 0.0
  %4236 = vmatmul.mubr.f32.gmra.mrb[0].mxu0 %v4094
  %v4237 = vpop.f32.mrb[0].mxu0
  %v4238 = vadd.f32 %v4045, %v4237
  %v4239 = vpop.f32.mrb[0].mxu0
  %4240 = vdwg.mxu0
  %v4241 = vld [vmem:[%s9] sm:$0x1]
  %v4243 = vlaneseq
  %v4244 = vshrl.u32 %v4243, 7
  %v4245 = vsub.s32 0, %v4244
  %v4246 = vrot.slane %v4241, %v4245
  %v4248 = vadd.f32 %v4163, %v4246
  %v4249 = vadd.f32 %v4168, %v4246
  %v4250 = vadd.f32 %v4173, %v4246
  %v4251 = vadd.f32 %v4178, %v4246
  %v4252 = vadd.f32 %v4183, %v4246
  %v4253 = vadd.f32 %v4188, %v4246
  %v4254 = vadd.f32 %v4193, %v4246
  %v4255 = vadd.f32 %v4198, %v4246
  %v4256 = vadd.f32 %v4203, %v4246
  %v4257 = vadd.f32 %v4208, %v4246
  %v4258 = vadd.f32 %v4213, %v4246
  %v4259 = vadd.f32 %v4218, %v4246
  %v4260 = vadd.f32 %v4223, %v4246
  %v4261 = vadd.f32 %v4228, %v4246
  %v4262 = vadd.f32 %v4233, %v4246
  %v4263 = vadd.f32 %v4238, %v4246
  %v4264 = vmax.f32 %v4248, 0.0
  %v4265 = vmax.f32 %v4249, 0.0
  %v4266 = vmax.f32 %v4250, 0.0
  %v4267 = vmax.f32 %v4251, 0.0
  %v4268 = vmax.f32 %v4252, 0.0
  %v4269 = vmax.f32 %v4253, 0.0
  %v4270 = vmax.f32 %v4254, 0.0
  %v4271 = vmax.f32 %v4255, 0.0
  %v4272 = vmax.f32 %v4256, 0.0
  %v4273 = vmax.f32 %v4257, 0.0
  %v4274 = vmax.f32 %v4258, 0.0
  %v4275 = vmax.f32 %v4259, 0.0
  %v4276 = vmax.f32 %v4260, 0.0
  %v4277 = vmax.f32 %v4261, 0.0
  %v4278 = vmax.f32 %v4262, 0.0
  %v4279 = vmax.f32 %v4263, 0.0
  %v4280 = vld [vmem:[%s10] sm:$0xff]
  %v4281 = vld [vmem:[%s10 + $0x8] sm:$0xff]
  %v4282 = vld [vmem:[%s11] sm:$0x1]
  %v4284 = vlaneseq
  %v4285 = vshrl.u32 %v4284, 7
  %v4286 = vsub.s32 0, %v4285
  %v4287 = vrot.slane %v4282, %v4286
  %vm4289 = vcmask 130048
  %v4291 = vsel %vm4289, %v4264, 0
  %v4294 = vsel %vm4289, %v4265, 0
  %v4297 = vsel %vm4289, %v4266, 0
  %v4300 = vsel %vm4289, %v4267, 0
  %v4303 = vsel %vm4289, %v4268, 0
  %v4306 = vsel %vm4289, %v4269, 0
  %v4309 = vsel %vm4289, %v4270, 0
  %v4312 = vsel %vm4289, %v4271, 0
  %v4315 = vsel %vm4289, %v4272, 0
  %v4318 = vsel %vm4289, %v4273, 0
  %v4321 = vsel %vm4289, %v4274, 0
  %v4324 = vsel %vm4289, %v4275, 0
  %v4327 = vsel %vm4289, %v4276, 0
  %v4330 = vsel %vm4289, %v4277, 0
  %v4333 = vsel %vm4289, %v4278, 0
  %v4336 = vsel %vm4289, %v4279, 0
  %4338 = vmatprep.subr.mxu0 0.0
  %4339 = vmatpush1.msra.mxu0 %v4280
  %4340 = vmatprep.subr.mxu0 0.0
  %4341 = vmatpush1.msra.mxu0 %v4281
  %4342 = vmatprep.subr.mxu0 0.0
  %4343 = vmatpush1.msra.mxu0 0.0
  %4344 = vmatprep.subr.mxu0 0.0
  %4345 = vmatpush1.msra.mxu0 0.0
  %4346 = vmatprep.subr.mxu0 0.0
  %4347 = vmatpush1.msra.mxu0 0.0
  %4348 = vmatprep.subr.mxu0 0.0
  %4349 = vmatpush1.msra.mxu0 0.0
  %4350 = vmatprep.subr.mxu0 0.0
  %4351 = vmatpush1.msra.mxu0 0.0
  %4352 = vmatprep.subr.mxu0 0.0
  %4353 = vmatpush1.msra.mxu0 0.0
  %4354 = vmatprep.subr.mxu0 0.0
  %4355 = vmatpush1.msra.mxu0 0.0
  %4356 = vmatprep.subr.mxu0 0.0
  %4357 = vmatpush1.msra.mxu0 0.0
  %4358 = vmatprep.subr.mxu0 0.0
  %4359 = vmatpush1.msra.mxu0 0.0
  %4360 = vmatprep.subr.mxu0 0.0
  %4361 = vmatpush1.msra.mxu0 0.0
  %4362 = vmatprep.subr.mxu0 0.0
  %4363 = vmatpush1.msra.mxu0 0.0
  %4364 = vmatprep.subr.mxu0 0.0
  %4365 = vmatpush1.msra.mxu0 0.0
  %4366 = vmatprep.subr.mxu0 0.0
  %4367 = vmatpush1.msra.mxu0 0.0
  %4368 = vmatprep.subr.mxu0 0.0
  %4369 = vmatpush1.msra.mxu0 0.0
  %4370 = vmatprep.subr.mxu0 0.0
  %4371 = vmatpush1.msra.mxu0 0.0
  %4372 = vmatprep.subr.mxu0 0.0
  %4373 = vmatpush1.msra.mxu0 0.0
  %4374 = vmatprep.subr.mxu0 0.0
  %4375 = vmatpush1.msra.mxu0 0.0
  %4376 = vmatprep.subr.mxu0 0.0
  %4377 = vmatpush1.msra.mxu0 0.0
  %4378 = vmatprep.subr.mxu0 0.0
  %4379 = vmatpush1.msra.mxu0 0.0
  %4380 = vmatprep.subr.mxu0 0.0
  %4381 = vmatpush1.msra.mxu0 0.0
  %4382 = vmatprep.subr.mxu0 0.0
  %4383 = vmatpush1.msra.mxu0 0.0
  %4384 = vmatprep.subr.mxu0 0.0
  %4385 = vmatpush1.msra.mxu0 0.0
  %4386 = vmatprep.subr.mxu0 0.0
  %4387 = vmatpush1.msra.mxu0 0.0
  %4388 = vmatprep.subr.mxu0 0.0
  %4389 = vmatpush1.msra.mxu0 0.0
  %4390 = vmatprep.subr.mxu0 0.0
  %4391 = vmatpush1.msra.mxu0 0.0
  %4392 = vmatprep.subr.mxu0 0.0
  %4393 = vmatpush1.msra.mxu0 0.0
  %4394 = vmatprep.subr.mxu0 0.0
  %4395 = vmatpush1.msra.mxu0 0.0
  %4396 = vmatprep.subr.mxu0 0.0
  %4397 = vmatpush1.msra.mxu0 0.0
  %4398 = vmatprep.subr.mxu0 0.0
  %4399 = vmatpush1.msra.mxu0 0.0
  %4400 = vmatprep.subr.mxu0 0.0
  %4401 = vmatpush1.msra.mxu0 0.0
  %4402 = vmatprep.mubr.f32.mxu0 0.0
  %4403 = vmatmul.mubr.f32.gmra.mrb[0].mxu0 %v4291
  %v4404 = vpop.f32.mrb[0].mxu0
  %v4405 = vadd.f32 %v4287, %v4404
  %v4406 = vpop.f32.mrb[0].mxu0
  %4407 = vmatprep.mubr.f32.mxu0 0.0
  %4408 = vmatmul.mubr.f32.gmra.mrb[0].mxu0 %v4294
  %v4409 = vpop.f32.mrb[0].mxu0
  %v4410 = vadd.f32 %v4287, %v4409
  %v4411 = vpop.f32.mrb[0].mxu0
  %4412 = vmatprep.mubr.f32.mxu0 0.0
  %4413 = vmatmul.mubr.f32.gmra.mrb[0].mxu0 %v4297
  %v4414 = vpop.f32.mrb[0].mxu0
  %v4415 = vadd.f32 %v4287, %v4414
  %v4416 = vpop.f32.mrb[0].mxu0
  %4417 = vmatprep.mubr.f32.mxu0 0.0
  %4418 = vmatmul.mubr.f32.gmra.mrb[0].mxu0 %v4300
  %v4419 = vpop.f32.mrb[0].mxu0
  %v4420 = vadd.f32 %v4287, %v4419
  %v4421 = vpop.f32.mrb[0].mxu0
  %4422 = vmatprep.mubr.f32.mxu0 0.0
  %4423 = vmatmul.mubr.f32.gmra.mrb[0].mxu0 %v4303
  %v4424 = vpop.f32.mrb[0].mxu0
  %v4425 = vadd.f32 %v4287, %v4424
  %v4426 = vpop.f32.mrb[0].mxu0
  %4427 = vmatprep.mubr.f32.mxu0 0.0
  %4428 = vmatmul.mubr.f32.gmra.mrb[0].mxu0 %v4306
  %v4429 = vpop.f32.mrb[0].mxu0
  %v4430 = vadd.f32 %v4287, %v4429
  %v4431 = vpop.f32.mrb[0].mxu0
  %4432 = vmatprep.mubr.f32.mxu0 0.0
  %4433 = vmatmul.mubr.f32.gmra.mrb[0].mxu0 %v4309
  %v4434 = vpop.f32.mrb[0].mxu0
  %v4435 = vadd.f32 %v4287, %v4434
  %v4436 = vpop.f32.mrb[0].mxu0
  %4437 = vmatprep.mubr.f32.mxu0 0.0
  %4438 = vmatmul.mubr.f32.gmra.mrb[0].mxu0 %v4312
  %v4439 = vpop.f32.mrb[0].mxu0
  %v4440 = vadd.f32 %v4287, %v4439
  %v4441 = vpop.f32.mrb[0].mxu0
  %4442 = vmatprep.mubr.f32.mxu0 0.0
  %4443 = vmatmul.mubr.f32.gmra.mrb[0].mxu0 %v4315
  %v4444 = vpop.f32.mrb[0].mxu0
  %v4445 = vadd.f32 %v4287, %v4444
  %v4446 = vpop.f32.mrb[0].mxu0
  %4447 = vmatprep.mubr.f32.mxu0 0.0
  %4448 = vmatmul.mubr.f32.gmra.mrb[0].mxu0 %v4318
  %v4449 = vpop.f32.mrb[0].mxu0
  %v4450 = vadd.f32 %v4287, %v4449
  %v4451 = vpop.f32.mrb[0].mxu0
  %4452 = vmatprep.mubr.f32.mxu0 0.0
  %4453 = vmatmul.mubr.f32.gmra.mrb[0].mxu0 %v4321
  %v4454 = vpop.f32.mrb[0].mxu0
  %v4455 = vadd.f32 %v4287, %v4454
  %v4456 = vpop.f32.mrb[0].mxu0
  %4457 = vmatprep.mubr.f32.mxu0 0.0
  %4458 = vmatmul.mubr.f32.gmra.mrb[0].mxu0 %v4324
  %v4459 = vpop.f32.mrb[0].mxu0
  %v4460 = vadd.f32 %v4287, %v4459
  %v4461 = vpop.f32.mrb[0].mxu0
  %4462 = vmatprep.mubr.f32.mxu0 0.0
  %4463 = vmatmul.mubr.f32.gmra.mrb[0].mxu0 %v4327
  %v4464 = vpop.f32.mrb[0].mxu0
  %v4465 = vadd.f32 %v4287, %v4464
  %v4466 = vpop.f32.mrb[0].mxu0
  %4467 = vmatprep.mubr.f32.mxu0 0.0
  %4468 = vmatmul.mubr.f32.gmra.mrb[0].mxu0 %v4330
  %v4469 = vpop.f32.mrb[0].mxu0
  %v4470 = vadd.f32 %v4287, %v4469
  %v4471 = vpop.f32.mrb[0].mxu0
  %4472 = vmatprep.mubr.f32.mxu0 0.0
  %4473 = vmatmul.mubr.f32.gmra.mrb[0].mxu0 %v4333
  %v4474 = vpop.f32.mrb[0].mxu0
  %v4475 = vadd.f32 %v4287, %v4474
  %v4476 = vpop.f32.mrb[0].mxu0
  %4477 = vmatprep.mubr.f32.mxu0 0.0
  %4478 = vmatmul.mubr.f32.gmra.mrb[0].mxu0 %v4336
  %v4479 = vpop.f32.mrb[0].mxu0
  %v4480 = vadd.f32 %v4287, %v4479
  %v4481 = vpop.f32.mrb[0].mxu0
  %4482 = vdwg.mxu0
  %4483 = vst.msk [vmem:[%s12] sm:$0xff] %vm65, %v4405
  %4484 = vst.msk [vmem:[%s12 + $0x8] sm:$0xff] %vm65, %v4410
  %4485 = vst.msk [vmem:[%s12 + $0x10] sm:$0xff] %vm65, %v4415
  %4486 = vst.msk [vmem:[%s12 + $0x18] sm:$0xff] %vm65, %v4420
  %4487 = vst.msk [vmem:[%s12 + $0x20] sm:$0xff] %vm65, %v4425
  %4488 = vst.msk [vmem:[%s12 + $0x28] sm:$0xff] %vm65, %v4430
  %4489 = vst.msk [vmem:[%s12 + $0x30] sm:$0xff] %vm65, %v4435
  %4490 = vst.msk [vmem:[%s12 + $0x38] sm:$0xff] %vm65, %v4440
  %4491 = vst.msk [vmem:[%s12 + $0x40] sm:$0xff] %vm65, %v4445
  %4492 = vst.msk [vmem:[%s12 + $0x48] sm:$0xff] %vm65, %v4450
  %4493 = vst.msk [vmem:[%s12 + $0x50] sm:$0xff] %vm65, %v4455
  %4494 = vst.msk [vmem:[%s12 + $0x58] sm:$0xff] %vm65, %v4460
  %4495 = vst.msk [vmem:[%s12 + $0x60] sm:$0xff] %vm65, %v4465
  %4496 = vst.msk [vmem:[%s12 + $0x68] sm:$0xff] %vm65, %v4470
  %4497 = vst.msk [vmem:[%s12 + $0x70] sm:$0xff] %vm65, %v4475
  %4498 = vst.msk [vmem:[%s12 + $0x78] sm:$0xff] %vm65, %v4480
  // Predicated region
  $region50: #{tpu_custom_call.1} parent=0 // pred_check
    _
  $region51: #{tpu_custom_call.1} parent=0 // pred_check_branch
    %4500 = sbr.rel (0) target = $region53
  $region52: #{tpu_custom_call.1} parent=0 // pred_region
    _
  $region53: #{tpu_custom_call.1} parent=0 // pred_fallthru
    _
  // Predicated region
  $region54: #{tpu_custom_call.1} parent=0 // pred_check
    _
  $region55: #{tpu_custom_call.1} parent=0 // pred_check_branch
    %4502 = sbr.rel (0) target = $region57
  $region56: #{tpu_custom_call.1} parent=0 // pred_region
    _
  $region57: #{tpu_custom_call.1} parent=0 // pred_fallthru
    _

</llo_original>
